<compile_context>
chip_gen: v7x
topology: tpu7x:2x2x1
jax: 0.10.0
libtpu: 0.0.40
codegen_flags: <defaults>
</compile_context>

<pallas_src>
import functools

import jax
import jax.numpy as jnp
from jax.experimental import pallas as pl
from jax.experimental.pallas import tpu as pltpu

LN_EPS = 1e-5


def _layer_norm(x, gamma, beta, eps=LN_EPS):
    mu = jnp.mean(x, axis=-1, keepdims=True)
    var = jnp.mean((x - mu) ** 2, axis=-1, keepdims=True)  # biased var (PyTorch LN)
    return (x - mu) * jax.lax.rsqrt(var + eps) * gamma + beta


def actor_kernel(
    x_ref,                       # (B, S)        f32
    w_emb_ref, b_emb_ref,        # (S, D) f32, (1, D) f32
    wvo_ref, bvo_ref,            # (1, D, D) bf16, (1, 1, D) f32  fused V∘out proj
    ln1g_ref, ln1b_ref,          # (1, 1, D) f32
    w1_ref, b1_ref,              # (1, D, F) bf16, (1, 1, F) f32  FFN linear1
    w2_ref, b2_ref,              # (1, F, D) bf16, (1, 1, D) f32  FFN linear2
    ln2g_ref, ln2b_ref,          # (1, 1, D) f32
    w_out_ref, b_out_ref,        # (D, A) f32, (1, A) f32
    mean_ref,                    # output: (B, A) f32
    h_ref,                       # scratch: (B, D) f32, carried across layers
):
    layer = pl.program_id(0)

    # --- state_embedding: only on the first grid step ---
    @pl.when(layer == 0)
    def _():
        h_ref[...] = (
            jnp.dot(x_ref[...], w_emb_ref[...], preferred_element_type=jnp.float32)
            + b_emb_ref[...]
        )

    h = h_ref[...]

    # --- self-attention block (seq_len == 1 => attn == out_proj(V);
    #     W_vo pre-fused host-side so it is a single matmul) ---
    sa = (
        jnp.dot(h.astype(jnp.bfloat16), wvo_ref[0], preferred_element_type=jnp.float32)
        + bvo_ref[0]
    )
    h = _layer_norm(h + sa, ln1g_ref[0], ln1b_ref[0])

    # --- feed-forward block ---
    ff = (
        jnp.dot(h.astype(jnp.bfloat16), w1_ref[0], preferred_element_type=jnp.float32)
        + b1_ref[0]
    )
    ff = jnp.maximum(ff, 0.0)  # relu
    ff = (
        jnp.dot(ff.astype(jnp.bfloat16), w2_ref[0], preferred_element_type=jnp.float32)
        + b2_ref[0]
    )
    h = _layer_norm(h + ff, ln2g_ref[0], ln2b_ref[0])
    h_ref[...] = h

    # --- output head: only on the last grid step ---
    @pl.when(layer == pl.num_programs(0) - 1)
    def _():
        mean_ref[...] = (
            jnp.dot(h, w_out_ref[...], preferred_element_type=jnp.float32)
            + b_out_ref[...]
        ).astype(mean_ref.dtype)


def transformer_actor_forward(prep, state):
    """Returns (action_mean, action_std), each (B, action_dim)."""
    B, S = state.shape
    L, D, _ = prep["wvo"].shape
    F = prep["w1"].shape[2]
    A = prep["w_out"].shape[1]

    in_specs = [
        pl.BlockSpec((B, S), lambda l: (0, 0)),        # state (resident)
        pl.BlockSpec((S, D), lambda l: (0, 0)),        # w_emb
        pl.BlockSpec((1, D), lambda l: (0, 0)),        # b_emb
        pl.BlockSpec((1, D, D), lambda l: (l, 0, 0)),  # wvo (bf16, streamed per layer)
        pl.BlockSpec((1, 1, D), lambda l: (l, 0, 0)),  # bvo
        pl.BlockSpec((1, 1, D), lambda l: (l, 0, 0)),  # ln1_g
        pl.BlockSpec((1, 1, D), lambda l: (l, 0, 0)),  # ln1_b
        pl.BlockSpec((1, D, F), lambda l: (l, 0, 0)),  # w1 (bf16, streamed per layer)
        pl.BlockSpec((1, 1, F), lambda l: (l, 0, 0)),  # b1
        pl.BlockSpec((1, F, D), lambda l: (l, 0, 0)),  # w2 (bf16, streamed per layer)
        pl.BlockSpec((1, 1, D), lambda l: (l, 0, 0)),  # b2
        pl.BlockSpec((1, 1, D), lambda l: (l, 0, 0)),  # ln2_g
        pl.BlockSpec((1, 1, D), lambda l: (l, 0, 0)),  # ln2_b
        pl.BlockSpec((D, A), lambda l: (0, 0)),        # w_out
        pl.BlockSpec((1, A), lambda l: (0, 0)),        # b_out
    ]

    mean = pl.pallas_call(
        actor_kernel,
        out_shape=jax.ShapeDtypeStruct((B, A), jnp.float32),
        grid_spec=pltpu.PrefetchScalarGridSpec(
            num_scalar_prefetch=0,
            grid=(L,),
            in_specs=in_specs,
            out_specs=pl.BlockSpec((B, A), lambda l: (0, 0)),
            scratch_shapes=[pltpu.VMEM((B, D), jnp.float32)],
        ),
        compiler_params=pltpu.CompilerParams(dimension_semantics=("arbitrary",)),
    )(
        state,
        prep["w_emb"], prep["b_emb"],
        prep["wvo"], prep["bvo"],
        prep["ln1_g"], prep["ln1_b"],
        prep["w1"], prep["b1"],
        prep["w2"], prep["b2"],
        prep["ln2_g"], prep["ln2_b"],
        prep["w_out"], prep["b_out"],
    )

    # std = exp(log_std).expand_as(mean) is state-independent -> computed here,
    # not in the kernel (drops one masked (B, A) output store).
    std = jnp.broadcast_to(jnp.exp(prep["log_std"]), (B, A)).astype(jnp.float32)
    return mean, std


def init_params(key, state_dim, action_dim, d_model=64, num_layers=2, dim_ff=2048):
    """Raw f32 parameters matching the PyTorch module's parameterization
    (Linear weights stored as (in, out) so y = x @ W + b)."""
    keys = iter(jax.random.split(key, 32))

    def lin(fan_in, shape):
        return (jax.random.normal(next(keys), shape, jnp.float32)
                / jnp.sqrt(jnp.float32(fan_in)))

    p = {}
    p["w_emb"] = lin(state_dim, (state_dim, d_model))
    p["b_emb"] = lin(state_dim, (1, d_model))

    p["wv"] = lin(d_model, (num_layers, d_model, d_model))
    p["bv"] = lin(d_model, (num_layers, 1, d_model))
    p["wo"] = lin(d_model, (num_layers, d_model, d_model))
    p["bo"] = lin(d_model, (num_layers, 1, d_model))
    p["ln1_g"] = jnp.ones((num_layers, 1, d_model), jnp.float32)
    p["ln1_b"] = jnp.zeros((num_layers, 1, d_model), jnp.float32)

    p["w1"] = lin(d_model, (num_layers, d_model, dim_ff))
    p["b1"] = lin(d_model, (num_layers, 1, dim_ff))
    p["w2"] = lin(dim_ff, (num_layers, dim_ff, d_model))
    p["b2"] = lin(dim_ff, (num_layers, 1, d_model))
    p["ln2_g"] = jnp.ones((num_layers, 1, d_model), jnp.float32)
    p["ln2_b"] = jnp.zeros((num_layers, 1, d_model), jnp.float32)

    p["w_out"] = lin(d_model, (d_model, action_dim))
    p["b_out"] = lin(d_model, (1, action_dim))
    p["log_std"] = jnp.zeros((1, action_dim), jnp.float32)  # nn.Parameter(zeros)
    return p


def prepare_params(p):
    """Host-side one-time prep: fuse the attention V/out projections in f32
    (exact for seq_len==1) and store the large weights as bf16 for ~2x less
    HBM->VMEM traffic in this DMA-bound kernel. Biases / LN params stay f32."""
    wvo = jnp.einsum("lij,ljk->lik", p["wv"], p["wo"])             # (L, D, D)
    bvo = jnp.einsum("lij,ljk->lik", p["bv"], p["wo"]) + p["bo"]   # (L, 1, D)
    return {
        "w_emb": p["w_emb"], "b_emb": p["b_emb"],
        "wvo": wvo.astype(jnp.bfloat16), "bvo": bvo,
        "ln1_g": p["ln1_g"], "ln1_b": p["ln1_b"],
        "w1": p["w1"].astype(jnp.bfloat16), "b1": p["b1"],
        "w2": p["w2"].astype(jnp.bfloat16), "b2": p["b2"],
        "ln2_g": p["ln2_g"], "ln2_b": p["ln2_b"],
        "w_out": p["w_out"], "b_out": p["b_out"],
        "log_std": p["log_std"],
    }


if __name__ == "__main__":
    B, STATE_DIM, ACTION_DIM = 8, 16, 4
    D_MODEL, NHEAD, NUM_LAYERS, DIM_FF = 64, 4, 2, 2048  # PyTorch defaults

    key = jax.random.PRNGKey(0)
    pkey, xkey = jax.random.split(key)
    raw_params = init_params(pkey, STATE_DIM, ACTION_DIM, D_MODEL, NUM_LAYERS, DIM_FF)
    prep = prepare_params(raw_params)
    state = jax.random.normal(xkey, (B, STATE_DIM), jnp.float32)

    fwd = jax.jit(functools.partial(transformer_actor_forward, prep))
    action_mean, action_std = fwd(state)
    jax.block_until_ready((action_mean, action_std))

    assert action_mean.shape == (B, ACTION_DIM)
    assert action_std.shape == (B, ACTION_DIM)
    assert bool(jnp.all(jnp.isfinite(action_mean)))
    assert bool(jnp.allclose(action_std, 1.0))  # exp(0) expanded

    print("KERNEL_OK")
</pallas_src>

<mosaic_0001>
module attributes {stable_mosaic.version = 11 : i64} {
  func.func @actor_kernel(%arg0: i32, %arg1: memref<8x16xf32, #tpu.memory_space<vmem>>, %arg2: memref<16x64xf32, #tpu.memory_space<vmem>>, %arg3: memref<1x64xf32, #tpu.memory_space<vmem>>, %arg4: memref<1x64x64xbf16, #tpu.memory_space<vmem>>, %arg5: memref<1x1x64xf32, #tpu.memory_space<vmem>>, %arg6: memref<1x1x64xf32, #tpu.memory_space<vmem>>, %arg7: memref<1x1x64xf32, #tpu.memory_space<vmem>>, %arg8: memref<1x64x2048xbf16, #tpu.memory_space<vmem>>, %arg9: memref<1x1x2048xf32, #tpu.memory_space<vmem>>, %arg10: memref<1x2048x64xbf16, #tpu.memory_space<vmem>>, %arg11: memref<1x1x64xf32, #tpu.memory_space<vmem>>, %arg12: memref<1x1x64xf32, #tpu.memory_space<vmem>>, %arg13: memref<1x1x64xf32, #tpu.memory_space<vmem>>, %arg14: memref<64x4xf32, #tpu.memory_space<vmem>>, %arg15: memref<1x4xf32, #tpu.memory_space<vmem>>, %arg16: memref<8x4xf32, #tpu.memory_space<vmem>>, %arg17: memref<8x64xf32, #tpu.memory_space<vmem>>) attributes {dimension_semantics = [#tpu.dimension_semantics<arbitrary>], iteration_bounds = array<i64: 2>, scalar_prefetch = 0 : i64, scratch_operands = 1 : i64, tpu.core_type = #tpu.core_type<tc>, window_params = [{pipeline_mode = #tpu.pipeline_mode<synchronous>, transform_indices = @transform_0, window_bounds = array<i64: 8, 16>}, {pipeline_mode = #tpu.pipeline_mode<synchronous>, transform_indices = @transform_1, window_bounds = array<i64: 16, 64>}, {pipeline_mode = #tpu.pipeline_mode<synchronous>, transform_indices = @transform_2, window_bounds = array<i64: 1, 64>}, {transform_indices = @transform_3, window_bounds = array<i64: 1, 64, 64>}, {transform_indices = @transform_4, window_bounds = array<i64: 1, 1, 64>}, {transform_indices = @transform_5, window_bounds = array<i64: 1, 1, 64>}, {transform_indices = @transform_6, window_bounds = array<i64: 1, 1, 64>}, {transform_indices = @transform_7, window_bounds = array<i64: 1, 64, 2048>}, {transform_indices = @transform_8, window_bounds = array<i64: 1, 1, 2048>}, {transform_indices = @transform_9, window_bounds = array<i64: 1, 2048, 64>}, {transform_indices = @transform_10, window_bounds = array<i64: 1, 1, 64>}, {transform_indices = @transform_11, window_bounds = array<i64: 1, 1, 64>}, {transform_indices = @transform_12, window_bounds = array<i64: 1, 1, 64>}, {pipeline_mode = #tpu.pipeline_mode<synchronous>, transform_indices = @transform_13, window_bounds = array<i64: 64, 4>}, {pipeline_mode = #tpu.pipeline_mode<synchronous>, transform_indices = @transform_14, window_bounds = array<i64: 1, 4>}, {pipeline_mode = #tpu.pipeline_mode<synchronous>, transform_indices = @transform_15, window_bounds = array<i64: 8, 4>}]} {
    %c0_i32 = arith.constant 0 : i32
    %0 = arith.cmpi eq, %arg0, %c0_i32 : i32
    %1 = arith.extui %0 : i1 to i32
    %c0_i32_0 = arith.constant 0 : i32
    %2 = arith.cmpi ne, %1, %c0_i32_0 : i32
    scf.if %2 {
      %c0_48 = arith.constant 0 : index
      %c0_49 = arith.constant 0 : index
      %88 = vector.load %arg1[%c0_48, %c0_49] : memref<8x16xf32, #tpu.memory_space<vmem>>, vector<8x16xf32>
      %c0_50 = arith.constant 0 : index
      %c0_51 = arith.constant 0 : index
      %89 = vector.load %arg2[%c0_50, %c0_51] : memref<16x64xf32, #tpu.memory_space<vmem>>, vector<16x64xf32>
      %cst_52 = arith.constant dense<0.000000e+00> : vector<8x64xf32>
      %90 = tpu.matmul %88, %89, %cst_52 {dimension_numbers = #tpu.dot_dimension_numbers<[1], [0], [0], [1], [0, 0, 1, 1], [], []>} : vector<8x16xf32>, vector<16x64xf32>, vector<8x64xf32> -> vector<8x64xf32>
      %c0_53 = arith.constant 0 : index
      %c0_54 = arith.constant 0 : index
      %91 = vector.load %arg3[%c0_53, %c0_54] : memref<1x64xf32, #tpu.memory_space<vmem>>, vector<1x64xf32>
      %92 = vector.broadcast %91 : vector<1x64xf32> to vector<8x64xf32>
      %93 = arith.addf %90, %92 : vector<8x64xf32>
      %c0_55 = arith.constant 0 : index
      %c0_56 = arith.constant 0 : index
      %94 = vector.load %arg17[%c0_55, %c0_56] : memref<8x64xf32, #tpu.memory_space<vmem>>, vector<8x64xf32>
      tpu.vector_store %arg17[%c0_55, %c0_56], %93 {strides = array<i32>} : memref<8x64xf32, #tpu.memory_space<vmem>>, vector<8x64xf32>,
    } else {
    }
    %c0 = arith.constant 0 : index
    %c0_1 = arith.constant 0 : index
    %3 = vector.load %arg17[%c0, %c0_1] : memref<8x64xf32, #tpu.memory_space<vmem>>, vector<8x64xf32>
    %4 = arith.truncf %3 : vector<8x64xf32> to vector<8x64xbf16>
    %c0_2 = arith.constant 0 : index
    %c0_3 = arith.constant 0 : index
    %c0_4 = arith.constant 0 : index
    %5 = vector.load %arg4[%c0_2, %c0_3, %c0_4] : memref<1x64x64xbf16, #tpu.memory_space<vmem>>, vector<1x64x64xbf16>
    %6 = vector.shape_cast %5 : vector<1x64x64xbf16> to vector<64x64xbf16>
    %cst = arith.constant dense<0.000000e+00> : vector<8x64xf32>
    %7 = tpu.matmul %4, %6, %cst {dimension_numbers = #tpu.dot_dimension_numbers<[1], [0], [0], [1], [0, 0, 1, 1], [], []>} : vector<8x64xbf16>, vector<64x64xbf16>, vector<8x64xf32> -> vector<8x64xf32>
    %c0_5 = arith.constant 0 : index
    %c0_6 = arith.constant 0 : index
    %c0_7 = arith.constant 0 : index
    %8 = vector.load %arg5[%c0_5, %c0_6, %c0_7] : memref<1x1x64xf32, #tpu.memory_space<vmem>>, vector<1x1x64xf32>
    %9 = vector.shape_cast %8 : vector<1x1x64xf32> to vector<1x64xf32>
    %10 = vector.broadcast %9 : vector<1x64xf32> to vector<8x64xf32>
    %11 = arith.addf %7, %10 : vector<8x64xf32>
    %12 = arith.addf %3, %11 : vector<8x64xf32>
    %c0_8 = arith.constant 0 : index
    %c0_9 = arith.constant 0 : index
    %c0_10 = arith.constant 0 : index
    %13 = vector.load %arg6[%c0_8, %c0_9, %c0_10] : memref<1x1x64xf32, #tpu.memory_space<vmem>>, vector<1x1x64xf32>
    %14 = vector.shape_cast %13 : vector<1x1x64xf32> to vector<1x64xf32>
    %c0_11 = arith.constant 0 : index
    %c0_12 = arith.constant 0 : index
    %c0_13 = arith.constant 0 : index
    %15 = vector.load %arg7[%c0_11, %c0_12, %c0_13] : memref<1x1x64xf32, #tpu.memory_space<vmem>>, vector<1x1x64xf32>
    %16 = vector.shape_cast %15 : vector<1x1x64xf32> to vector<1x64xf32>
    %cst_14 = arith.constant dense<0.000000e+00> : vector<8xf32>
    %17 = vector.multi_reduction <add>, %12, %cst_14 [1] : vector<8x64xf32> to vector<8xf32>
    %18 = vector.shape_cast %17 : vector<8xf32> to vector<8x1xf32>
    %cst_15 = arith.constant 6.400000e+01 : f32
    %19 = vector.broadcast %cst_15 : f32 to vector<8x1xf32>
    %20 = arith.divf %18, %19 : vector<8x1xf32>
    %21 = vector.broadcast %20 : vector<8x1xf32> to vector<8x64xf32>
    %22 = arith.subf %12, %21 : vector<8x64xf32>
    %23 = arith.mulf %22, %22 : vector<8x64xf32>
    %cst_16 = arith.constant dense<0.000000e+00> : vector<8xf32>
    %24 = vector.multi_reduction <add>, %23, %cst_16 [1] : vector<8x64xf32> to vector<8xf32>
    %25 = vector.shape_cast %24 : vector<8xf32> to vector<8x1xf32>
    %cst_17 = arith.constant 6.400000e+01 : f32
    %26 = vector.broadcast %cst_17 : f32 to vector<8x1xf32>
    %27 = arith.divf %25, %26 : vector<8x1xf32>
    %28 = vector.broadcast %20 : vector<8x1xf32> to vector<8x64xf32>
    %29 = arith.subf %12, %28 : vector<8x64xf32>
    %cst_18 = arith.constant 9.99999974E-6 : f32
    %30 = vector.broadcast %cst_18 : f32 to vector<8x1xf32>
    %31 = arith.addf %27, %30 : vector<8x1xf32>
    %32 = math.rsqrt %31 : vector<8x1xf32>
    %33 = vector.broadcast %32 : vector<8x1xf32> to vector<8x64xf32>
    %34 = arith.mulf %29, %33 : vector<8x64xf32>
    %35 = vector.broadcast %14 : vector<1x64xf32> to vector<8x64xf32>
    %36 = arith.mulf %34, %35 : vector<8x64xf32>
    %37 = vector.broadcast %16 : vector<1x64xf32> to vector<8x64xf32>
    %38 = arith.addf %36, %37 : vector<8x64xf32>
    %39 = arith.truncf %38 : vector<8x64xf32> to vector<8x64xbf16>
    %c0_19 = arith.constant 0 : index
    %c0_20 = arith.constant 0 : index
    %c0_21 = arith.constant 0 : index
    %40 = vector.load %arg8[%c0_19, %c0_20, %c0_21] : memref<1x64x2048xbf16, #tpu.memory_space<vmem>>, vector<1x64x2048xbf16>
    %41 = vector.shape_cast %40 : vector<1x64x2048xbf16> to vector<64x2048xbf16>
    %cst_22 = arith.constant dense<0.000000e+00> : vector<8x2048xf32>
    %42 = tpu.matmul %39, %41, %cst_22 {dimension_numbers = #tpu.dot_dimension_numbers<[1], [0], [0], [1], [0, 0, 1, 1], [], []>} : vector<8x64xbf16>, vector<64x2048xbf16>, vector<8x2048xf32> -> vector<8x2048xf32>
    %c0_23 = arith.constant 0 : index
    %c0_24 = arith.constant 0 : index
    %c0_25 = arith.constant 0 : index
    %43 = vector.load %arg9[%c0_23, %c0_24, %c0_25] : memref<1x1x2048xf32, #tpu.memory_space<vmem>>, vector<1x1x2048xf32>
    %44 = vector.shape_cast %43 : vector<1x1x2048xf32> to vector<1x2048xf32>
    %45 = vector.broadcast %44 : vector<1x2048xf32> to vector<8x2048xf32>
    %46 = arith.addf %42, %45 : vector<8x2048xf32>
    %cst_26 = arith.constant 0.000000e+00 : f32
    %47 = vector.broadcast %cst_26 : f32 to vector<8x2048xf32>
    %48 = arith.maximumf %46, %47 : vector<8x2048xf32>
    %49 = arith.truncf %48 : vector<8x2048xf32> to vector<8x2048xbf16>
    %c0_27 = arith.constant 0 : index
    %c0_28 = arith.constant 0 : index
    %c0_29 = arith.constant 0 : index
    %50 = vector.load %arg10[%c0_27, %c0_28, %c0_29] : memref<1x2048x64xbf16, #tpu.memory_space<vmem>>, vector<1x2048x64xbf16>
    %51 = vector.shape_cast %50 : vector<1x2048x64xbf16> to vector<2048x64xbf16>
    %cst_30 = arith.constant dense<0.000000e+00> : vector<8x64xf32>
    %52 = tpu.matmul %49, %51, %cst_30 {dimension_numbers = #tpu.dot_dimension_numbers<[1], [0], [0], [1], [0, 0, 1, 1], [], []>} : vector<8x2048xbf16>, vector<2048x64xbf16>, vector<8x64xf32> -> vector<8x64xf32>
    %c0_31 = arith.constant 0 : index
    %c0_32 = arith.constant 0 : index
    %c0_33 = arith.constant 0 : index
    %53 = vector.load %arg11[%c0_31, %c0_32, %c0_33] : memref<1x1x64xf32, #tpu.memory_space<vmem>>, vector<1x1x64xf32>
    %54 = vector.shape_cast %53 : vector<1x1x64xf32> to vector<1x64xf32>
    %55 = vector.broadcast %54 : vector<1x64xf32> to vector<8x64xf32>
    %56 = arith.addf %52, %55 : vector<8x64xf32>
    %57 = arith.addf %38, %56 : vector<8x64xf32>
    %c0_34 = arith.constant 0 : index
    %c0_35 = arith.constant 0 : index
    %c0_36 = arith.constant 0 : index
    %58 = vector.load %arg12[%c0_34, %c0_35, %c0_36] : memref<1x1x64xf32, #tpu.memory_space<vmem>>, vector<1x1x64xf32>
    %59 = vector.shape_cast %58 : vector<1x1x64xf32> to vector<1x64xf32>
    %c0_37 = arith.constant 0 : index
    %c0_38 = arith.constant 0 : index
    %c0_39 = arith.constant 0 : index
    %60 = vector.load %arg13[%c0_37, %c0_38, %c0_39] : memref<1x1x64xf32, #tpu.memory_space<vmem>>, vector<1x1x64xf32>
    %61 = vector.shape_cast %60 : vector<1x1x64xf32> to vector<1x64xf32>
    %cst_40 = arith.constant dense<0.000000e+00> : vector<8xf32>
    %62 = vector.multi_reduction <add>, %57, %cst_40 [1] : vector<8x64xf32> to vector<8xf32>
    %63 = vector.shape_cast %62 : vector<8xf32> to vector<8x1xf32>
    %cst_41 = arith.constant 6.400000e+01 : f32
    %64 = vector.broadcast %cst_41 : f32 to vector<8x1xf32>
    %65 = arith.divf %63, %64 : vector<8x1xf32>
    %66 = vector.broadcast %65 : vector<8x1xf32> to vector<8x64xf32>
    %67 = arith.subf %57, %66 : vector<8x64xf32>
    %68 = arith.mulf %67, %67 : vector<8x64xf32>
    %cst_42 = arith.constant dense<0.000000e+00> : vector<8xf32>
    %69 = vector.multi_reduction <add>, %68, %cst_42 [1] : vector<8x64xf32> to vector<8xf32>
    %70 = vector.shape_cast %69 : vector<8xf32> to vector<8x1xf32>
    %cst_43 = arith.constant 6.400000e+01 : f32
    %71 = vector.broadcast %cst_43 : f32 to vector<8x1xf32>
    %72 = arith.divf %70, %71 : vector<8x1xf32>
    %73 = vector.broadcast %65 : vector<8x1xf32> to vector<8x64xf32>
    %74 = arith.subf %57, %73 : vector<8x64xf32>
    %cst_44 = arith.constant 9.99999974E-6 : f32
    %75 = vector.broadcast %cst_44 : f32 to vector<8x1xf32>
    %76 = arith.addf %72, %75 : vector<8x1xf32>
    %77 = math.rsqrt %76 : vector<8x1xf32>
    %78 = vector.broadcast %77 : vector<8x1xf32> to vector<8x64xf32>
    %79 = arith.mulf %74, %78 : vector<8x64xf32>
    %80 = vector.broadcast %59 : vector<1x64xf32> to vector<8x64xf32>
    %81 = arith.mulf %79, %80 : vector<8x64xf32>
    %82 = vector.broadcast %61 : vector<1x64xf32> to vector<8x64xf32>
    %83 = arith.addf %81, %82 : vector<8x64xf32>
    %c0_45 = arith.constant 0 : index
    %c0_46 = arith.constant 0 : index
    %84 = vector.load %arg17[%c0_45, %c0_46] : memref<8x64xf32, #tpu.memory_space<vmem>>, vector<8x64xf32>
    tpu.vector_store %arg17[%c0_45, %c0_46], %83 {strides = array<i32>} : memref<8x64xf32, #tpu.memory_space<vmem>>, vector<8x64xf32>,
    %c1_i32 = arith.constant 1 : i32
    %85 = arith.cmpi eq, %arg0, %c1_i32 : i32
    %86 = arith.extui %85 : i1 to i32
    %c0_i32_47 = arith.constant 0 : i32
    %87 = arith.cmpi ne, %86, %c0_i32_47 : i32
    scf.if %87 {
      %c0_48 = arith.constant 0 : index
      %c0_49 = arith.constant 0 : index
      %88 = vector.load %arg14[%c0_48, %c0_49] : memref<64x4xf32, #tpu.memory_space<vmem>>, vector<64x4xf32>
      %cst_50 = arith.constant dense<0.000000e+00> : vector<8x4xf32>
      %89 = tpu.matmul %83, %88, %cst_50 {dimension_numbers = #tpu.dot_dimension_numbers<[1], [0], [0], [1], [0, 0, 1, 1], [], []>} : vector<8x64xf32>, vector<64x4xf32>, vector<8x4xf32> -> vector<8x4xf32>
      %c0_51 = arith.constant 0 : index
      %c0_52 = arith.constant 0 : index
      %90 = vector.load %arg15[%c0_51, %c0_52] : memref<1x4xf32, #tpu.memory_space<vmem>>, vector<1x4xf32>
      %91 = vector.broadcast %90 : vector<1x4xf32> to vector<8x4xf32>
      %92 = arith.addf %89, %91 : vector<8x4xf32>
      %c0_53 = arith.constant 0 : index
      %c0_54 = arith.constant 0 : index
      %93 = vector.load %arg16[%c0_53, %c0_54] : memref<8x4xf32, #tpu.memory_space<vmem>>, vector<8x4xf32>
      tpu.vector_store %arg16[%c0_53, %c0_54], %92 {strides = array<i32>} : memref<8x4xf32, #tpu.memory_space<vmem>>, vector<8x4xf32>,
    } else {
    }
    return
  }
  func.func @transform_0(%arg0: i32) -> (i32, i32) {
    %c0_i32 = arith.constant 0 : i32
    %c0_i32_0 = arith.constant 0 : i32
    %c0_i32_1 = arith.constant 0 : i32
    return %c0_i32, %c0_i32_0 : i32, i32
  }
  func.func @transform_1(%arg0: i32) -> (i32, i32) {
    %c0_i32 = arith.constant 0 : i32
    %c0_i32_0 = arith.constant 0 : i32
    %c0_i32_1 = arith.constant 0 : i32
    return %c0_i32, %c0_i32_0 : i32, i32
  }
  func.func @transform_2(%arg0: i32) -> (i32, i32) {
    %c0_i32 = arith.constant 0 : i32
    %c0_i32_0 = arith.constant 0 : i32
    %c0_i32_1 = arith.constant 0 : i32
    return %c0_i32, %c0_i32_0 : i32, i32
  }
  func.func @transform_3(%arg0: i32) -> (i32, i32, i32) {
    %c0_i32 = arith.constant 0 : i32
    %c0_i32_0 = arith.constant 0 : i32
    %c0_i32_1 = arith.constant 0 : i32
    return %arg0, %c0_i32, %c0_i32_0 : i32, i32, i32
  }
  func.func @transform_4(%arg0: i32) -> (i32, i32, i32) {
    %c0_i32 = arith.constant 0 : i32
    %c0_i32_0 = arith.constant 0 : i32
    %c0_i32_1 = arith.constant 0 : i32
    return %arg0, %c0_i32, %c0_i32_0 : i32, i32, i32
  }
  func.func @transform_5(%arg0: i32) -> (i32, i32, i32) {
    %c0_i32 = arith.constant 0 : i32
    %c0_i32_0 = arith.constant 0 : i32
    %c0_i32_1 = arith.constant 0 : i32
    return %arg0, %c0_i32, %c0_i32_0 : i32, i32, i32
  }
  func.func @transform_6(%arg0: i32) -> (i32, i32, i32) {
    %c0_i32 = arith.constant 0 : i32
    %c0_i32_0 = arith.constant 0 : i32
    %c0_i32_1 = arith.constant 0 : i32
    return %arg0, %c0_i32, %c0_i32_0 : i32, i32, i32
  }
  func.func @transform_7(%arg0: i32) -> (i32, i32, i32) {
    %c0_i32 = arith.constant 0 : i32
    %c0_i32_0 = arith.constant 0 : i32
    %c0_i32_1 = arith.constant 0 : i32
    return %arg0, %c0_i32, %c0_i32_0 : i32, i32, i32
  }
  func.func @transform_8(%arg0: i32) -> (i32, i32, i32) {
    %c0_i32 = arith.constant 0 : i32
    %c0_i32_0 = arith.constant 0 : i32
    %c0_i32_1 = arith.constant 0 : i32
    return %arg0, %c0_i32, %c0_i32_0 : i32, i32, i32
  }
  func.func @transform_9(%arg0: i32) -> (i32, i32, i32) {
    %c0_i32 = arith.constant 0 : i32
    %c0_i32_0 = arith.constant 0 : i32
    %c0_i32_1 = arith.constant 0 : i32
    return %arg0, %c0_i32, %c0_i32_0 : i32, i32, i32
  }
  func.func @transform_10(%arg0: i32) -> (i32, i32, i32) {
    %c0_i32 = arith.constant 0 : i32
    %c0_i32_0 = arith.constant 0 : i32
    %c0_i32_1 = arith.constant 0 : i32
    return %arg0, %c0_i32, %c0_i32_0 : i32, i32, i32
  }
  func.func @transform_11(%arg0: i32) -> (i32, i32, i32) {
    %c0_i32 = arith.constant 0 : i32
    %c0_i32_0 = arith.constant 0 : i32
    %c0_i32_1 = arith.constant 0 : i32
    return %arg0, %c0_i32, %c0_i32_0 : i32, i32, i32
  }
  func.func @transform_12(%arg0: i32) -> (i32, i32, i32) {
    %c0_i32 = arith.constant 0 : i32
    %c0_i32_0 = arith.constant 0 : i32
    %c0_i32_1 = arith.constant 0 : i32
    return %arg0, %c0_i32, %c0_i32_0 : i32, i32, i32
  }
  func.func @transform_13(%arg0: i32) -> (i32, i32) {
    %c0_i32 = arith.constant 0 : i32
    %c0_i32_0 = arith.constant 0 : i32
    %c0_i32_1 = arith.constant 0 : i32
    return %c0_i32, %c0_i32_0 : i32, i32
  }
  func.func @transform_14(%arg0: i32) -> (i32, i32) {
    %c0_i32 = arith.constant 0 : i32
    %c0_i32_0 = arith.constant 0 : i32
    %c0_i32_1 = arith.constant 0 : i32
    return %c0_i32, %c0_i32_0 : i32, i32
  }
  func.func @transform_15(%arg0: i32) -> (i32, i32) {
    %c0_i32 = arith.constant 0 : i32
    %c0_i32_0 = arith.constant 0 : i32
    %c0_i32_1 = arith.constant 0 : i32
    return %c0_i32, %c0_i32_0 : i32, i32
  }
}

</mosaic_0001>

<llo_original>
// kernel: transformer_actor_forward.1
$region0: #{transformer_actor_forward.1}
  #allocation0 [shape = 'u32[]', space=smem, size = 0x4, offset = 0x4, fixed_abs, tag = 'smem constant byte address 0x4 - core index']
  #allocation1 [shape = 'u32[144,128]{1,0:T(1,128)}', space=vmem, size = 0x12000, scoped, tag = 'internal scratch']
  #allocation2 [shape = 'f32[8,64]{1,0:T(8,128)}', space=vmem, size = 0x1000, scoped, tag = 'scratch operand']
  %s0 = inlined_call_operand.hbm [shape: f32[8,16], index: 0, kind: input, shape index: {}]
  %s1 = inlined_call_operand.vmem [shape: f32[16,64], index: 1, kind: input, shape index: {}]
  %s2 = inlined_call_operand.vmem [shape: f32[1,64], index: 2, kind: input, shape index: {}]
  %s3 = inlined_call_operand.hbm [shape: bf16[2,64,64], index: 3, kind: input, shape index: {}]
  %s4 = inlined_call_operand.vmem [shape: f32[2,1,64], index: 4, kind: input, shape index: {}]
  %s5 = inlined_call_operand.vmem [shape: f32[2,1,64], index: 5, kind: input, shape index: {}, may-alias: {5,11}]
  %s6 = inlined_call_operand.vmem [shape: f32[2,1,64], index: 6, kind: input, shape index: {}, may-alias: {6,12}]
  %s7 = inlined_call_operand.vmem [shape: bf16[2,64,2048], index: 7, kind: input, shape index: {}]
  %s8 = inlined_call_operand.vmem [shape: f32[2,1,2048], index: 8, kind: input, shape index: {}]
  %s9 = inlined_call_operand.vmem [shape: bf16[2,2048,64], index: 9, kind: input, shape index: {}]
  %s10 = inlined_call_operand.vmem [shape: f32[2,1,64], index: 10, kind: input, shape index: {}]
  %s11 = inlined_call_operand.vmem [shape: f32[2,1,64], index: 11, kind: input, shape index: {}, may-alias: {5,11}]
  %s12 = inlined_call_operand.vmem [shape: f32[2,1,64], index: 12, kind: input, shape index: {}, may-alias: {6,12}]
  %s13 = inlined_call_operand.hbm [shape: f32[64,4], index: 13, kind: input, shape index: {}]
  %s14 = inlined_call_operand.hbm [shape: f32[1,4], index: 14, kind: input, shape index: {}]
  %s15 = inlined_call_operand.vmem [shape: f32[8,4], index: 15, kind: output, shape index: {}]
  %s16 = sld [smem:[#allocation0]]
  $region117: #{transformer_actor_forward.1} parent=0
    _
  %s18 = ssub.s32 1, %s16
  %s19 = scalar_select 0, %s18, %s16
  $region1: #{transformer_actor_forward.1} parent=0
    #allocation3 [shape = 'u8[4096]{0}', space=vmem, size = 0x1000, scoped, tag = 'input window, operand 0, single buffered']
    #allocation4 [shape = 's32[2]{0}', space=sflag, size = 0x8, scoped, tag = 'scoped memory for transformer_actor_forward.1']
    #allocation5 [shape = 'u8[32768]{0}', space=vmem, size = 0x8000, scoped, tag = 'input window, operand 3']
    #allocation6 [shape = 's32[2]{0}', space=sflag, size = 0x8, scoped, tag = 'scoped memory for transformer_actor_forward.1']
    #allocation7 [shape = 'u8[32768]{0}', space=vmem, size = 0x8000, scoped, tag = 'input window, operand 13, single buffered']
    #allocation8 [shape = 'u8[512]{0}', space=vmem, size = 0x400, scoped, tag = 'input window, operand 14, single buffered']
    #allocation9 [shape = 's32[1]{0}', space=sflag, size = 0x4, scoped, tag = 'scoped memory for transformer_actor_forward.1']
    %20 = vsyncpa [#allocation4], 0
    %21 = vsyncpa [#allocation6], 0
    %s22 = scalar_lea.sflag [#allocation6], 1
    %23 = vsyncpa %s22, 0
    %24 = vsyncpa [#allocation9], 0
    loop: start=0, step=1, limit=4
    $region2: #{transformer_actor_forward.1} parent=1 // loop_pre_header
      _
    $region3: #{transformer_actor_forward.1} parent=1 // loop_header
      %s26 = sphi 0, %s30
      %p27 = scmp.ge.s32.totalorder %s26, 4
      %s34 = sphi 0, %s34
      %s36 = sphi 0, %s34
      %s37 = sphi 0, %s36
      %s51 = sphi 0, %s37
      %s55 = sphi 0, %s55
      %s57 = sphi 0, %s55
      %s58 = sphi 0, %s57
      %s72 = sphi 0, %s58
      %s76 = sphi 0, %s76
      %s78 = sphi 0, %s76
      %s79 = sphi 0, %s78
      %s93 = sphi 0, %s79
      %s99 = sphi 0, %s101
      %s102 = sphi 0, %s99
      %s103 = sphi 0, %s102
      %s119 = sphi 0, %s103
      %s125 = sphi 0, %s127
      %s128 = sphi 0, %s125
      %s129 = sphi 0, %s128
      %s145 = sphi 0, %s129
      %s151 = sphi 0, %s153
      %s154 = sphi 0, %s151
      %s155 = sphi 0, %s154
      %s171 = sphi 0, %s155
      %s177 = sphi 0, %s179
      %s180 = sphi 0, %s177
      %s181 = sphi 0, %s180
      %s197 = sphi 0, %s181
      %s203 = sphi 0, %s205
      %s206 = sphi 0, %s203
      %s207 = sphi 0, %s206
      %s223 = sphi 0, %s207
      %s229 = sphi 0, %s231
      %s232 = sphi 0, %s229
      %s233 = sphi 0, %s232
      %s249 = sphi 0, %s233
      %s255 = sphi 0, %s257
      %s258 = sphi 0, %s255
      %s259 = sphi 0, %s258
      %s275 = sphi 0, %s259
      %s281 = sphi 0, %s283
      %s284 = sphi 0, %s281
      %s285 = sphi 0, %s284
      %s301 = sphi 0, %s285
      %s307 = sphi 0, %s309
      %s310 = sphi 0, %s307
      %s311 = sphi 0, %s310
      %s327 = sphi 0, %s311
      %s333 = sphi 0, %s335
      %s336 = sphi 0, %s333
      %s337 = sphi 0, %s336
      %s353 = sphi 0, %s337
      %s357 = sphi 0, %s357
      %s359 = sphi 0, %s357
      %s360 = sphi 0, %s359
      %s374 = sphi 0, %s360
      %s378 = sphi 0, %s378
      %s380 = sphi 0, %s378
      %s381 = sphi 0, %s380
      %s395 = sphi 0, %s381
      %s399 = sphi 0, %s399
      %s401 = sphi 0, %s399
      %s402 = sphi 0, %s401
      %s416 = sphi 0, %s402
    $region4: #{transformer_actor_forward.1} parent=1 // loop_header_branch
      %29 = sbr.rel (%p27) target = $region8
    $region5: #{transformer_actor_forward.1} parent=1 // loop_body
      %s31 = ssub.s32 %s26, 1
      %s32 = ssub.s32 %s26, 2
      %s33 = sadd.s32 %s26, 1
      %s35 = sadd.s32 %s34, 1
      %p38 = scmp.eq.s32.totalorder %s26, 1
      %p39 = scmp.ne.s32.totalorder %s34, %s36
      %p40 = scmp.eq.s32.totalorder %s26, 0
      %p41 = por %p39, %p40
      %p42 = scmp.ne.s32.totalorder %s34, %s36
      %p43 = scmp.eq.s32.totalorder %s31, 1
      %p44 = por %p42, %p43
      %p45 = scmp.ne.s32.totalorder %s36, %s37
      %p46 = scmp.eq.s32.totalorder %s31, 0
      %p47 = por %p45, %p46
      %p48 = scmp.ne.s32.totalorder %s36, %s37
      %p49 = scmp.eq.s32.totalorder %s32, 1
      %p50 = por %p48, %p49
      %p52 = scmp.ne.s32.totalorder %s37, %s51
      %p53 = scmp.eq.s32.totalorder %s32, 0
      %p54 = por %p52, %p53
      %s56 = sadd.s32 %s55, 1
      %p59 = scmp.eq.s32.totalorder %s26, 1
      %p60 = scmp.ne.s32.totalorder %s55, %s57
      %p61 = scmp.eq.s32.totalorder %s26, 0
      %p62 = por %p60, %p61
      %p63 = scmp.ne.s32.totalorder %s55, %s57
      %p64 = scmp.eq.s32.totalorder %s31, 1
      %p65 = por %p63, %p64
      %p66 = scmp.ne.s32.totalorder %s57, %s58
      %p67 = scmp.eq.s32.totalorder %s31, 0
      %p68 = por %p66, %p67
      %p69 = scmp.ne.s32.totalorder %s57, %s58
      %p70 = scmp.eq.s32.totalorder %s32, 1
      %p71 = por %p69, %p70
      %p73 = scmp.ne.s32.totalorder %s58, %s72
      %p74 = scmp.eq.s32.totalorder %s32, 0
      %p75 = por %p73, %p74
      %s77 = sadd.s32 %s76, 1
      %p80 = scmp.eq.s32.totalorder %s26, 1
      %p81 = scmp.ne.s32.totalorder %s76, %s78
      %p82 = scmp.eq.s32.totalorder %s26, 0
      %p83 = por %p81, %p82
      %p84 = scmp.ne.s32.totalorder %s76, %s78
      %p85 = scmp.eq.s32.totalorder %s31, 1
      %p86 = por %p84, %p85
      %p87 = scmp.ne.s32.totalorder %s78, %s79
      %p88 = scmp.eq.s32.totalorder %s31, 0
      %p89 = por %p87, %p88
      %p90 = scmp.ne.s32.totalorder %s78, %s79
      %p91 = scmp.eq.s32.totalorder %s32, 1
      %p92 = por %p90, %p91
      %p94 = scmp.ne.s32.totalorder %s79, %s93
      %p95 = scmp.eq.s32.totalorder %s32, 0
      %p96 = por %p94, %p95
      %s97 = ssub.s32 %s26, %s33
      %p98 = scmp.eq.s32.totalorder %s97, 0
      %s100 = sadd.s32 %s99, 1
      %s101 = scalar_select %p98, %s99, %s100
      %p104 = pneg %p98
      %p105 = scmp.eq.s32.totalorder %s26, 1
      %p106 = por %p104, %p105
      %p107 = scmp.ne.s32.totalorder %s99, %s102
      %p108 = scmp.eq.s32.totalorder %s26, 0
      %p109 = por %p107, %p108
      %p110 = scmp.ne.s32.totalorder %s99, %s102
      %p111 = scmp.eq.s32.totalorder %s31, 1
      %p112 = por %p110, %p111
      %p113 = scmp.ne.s32.totalorder %s102, %s103
      %p114 = scmp.eq.s32.totalorder %s31, 0
      %p115 = por %p113, %p114
      %p116 = scmp.ne.s32.totalorder %s102, %s103
      %p117 = scmp.eq.s32.totalorder %s32, 1
      %p118 = por %p116, %p117
      %p120 = scmp.ne.s32.totalorder %s103, %s119
      %p121 = scmp.eq.s32.totalorder %s32, 0
      %p122 = por %p120, %p121
      %s123 = ssub.s32 %s26, %s33
      %p124 = scmp.eq.s32.totalorder %s123, 0
      %s126 = sadd.s32 %s125, 1
      %s127 = scalar_select %p124, %s125, %s126
      %p130 = pneg %p124
      %p131 = scmp.eq.s32.totalorder %s26, 1
      %p132 = por %p130, %p131
      %p133 = scmp.ne.s32.totalorder %s125, %s128
      %p134 = scmp.eq.s32.totalorder %s26, 0
      %p135 = por %p133, %p134
      %p136 = scmp.ne.s32.totalorder %s125, %s128
      %p137 = scmp.eq.s32.totalorder %s31, 1
      %p138 = por %p136, %p137
      %p139 = scmp.ne.s32.totalorder %s128, %s129
      %p140 = scmp.eq.s32.totalorder %s31, 0
      %p141 = por %p139, %p140
      %p142 = scmp.ne.s32.totalorder %s128, %s129
      %p143 = scmp.eq.s32.totalorder %s32, 1
      %p144 = por %p142, %p143
      %p146 = scmp.ne.s32.totalorder %s129, %s145
      %p147 = scmp.eq.s32.totalorder %s32, 0
      %p148 = por %p146, %p147
      %s149 = ssub.s32 %s26, %s33
      %p150 = scmp.eq.s32.totalorder %s149, 0
      %s152 = sadd.s32 %s151, 1
      %s153 = scalar_select %p150, %s151, %s152
      %p156 = pneg %p150
      %p157 = scmp.eq.s32.totalorder %s26, 1
      %p158 = por %p156, %p157
      %p159 = scmp.ne.s32.totalorder %s151, %s154
      %p160 = scmp.eq.s32.totalorder %s26, 0
      %p161 = por %p159, %p160
      %p162 = scmp.ne.s32.totalorder %s151, %s154
      %p163 = scmp.eq.s32.totalorder %s31, 1
      %p164 = por %p162, %p163
      %p165 = scmp.ne.s32.totalorder %s154, %s155
      %p166 = scmp.eq.s32.totalorder %s31, 0
      %p167 = por %p165, %p166
      %p168 = scmp.ne.s32.totalorder %s154, %s155
      %p169 = scmp.eq.s32.totalorder %s32, 1
      %p170 = por %p168, %p169
      %p172 = scmp.ne.s32.totalorder %s155, %s171
      %p173 = scmp.eq.s32.totalorder %s32, 0
      %p174 = por %p172, %p173
      %s175 = ssub.s32 %s26, %s33
      %p176 = scmp.eq.s32.totalorder %s175, 0
      %s178 = sadd.s32 %s177, 1
      %s179 = scalar_select %p176, %s177, %s178
      %p182 = pneg %p176
      %p183 = scmp.eq.s32.totalorder %s26, 1
      %p184 = por %p182, %p183
      %p185 = scmp.ne.s32.totalorder %s177, %s180
      %p186 = scmp.eq.s32.totalorder %s26, 0
      %p187 = por %p185, %p186
      %p188 = scmp.ne.s32.totalorder %s177, %s180
      %p189 = scmp.eq.s32.totalorder %s31, 1
      %p190 = por %p188, %p189
      %p191 = scmp.ne.s32.totalorder %s180, %s181
      %p192 = scmp.eq.s32.totalorder %s31, 0
      %p193 = por %p191, %p192
      %p194 = scmp.ne.s32.totalorder %s180, %s181
      %p195 = scmp.eq.s32.totalorder %s32, 1
      %p196 = por %p194, %p195
      %p198 = scmp.ne.s32.totalorder %s181, %s197
      %p199 = scmp.eq.s32.totalorder %s32, 0
      %p200 = por %p198, %p199
      %s201 = ssub.s32 %s26, %s33
      %p202 = scmp.eq.s32.totalorder %s201, 0
      %s204 = sadd.s32 %s203, 1
      %s205 = scalar_select %p202, %s203, %s204
      %p208 = pneg %p202
      %p209 = scmp.eq.s32.totalorder %s26, 1
      %p210 = por %p208, %p209
      %p211 = scmp.ne.s32.totalorder %s203, %s206
      %p212 = scmp.eq.s32.totalorder %s26, 0
      %p213 = por %p211, %p212
      %p214 = scmp.ne.s32.totalorder %s203, %s206
      %p215 = scmp.eq.s32.totalorder %s31, 1
      %p216 = por %p214, %p215
      %p217 = scmp.ne.s32.totalorder %s206, %s207
      %p218 = scmp.eq.s32.totalorder %s31, 0
      %p219 = por %p217, %p218
      %p220 = scmp.ne.s32.totalorder %s206, %s207
      %p221 = scmp.eq.s32.totalorder %s32, 1
      %p222 = por %p220, %p221
      %p224 = scmp.ne.s32.totalorder %s207, %s223
      %p225 = scmp.eq.s32.totalorder %s32, 0
      %p226 = por %p224, %p225
      %s227 = ssub.s32 %s26, %s33
      %p228 = scmp.eq.s32.totalorder %s227, 0
      %s230 = sadd.s32 %s229, 1
      %s231 = scalar_select %p228, %s229, %s230
      %p234 = pneg %p228
      %p235 = scmp.eq.s32.totalorder %s26, 1
      %p236 = por %p234, %p235
      %p237 = scmp.ne.s32.totalorder %s229, %s232
      %p238 = scmp.eq.s32.totalorder %s26, 0
      %p239 = por %p237, %p238
      %p240 = scmp.ne.s32.totalorder %s229, %s232
      %p241 = scmp.eq.s32.totalorder %s31, 1
      %p242 = por %p240, %p241
      %p243 = scmp.ne.s32.totalorder %s232, %s233
      %p244 = scmp.eq.s32.totalorder %s31, 0
      %p245 = por %p243, %p244
      %p246 = scmp.ne.s32.totalorder %s232, %s233
      %p247 = scmp.eq.s32.totalorder %s32, 1
      %p248 = por %p246, %p247
      %p250 = scmp.ne.s32.totalorder %s233, %s249
      %p251 = scmp.eq.s32.totalorder %s32, 0
      %p252 = por %p250, %p251
      %s253 = ssub.s32 %s26, %s33
      %p254 = scmp.eq.s32.totalorder %s253, 0
      %s256 = sadd.s32 %s255, 1
      %s257 = scalar_select %p254, %s255, %s256
      %p260 = pneg %p254
      %p261 = scmp.eq.s32.totalorder %s26, 1
      %p262 = por %p260, %p261
      %p263 = scmp.ne.s32.totalorder %s255, %s258
      %p264 = scmp.eq.s32.totalorder %s26, 0
      %p265 = por %p263, %p264
      %p266 = scmp.ne.s32.totalorder %s255, %s258
      %p267 = scmp.eq.s32.totalorder %s31, 1
      %p268 = por %p266, %p267
      %p269 = scmp.ne.s32.totalorder %s258, %s259
      %p270 = scmp.eq.s32.totalorder %s31, 0
      %p271 = por %p269, %p270
      %p272 = scmp.ne.s32.totalorder %s258, %s259
      %p273 = scmp.eq.s32.totalorder %s32, 1
      %p274 = por %p272, %p273
      %p276 = scmp.ne.s32.totalorder %s259, %s275
      %p277 = scmp.eq.s32.totalorder %s32, 0
      %p278 = por %p276, %p277
      %s279 = ssub.s32 %s26, %s33
      %p280 = scmp.eq.s32.totalorder %s279, 0
      %s282 = sadd.s32 %s281, 1
      %s283 = scalar_select %p280, %s281, %s282
      %p286 = pneg %p280
      %p287 = scmp.eq.s32.totalorder %s26, 1
      %p288 = por %p286, %p287
      %p289 = scmp.ne.s32.totalorder %s281, %s284
      %p290 = scmp.eq.s32.totalorder %s26, 0
      %p291 = por %p289, %p290
      %p292 = scmp.ne.s32.totalorder %s281, %s284
      %p293 = scmp.eq.s32.totalorder %s31, 1
      %p294 = por %p292, %p293
      %p295 = scmp.ne.s32.totalorder %s284, %s285
      %p296 = scmp.eq.s32.totalorder %s31, 0
      %p297 = por %p295, %p296
      %p298 = scmp.ne.s32.totalorder %s284, %s285
      %p299 = scmp.eq.s32.totalorder %s32, 1
      %p300 = por %p298, %p299
      %p302 = scmp.ne.s32.totalorder %s285, %s301
      %p303 = scmp.eq.s32.totalorder %s32, 0
      %p304 = por %p302, %p303
      %s305 = ssub.s32 %s26, %s33
      %p306 = scmp.eq.s32.totalorder %s305, 0
      %s308 = sadd.s32 %s307, 1
      %s309 = scalar_select %p306, %s307, %s308
      %p312 = pneg %p306
      %p313 = scmp.eq.s32.totalorder %s26, 1
      %p314 = por %p312, %p313
      %p315 = scmp.ne.s32.totalorder %s307, %s310
      %p316 = scmp.eq.s32.totalorder %s26, 0
      %p317 = por %p315, %p316
      %p318 = scmp.ne.s32.totalorder %s307, %s310
      %p319 = scmp.eq.s32.totalorder %s31, 1
      %p320 = por %p318, %p319
      %p321 = scmp.ne.s32.totalorder %s310, %s311
      %p322 = scmp.eq.s32.totalorder %s31, 0
      %p323 = por %p321, %p322
      %p324 = scmp.ne.s32.totalorder %s310, %s311
      %p325 = scmp.eq.s32.totalorder %s32, 1
      %p326 = por %p324, %p325
      %p328 = scmp.ne.s32.totalorder %s311, %s327
      %p329 = scmp.eq.s32.totalorder %s32, 0
      %p330 = por %p328, %p329
      %s331 = ssub.s32 %s26, %s33
      %p332 = scmp.eq.s32.totalorder %s331, 0
      %s334 = sadd.s32 %s333, 1
      %s335 = scalar_select %p332, %s333, %s334
      %p338 = pneg %p332
      %p339 = scmp.eq.s32.totalorder %s26, 1
      %p340 = por %p338, %p339
      %p341 = scmp.ne.s32.totalorder %s333, %s336
      %p342 = scmp.eq.s32.totalorder %s26, 0
      %p343 = por %p341, %p342
      %p344 = scmp.ne.s32.totalorder %s333, %s336
      %p345 = scmp.eq.s32.totalorder %s31, 1
      %p346 = por %p344, %p345
      %p347 = scmp.ne.s32.totalorder %s336, %s337
      %p348 = scmp.eq.s32.totalorder %s31, 0
      %p349 = por %p347, %p348
      %p350 = scmp.ne.s32.totalorder %s336, %s337
      %p351 = scmp.eq.s32.totalorder %s32, 1
      %p352 = por %p350, %p351
      %p354 = scmp.ne.s32.totalorder %s337, %s353
      %p355 = scmp.eq.s32.totalorder %s32, 0
      %p356 = por %p354, %p355
      %s358 = sadd.s32 %s357, 1
      %p361 = scmp.eq.s32.totalorder %s26, 1
      %p362 = scmp.ne.s32.totalorder %s357, %s359
      %p363 = scmp.eq.s32.totalorder %s26, 0
      %p364 = por %p362, %p363
      %p365 = scmp.ne.s32.totalorder %s357, %s359
      %p366 = scmp.eq.s32.totalorder %s31, 1
      %p367 = por %p365, %p366
      %p368 = scmp.ne.s32.totalorder %s359, %s360
      %p369 = scmp.eq.s32.totalorder %s31, 0
      %p370 = por %p368, %p369
      %p371 = scmp.ne.s32.totalorder %s359, %s360
      %p372 = scmp.eq.s32.totalorder %s32, 1
      %p373 = por %p371, %p372
      %p375 = scmp.ne.s32.totalorder %s360, %s374
      %p376 = scmp.eq.s32.totalorder %s32, 0
      %p377 = por %p375, %p376
      %s379 = sadd.s32 %s378, 1
      %p382 = scmp.eq.s32.totalorder %s26, 1
      %p383 = scmp.ne.s32.totalorder %s378, %s380
      %p384 = scmp.eq.s32.totalorder %s26, 0
      %p385 = por %p383, %p384
      %p386 = scmp.ne.s32.totalorder %s378, %s380
      %p387 = scmp.eq.s32.totalorder %s31, 1
      %p388 = por %p386, %p387
      %p389 = scmp.ne.s32.totalorder %s380, %s381
      %p390 = scmp.eq.s32.totalorder %s31, 0
      %p391 = por %p389, %p390
      %p392 = scmp.ne.s32.totalorder %s380, %s381
      %p393 = scmp.eq.s32.totalorder %s32, 1
      %p394 = por %p392, %p393
      %p396 = scmp.ne.s32.totalorder %s381, %s395
      %p397 = scmp.eq.s32.totalorder %s32, 0
      %p398 = por %p396, %p397
      %s400 = sadd.s32 %s399, 1
      %p403 = scmp.eq.s32.totalorder %s26, 1
      %p404 = scmp.ne.s32.totalorder %s399, %s401
      %p405 = scmp.eq.s32.totalorder %s26, 0
      %p406 = por %p404, %p405
      %p407 = scmp.ne.s32.totalorder %s399, %s401
      %p408 = scmp.eq.s32.totalorder %s31, 1
      %p409 = por %p407, %p408
      %p410 = scmp.ne.s32.totalorder %s401, %s402
      %p411 = scmp.eq.s32.totalorder %s31, 0
      %p412 = por %p410, %p411
      %p413 = scmp.ne.s32.totalorder %s401, %s402
      %p414 = scmp.eq.s32.totalorder %s32, 1
      %p415 = por %p413, %p414
      %p417 = scmp.ne.s32.totalorder %s402, %s416
      %p418 = scmp.eq.s32.totalorder %s32, 0
      %p419 = por %p417, %p418
      %p420 = scmp.le.s32.totalorder 1, %s26
      %p421 = scmp.lt.s32.totalorder %s26, 3
      %p422 = pnand %p420, %p421
      %p423 = pneg %p422
      // Predicated region
      $region9: #{transformer_actor_forward.1} parent=5 // pred_check
        _
      $region10: #{transformer_actor_forward.1} parent=5 // pred_check_branch
        %425 = sbr.rel (%p422) target = $region12
      $region11: #{transformer_actor_forward.1} parent=5 // pred_region
        %s426 = ssub.s32 %s26, 1
        // Predicated region
        $region13: #{transformer_actor_forward.1} parent=11 // pred_check
          %p427 = pneg %p47
        $region14: #{transformer_actor_forward.1} parent=11 // pred_check_branch
          %429 = sbr.rel (%p427) target = $region16
        $region15: #{transformer_actor_forward.1} parent=11 // pred_region
          %s431 = ssub.s32 128, 128
          %432 = vsyncadd [#allocation4], %s431
          %s434 = sshll.u32 [#allocation3], 4
          %s435 = int_to_ptr.vmem [resolvable:$true] %s434
          %437 = dma.hbm_to_vmem [thread:$0]  %s0, 128, %s435, [#allocation4]
        $region16: #{transformer_actor_forward.1} parent=11 // pred_fallthru
          _
        // Predicated region
        $region17: #{transformer_actor_forward.1} parent=11 // pred_check
          %p438 = pneg %p68
        $region18: #{transformer_actor_forward.1} parent=11 // pred_check_branch
          %440 = sbr.rel (%p438) target = $region20
        $region19: #{transformer_actor_forward.1} parent=11 // pred_region
          _
        $region20: #{transformer_actor_forward.1} parent=11 // pred_fallthru
          _
        // Predicated region
        $region21: #{transformer_actor_forward.1} parent=11 // pred_check
          %p441 = pneg %p89
        $region22: #{transformer_actor_forward.1} parent=11 // pred_check_branch
          %443 = sbr.rel (%p441) target = $region24
        $region23: #{transformer_actor_forward.1} parent=11 // pred_region
          _
        $region24: #{transformer_actor_forward.1} parent=11 // pred_fallthru
          _
        // Predicated region
        $region25: #{transformer_actor_forward.1} parent=11 // pred_check
          %p444 = pneg %p370
        $region26: #{transformer_actor_forward.1} parent=11 // pred_check_branch
          %446 = sbr.rel (%p444) target = $region28
        $region27: #{transformer_actor_forward.1} parent=11 // pred_region
          %s448 = ssub.s32 1024, 1024
          %449 = vsyncadd [#allocation6], %s448
          %s450 = sshll.u32 [#allocation7], 4
          %s451 = int_to_ptr.vmem [resolvable:$true] %s450
          %456 = dma.hbm_to_vmem [thread:$0]  %s13, 1024, %s451, [#allocation6], 128, 128, 8
        $region28: #{transformer_actor_forward.1} parent=11 // pred_fallthru
          _
        // Predicated region
        $region29: #{transformer_actor_forward.1} parent=11 // pred_check
          %p457 = pneg %p391
        $region30: #{transformer_actor_forward.1} parent=11 // pred_check_branch
          %459 = sbr.rel (%p457) target = $region32
        $region31: #{transformer_actor_forward.1} parent=11 // pred_region
          %s461 = ssub.s32 16, 16
          %462 = vsyncadd [#allocation9], %s461
          %s464 = sshll.u32 [#allocation8], 4
          %s465 = int_to_ptr.vmem [resolvable:$true] %s464
          %467 = dma.hbm_to_vmem [thread:$0]  %s14, 16, %s465, [#allocation9]
        $region32: #{transformer_actor_forward.1} parent=11 // pred_fallthru
          _
      $region12: #{transformer_actor_forward.1} parent=5 // pred_fallthru
        _
      %p468 = scmp.lt.s32.totalorder %s26, 2
      // Predicated region
      $region33: #{transformer_actor_forward.1} parent=5 // pred_check
        %p469 = pneg %p468
      $region34: #{transformer_actor_forward.1} parent=5 // pred_check_branch
        %471 = sbr.rel (%p469) target = $region36
      $region35: #{transformer_actor_forward.1} parent=5 // pred_region
        // Predicated region
        $region37: #{transformer_actor_forward.1} parent=35 // pred_check
          %p472 = pneg %p109
        $region38: #{transformer_actor_forward.1} parent=35 // pred_check_branch
          %474 = sbr.rel (%p472) target = $region40
        $region39: #{transformer_actor_forward.1} parent=35 // pred_region
          %s475 = sand.u32 %s26, 1
          %s476 = scalar_lea.sflag [#allocation6], %s475
          %s477 = sand.u32 %s99, 1
          %s478 = smul.addr %s477, 32
          %s479 = scalar_lea.vmem [#allocation5], %s478
          %s481 = ssub.s32 512, 512
          %482 = vsyncadd %s476, %s481
          %s483 = smul.addr %s26, 8
          %s484 = smul.addr %s483, 64
          %s485 = scalar_lea.hbm %s3, %s484
          %s486 = sshll.u32 %s479, 4
          %s487 = int_to_ptr.vmem [resolvable:$true] %s486
          %492 = dma.hbm_to_vmem [thread:$0]  %s485, 512, %s487, %s476, 64, 64, 4
        $region40: #{transformer_actor_forward.1} parent=35 // pred_fallthru
          _
        // Predicated region
        $region41: #{transformer_actor_forward.1} parent=35 // pred_check
          %p493 = pneg %p135
        $region42: #{transformer_actor_forward.1} parent=35 // pred_check_branch
          %495 = sbr.rel (%p493) target = $region44
        $region43: #{transformer_actor_forward.1} parent=35 // pred_region
          %p496 = scmp.lt.s32.totalorder %s26, 1
          %s497 = scalar_select %p496, %s26, 1
          %s498 = scalar_lea.vmem %s4, %s497
        $region44: #{transformer_actor_forward.1} parent=35 // pred_fallthru
          _
        // Predicated region
        $region45: #{transformer_actor_forward.1} parent=35 // pred_check
          %p499 = pneg %p161
        $region46: #{transformer_actor_forward.1} parent=35 // pred_check_branch
          %501 = sbr.rel (%p499) target = $region48
        $region47: #{transformer_actor_forward.1} parent=35 // pred_region
          %p502 = scmp.lt.s32.totalorder %s26, 1
          %s503 = scalar_select %p502, %s26, 1
          %s504 = scalar_lea.vmem %s5, %s503
        $region48: #{transformer_actor_forward.1} parent=35 // pred_fallthru
          _
        // Predicated region
        $region49: #{transformer_actor_forward.1} parent=35 // pred_check
          %p505 = pneg %p187
        $region50: #{transformer_actor_forward.1} parent=35 // pred_check_branch
          %507 = sbr.rel (%p505) target = $region52
        $region51: #{transformer_actor_forward.1} parent=35 // pred_region
          %p508 = scmp.lt.s32.totalorder %s26, 1
          %s509 = scalar_select %p508, %s26, 1
          %s510 = scalar_lea.vmem %s6, %s509
        $region52: #{transformer_actor_forward.1} parent=35 // pred_fallthru
          _
        // Predicated region
        $region53: #{transformer_actor_forward.1} parent=35 // pred_check
          %p511 = pneg %p213
        $region54: #{transformer_actor_forward.1} parent=35 // pred_check_branch
          %513 = sbr.rel (%p511) target = $region56
        $region55: #{transformer_actor_forward.1} parent=35 // pred_region
          %p514 = scmp.lt.s32.totalorder %s26, 1
          %s515 = scalar_select %p514, %s26, 1
          %s516 = smul.addr %s515, 128
          %s517 = smul.addr %s516, 4
          %s518 = scalar_lea.vmem %s7, %s517
        $region56: #{transformer_actor_forward.1} parent=35 // pred_fallthru
          _
        // Predicated region
        $region57: #{transformer_actor_forward.1} parent=35 // pred_check
          %p519 = pneg %p239
        $region58: #{transformer_actor_forward.1} parent=35 // pred_check_branch
          %521 = sbr.rel (%p519) target = $region60
        $region59: #{transformer_actor_forward.1} parent=35 // pred_region
          %p522 = scmp.lt.s32.totalorder %s26, 1
          %s523 = scalar_select %p522, %s26, 1
          %s524 = smul.addr %s523, 16
          %s525 = scalar_lea.vmem %s8, %s524
        $region60: #{transformer_actor_forward.1} parent=35 // pred_fallthru
          _
        // Predicated region
        $region61: #{transformer_actor_forward.1} parent=35 // pred_check
          %p526 = pneg %p265
        $region62: #{transformer_actor_forward.1} parent=35 // pred_check_branch
          %528 = sbr.rel (%p526) target = $region64
        $region63: #{transformer_actor_forward.1} parent=35 // pred_region
          %p529 = scmp.lt.s32.totalorder %s26, 1
          %s530 = scalar_select %p529, %s26, 1
          %s531 = smul.addr %s530, 256
          %s532 = smul.addr %s531, 4
          %s533 = scalar_lea.vmem %s9, %s532
        $region64: #{transformer_actor_forward.1} parent=35 // pred_fallthru
          _
        // Predicated region
        $region65: #{transformer_actor_forward.1} parent=35 // pred_check
          %p534 = pneg %p291
        $region66: #{transformer_actor_forward.1} parent=35 // pred_check_branch
          %536 = sbr.rel (%p534) target = $region68
        $region67: #{transformer_actor_forward.1} parent=35 // pred_region
          %p537 = scmp.lt.s32.totalorder %s26, 1
          %s538 = scalar_select %p537, %s26, 1
          %s539 = scalar_lea.vmem %s10, %s538
        $region68: #{transformer_actor_forward.1} parent=35 // pred_fallthru
          _
        // Predicated region
        $region69: #{transformer_actor_forward.1} parent=35 // pred_check
          %p540 = pneg %p317
        $region70: #{transformer_actor_forward.1} parent=35 // pred_check_branch
          %542 = sbr.rel (%p540) target = $region72
        $region71: #{transformer_actor_forward.1} parent=35 // pred_region
          %p543 = scmp.lt.s32.totalorder %s26, 1
          %s544 = scalar_select %p543, %s26, 1
          %s545 = scalar_lea.vmem %s11, %s544
        $region72: #{transformer_actor_forward.1} parent=35 // pred_fallthru
          _
        // Predicated region
        $region73: #{transformer_actor_forward.1} parent=35 // pred_check
          %p546 = pneg %p343
        $region74: #{transformer_actor_forward.1} parent=35 // pred_check_branch
          %548 = sbr.rel (%p546) target = $region76
        $region75: #{transformer_actor_forward.1} parent=35 // pred_region
          %p549 = scmp.lt.s32.totalorder %s26, 1
          %s550 = scalar_select %p549, %s26, 1
          %s551 = scalar_lea.vmem %s12, %s550
        $region76: #{transformer_actor_forward.1} parent=35 // pred_fallthru
          _
      $region36: #{transformer_actor_forward.1} parent=5 // pred_fallthru
        _
      %p552 = scmp.le.s32.totalorder 1, %s26
      %p553 = scmp.lt.s32.totalorder %s26, 3
      %p554 = pnand %p552, %p553
      %p555 = pneg %p554
      // Predicated region
      $region77: #{transformer_actor_forward.1} parent=5 // pred_check
        _
      $region78: #{transformer_actor_forward.1} parent=5 // pred_check_branch
        %557 = sbr.rel (%p554) target = $region80
      $region79: #{transformer_actor_forward.1} parent=5 // pred_region
        %s558 = ssub.s32 %s26, 1
        // Predicated region
        $region81: #{transformer_actor_forward.1} parent=79 // pred_check
          %p559 = pneg %p47
        $region82: #{transformer_actor_forward.1} parent=79 // pred_check_branch
          %561 = sbr.rel (%p559) target = $region84
        $region83: #{transformer_actor_forward.1} parent=79 // pred_region
          %562 = dma.done [#allocation4], 128
        $region84: #{transformer_actor_forward.1} parent=79 // pred_fallthru
          _
        %s563 = sand.u32 %s31, 1
        %s564 = scalar_lea.sflag [#allocation6], %s563
        %s565 = sand.u32 %s102, 1
        %s566 = smul.addr %s565, 32
        %s567 = scalar_lea.vmem [#allocation5], %s566
        // Predicated region
        $region85: #{transformer_actor_forward.1} parent=79 // pred_check
          %p568 = pneg %p115
        $region86: #{transformer_actor_forward.1} parent=79 // pred_check_branch
          %570 = sbr.rel (%p568) target = $region88
        $region87: #{transformer_actor_forward.1} parent=79 // pred_region
          %571 = dma.done %s564, 512
        $region88: #{transformer_actor_forward.1} parent=79 // pred_fallthru
          _
        // Predicated region
        $region89: #{transformer_actor_forward.1} parent=79 // pred_check
          %p572 = pneg %p370
        $region90: #{transformer_actor_forward.1} parent=79 // pred_check_branch
          %574 = sbr.rel (%p572) target = $region92
        $region91: #{transformer_actor_forward.1} parent=79 // pred_region
          %575 = dma.done [#allocation6], 1024
        $region92: #{transformer_actor_forward.1} parent=79 // pred_fallthru
          _
        // Predicated region
        $region93: #{transformer_actor_forward.1} parent=79 // pred_check
          %p576 = pneg %p391
        $region94: #{transformer_actor_forward.1} parent=79 // pred_check_branch
          %578 = sbr.rel (%p576) target = $region96
        $region95: #{transformer_actor_forward.1} parent=79 // pred_region
          %579 = dma.done [#allocation9], 16
        $region96: #{transformer_actor_forward.1} parent=79 // pred_fallthru
          _
        %p580 = pneg %p47
        %p581 = pneg %p44
        %p582 = pneg %p68
        %p583 = pneg %p65
        %p584 = pneg %p89
        %p585 = pneg %p86
        %s586 = sand.u32 %s31, 1
        %s587 = scalar_lea.sflag [#allocation6], %s586
        %s588 = sand.u32 %s102, 1
        %s589 = smul.addr %s588, 32
        %s590 = scalar_lea.vmem [#allocation5], %s589
        %p591 = pneg %p115
        %p592 = pneg %p112
        %p593 = scmp.lt.s32.totalorder %s31, 1
        %s594 = scalar_select %p593, %s31, 1
        %s595 = scalar_lea.vmem %s4, %s594
        %p596 = pneg %p141
        %p597 = pneg %p138
        %p598 = scmp.lt.s32.totalorder %s31, 1
        %s599 = scalar_select %p598, %s31, 1
        %s600 = scalar_lea.vmem %s5, %s599
        %p601 = pneg %p167
        %p602 = pneg %p164
        %p603 = scmp.lt.s32.totalorder %s31, 1
        %s604 = scalar_select %p603, %s31, 1
        %s605 = scalar_lea.vmem %s6, %s604
        %p606 = pneg %p193
        %p607 = pneg %p190
        %p608 = scmp.lt.s32.totalorder %s31, 1
        %s609 = scalar_select %p608, %s31, 1
        %s610 = smul.addr %s609, 128
        %s611 = smul.addr %s610, 4
        %s612 = scalar_lea.vmem %s7, %s611
        %p613 = pneg %p219
        %p614 = pneg %p216
        %p615 = scmp.lt.s32.totalorder %s31, 1
        %s616 = scalar_select %p615, %s31, 1
        %s617 = smul.addr %s616, 16
        %s618 = scalar_lea.vmem %s8, %s617
        %p619 = pneg %p245
        %p620 = pneg %p242
        %p621 = scmp.lt.s32.totalorder %s31, 1
        %s622 = scalar_select %p621, %s31, 1
        %s623 = smul.addr %s622, 256
        %s624 = smul.addr %s623, 4
        %s625 = scalar_lea.vmem %s9, %s624
        %p626 = pneg %p271
        %p627 = pneg %p268
        %p628 = scmp.lt.s32.totalorder %s31, 1
        %s629 = scalar_select %p628, %s31, 1
        %s630 = scalar_lea.vmem %s10, %s629
        %p631 = pneg %p297
        %p632 = pneg %p294
        %p633 = scmp.lt.s32.totalorder %s31, 1
        %s634 = scalar_select %p633, %s31, 1
        %s635 = scalar_lea.vmem %s11, %s634
        %p636 = pneg %p323
        %p637 = pneg %p320
        %p638 = scmp.lt.s32.totalorder %s31, 1
        %s639 = scalar_select %p638, %s31, 1
        %s640 = scalar_lea.vmem %s12, %s639
        %p641 = pneg %p349
        %p642 = pneg %p346
        %p643 = pneg %p370
        %p644 = pneg %p367
        %p645 = pneg %p391
        %p646 = pneg %p388
        %p647 = pneg %p412
        %p648 = pneg %p409
        %p649 = scmp.lt.s32.totalorder %s31, 1
        %s650 = scalar_select %p649, %s31, 1
        %s651 = scalar_lea.vmem %s4, %s650
        %p652 = scmp.lt.s32.totalorder %s31, 1
        %s653 = scalar_select %p652, %s31, 1
        %s654 = scalar_lea.vmem %s5, %s653
        %p655 = scmp.lt.s32.totalorder %s31, 1
        %s656 = scalar_select %p655, %s31, 1
        %s657 = scalar_lea.vmem %s6, %s656
        %p658 = scmp.lt.s32.totalorder %s31, 1
        %s659 = scalar_select %p658, %s31, 1
        %s660 = smul.addr %s659, 128
        %s661 = smul.addr %s660, 4
        %s662 = scalar_lea.vmem %s7, %s661
        %p663 = scmp.lt.s32.totalorder %s31, 1
        %s664 = scalar_select %p663, %s31, 1
        %s665 = smul.addr %s664, 16
        %s666 = scalar_lea.vmem %s8, %s665
        %p667 = scmp.lt.s32.totalorder %s31, 1
        %s668 = scalar_select %p667, %s31, 1
        %s669 = smul.addr %s668, 256
        %s670 = smul.addr %s669, 4
        %s671 = scalar_lea.vmem %s9, %s670
        %p672 = scmp.lt.s32.totalorder %s31, 1
        %s673 = scalar_select %p672, %s31, 1
        %s674 = scalar_lea.vmem %s10, %s673
        %p675 = scmp.lt.s32.totalorder %s31, 1
        %s676 = scalar_select %p675, %s31, 1
        %s677 = scalar_lea.vmem %s11, %s676
        %p678 = scmp.lt.s32.totalorder %s31, 1
        %s679 = scalar_select %p678, %s31, 1
        %s680 = scalar_lea.vmem %s12, %s679
        %p682 = scmp.eq.s32.totalorder %s31, 0
        // Predicated region
        $region97: #{transformer_actor_forward.1} parent=79 // pred_check
          %p683 = pneg %p682
        $region98: #{transformer_actor_forward.1} parent=79 // pred_check_branch
          %685 = sbr.rel (%p683) target = $region100
        $region99: #{transformer_actor_forward.1} parent=79 // pred_region
          %v686 = vld [vmem:[#allocation3] sm:$0xff]
          %v687 = vld [vmem:[%s1] sm:$0xff]
          %v688 = vld [vmem:[%s1 + $0x8] sm:$0xff]
          %v689 = vld [vmem:[%s2] sm:$0x1]
          %v691 = vlaneseq
          %v692 = vshrl.u32 %v691, 7
          %v693 = vsub.s32 0, %v692
          %v694 = vrot.slane %v689, %v693
          %vm696 = vcmask 130048
          %v698 = vsel %vm696, %v686, 0
          %700 = vmatprep.subr.mxu0 0.0
          %701 = vmatpush1.msra.mxu0 %v687
          %702 = vmatprep.subr.mxu0 0.0
          %703 = vmatpush1.msra.mxu0 %v688
          %704 = vmatprep.subr.mxu0 0.0
          %705 = vmatpush1.msra.mxu0 0.0
          %706 = vmatprep.subr.mxu0 0.0
          %707 = vmatpush1.msra.mxu0 0.0
          %708 = vmatprep.subr.mxu0 0.0
          %709 = vmatpush1.msra.mxu0 0.0
          %710 = vmatprep.subr.mxu0 0.0
          %711 = vmatpush1.msra.mxu0 0.0
          %712 = vmatprep.subr.mxu0 0.0
          %713 = vmatpush1.msra.mxu0 0.0
          %714 = vmatprep.subr.mxu0 0.0
          %715 = vmatpush1.msra.mxu0 0.0
          %716 = vmatprep.subr.mxu0 0.0
          %717 = vmatpush1.msra.mxu0 0.0
          %718 = vmatprep.subr.mxu0 0.0
          %719 = vmatpush1.msra.mxu0 0.0
          %720 = vmatprep.subr.mxu0 0.0
          %721 = vmatpush1.msra.mxu0 0.0
          %722 = vmatprep.subr.mxu0 0.0
          %723 = vmatpush1.msra.mxu0 0.0
          %724 = vmatprep.subr.mxu0 0.0
          %725 = vmatpush1.msra.mxu0 0.0
          %726 = vmatprep.subr.mxu0 0.0
          %727 = vmatpush1.msra.mxu0 0.0
          %728 = vmatprep.subr.mxu0 0.0
          %729 = vmatpush1.msra.mxu0 0.0
          %730 = vmatprep.subr.mxu0 0.0
          %731 = vmatpush1.msra.mxu0 0.0
          %732 = vmatprep.subr.mxu0 0.0
          %733 = vmatpush1.msra.mxu0 0.0
          %734 = vmatprep.subr.mxu0 0.0
          %735 = vmatpush1.msra.mxu0 0.0
          %736 = vmatprep.subr.mxu0 0.0
          %737 = vmatpush1.msra.mxu0 0.0
          %738 = vmatprep.subr.mxu0 0.0
          %739 = vmatpush1.msra.mxu0 0.0
          %740 = vmatprep.subr.mxu0 0.0
          %741 = vmatpush1.msra.mxu0 0.0
          %742 = vmatprep.subr.mxu0 0.0
          %743 = vmatpush1.msra.mxu0 0.0
          %744 = vmatprep.subr.mxu0 0.0
          %745 = vmatpush1.msra.mxu0 0.0
          %746 = vmatprep.subr.mxu0 0.0
          %747 = vmatpush1.msra.mxu0 0.0
          %748 = vmatprep.subr.mxu0 0.0
          %749 = vmatpush1.msra.mxu0 0.0
          %750 = vmatprep.subr.mxu0 0.0
          %751 = vmatpush1.msra.mxu0 0.0
          %752 = vmatprep.subr.mxu0 0.0
          %753 = vmatpush1.msra.mxu0 0.0
          %754 = vmatprep.subr.mxu0 0.0
          %755 = vmatpush1.msra.mxu0 0.0
          %756 = vmatprep.subr.mxu0 0.0
          %757 = vmatpush1.msra.mxu0 0.0
          %758 = vmatprep.subr.mxu0 0.0
          %759 = vmatpush1.msra.mxu0 0.0
          %760 = vmatprep.subr.mxu0 0.0
          %761 = vmatpush1.msra.mxu0 0.0
          %762 = vmatprep.subr.mxu0 0.0
          %763 = vmatpush1.msra.mxu0 0.0
          %764 = vmatprep.mubr.f32.mxu0 0.0
          %765 = vmatmul.mubr.f32.gmra.mrb[0].mxu0 %v698
          %v766 = vpop.f32.mrb[0].mxu0
          %v767 = vadd.f32 %v694, %v766
          %v768 = vpop.f32.mrb[0].mxu0
          %769 = vdwg.mxu0
          %vm770 = vcmask 523264
          %771 = vst.msk [vmem:[#allocation2] sm:$0xff] %vm770, %v767
        $region100: #{transformer_actor_forward.1} parent=79 // pred_fallthru
          _
        %v772 = vld [vmem:[#allocation2] sm:$0xff]
        %v773 = vpack.c.bf16 %v772, %v772
        %v774 = vld [vmem:[%s567] sm:$0xf]
        %v775 = vld [vmem:[%s567 + $0x4] sm:$0xf]
        %v776 = vld [vmem:[%s567 + $0x8] sm:$0xf]
        %v777 = vld [vmem:[%s567 + $0xc] sm:$0xf]
        %v778 = vld [vmem:[%s567 + $0x10] sm:$0xf]
        %v779 = vld [vmem:[%s567 + $0x14] sm:$0xf]
        %v780 = vld [vmem:[%s567 + $0x18] sm:$0xf]
        %v781 = vld [vmem:[%s567 + $0x1c] sm:$0xf]
        %v782 = vld [vmem:[%s651] sm:$0x1]
        %v784 = vlaneseq
        %v785 = vshrl.u32 %v784, 7
        %v786 = vsub.s32 0, %v785
        %v787 = vrot.slane %v782, %v786
        %v797 = vunpack.c.l.b16 %v774
        %v798 = vunpack.c.l.b16 %v775
        %v799 = vunpack.c.l.b16 %v776
        %v800 = vunpack.c.l.b16 %v777
        %v801 = vunpack.c.l.b16 %v778
        %v802 = vunpack.c.l.b16 %v779
        %v803 = vunpack.c.l.b16 %v780
        %v804 = vunpack.c.l.b16 %v781
        %v805 = vpack.c.b16 %v798, %v797
        %v806 = vpack.c.b16 %v800, %v799
        %v807 = vpack.c.b16 %v802, %v801
        %v808 = vpack.c.b16 %v804, %v803
        %vm813 = vcmask 523264
        %v815 = vsel %vm813, %v773, 0
        %817 = vmatprep.subr.bf16.mxu0 0
        %818 = vmatpush1.bf16.msra.mxu0 %v805
        %819 = vmatprep.subr.bf16.mxu0 0
        %820 = vmatpush1.bf16.msra.mxu0 %v806
        %821 = vmatprep.subr.bf16.mxu0 0
        %822 = vmatpush1.bf16.msra.mxu0 %v807
        %823 = vmatprep.subr.bf16.mxu0 0
        %824 = vmatpush1.bf16.msra.mxu0 %v808
        %825 = vmatprep.subr.bf16.mxu0 0
        %826 = vmatpush1.bf16.msra.mxu0 0
        %827 = vmatprep.subr.bf16.mxu0 0
        %828 = vmatpush1.bf16.msra.mxu0 0
        %829 = vmatprep.subr.bf16.mxu0 0
        %830 = vmatpush1.bf16.msra.mxu0 0
        %831 = vmatprep.subr.bf16.mxu0 0
        %832 = vmatpush1.bf16.msra.mxu0 0
        %833 = vmatprep.subr.bf16.mxu0 0
        %834 = vmatpush1.bf16.msra.mxu0 0
        %835 = vmatprep.subr.bf16.mxu0 0
        %836 = vmatpush1.bf16.msra.mxu0 0
        %837 = vmatprep.subr.bf16.mxu0 0
        %838 = vmatpush1.bf16.msra.mxu0 0
        %839 = vmatprep.subr.bf16.mxu0 0
        %840 = vmatpush1.bf16.msra.mxu0 0
        %841 = vmatprep.subr.bf16.mxu0 0
        %842 = vmatpush1.bf16.msra.mxu0 0
        %843 = vmatprep.subr.bf16.mxu0 0
        %844 = vmatpush1.bf16.msra.mxu0 0
        %845 = vmatprep.subr.bf16.mxu0 0
        %846 = vmatpush1.bf16.msra.mxu0 0
        %847 = vmatprep.subr.bf16.mxu0 0
        %848 = vmatpush1.bf16.msra.mxu0 0
        %849 = vmatprep.mubr.bf16.mxu0 0
        %850 = vmatmul.mubr.bf16.gmra.mrb[0].mxu0 %v815
        %v851 = vpop.f32.mrb[0].mxu0
        %v852 = vadd.f32 %v787, %v851
        %v853 = vpop.f32.mrb[0].mxu0
        %v854 = vpop.f32.mrb[0].mxu0
        %v855 = vpop.f32.mrb[0].mxu0
        %856 = vdwg.mxu0
        %v857 = vadd.f32 %v772, %v852
        %v858 = vld [vmem:[%s654] sm:$0x1]
        %v859 = vld [vmem:[%s657] sm:$0x1]
        %v860 = vsel %vm813, %v857, 0.0
        %861 = vadd.xlane.f32.xlu0 %v860
        %v862 = vpop.xlane.xlu0 %861
        %v863 = vrcp.pop 64.0
        %v864 = vmul.f32 %v862, %v863
        %v865 = vsub.f32 %v857, %v864
        %v866 = vmul.f32 %v865, %v865
        %v867 = vsel %vm813, %v866, 0.0
        %868 = vadd.xlane.f32.xlu0 %v867
        %v869 = vpop.xlane.xlu0 %868
        %v870 = vmul.f32 %v869, %v863
        %v871 = vadd.f32 %v870, 1e-05
        %v872 = vrsqrt.pop %v871
        %v873 = vmul.f32 %v865, %v872
        %v875 = vlaneseq
        %v876 = vshrl.u32 %v875, 7
        %v877 = vsub.s32 0, %v876
        %v878 = vrot.slane %v858, %v877
        %v880 = vmul.f32 %v873, %v878
        %v882 = vlaneseq
        %v883 = vshrl.u32 %v882, 7
        %v884 = vsub.s32 0, %v883
        %v885 = vrot.slane %v859, %v884
        %v887 = vadd.f32 %v880, %v885
        %v888 = vpack.c.bf16 %v887, %v887
        %v889 = vld [vmem:[%s662] sm:$0xff]
        %v890 = vld [vmem:[%s662 + $0x8] sm:$0xff]
        %v891 = vld [vmem:[%s662 + $0x10] sm:$0xff]
        %v892 = vld [vmem:[%s662 + $0x18] sm:$0xff]
        %v893 = vld [vmem:[%s662 + $0x20] sm:$0xff]
        %v894 = vld [vmem:[%s662 + $0x28] sm:$0xff]
        %v895 = vld [vmem:[%s662 + $0x30] sm:$0xff]
        %v896 = vld [vmem:[%s662 + $0x38] sm:$0xff]
        %v897 = vld [vmem:[%s662 + $0x40] sm:$0xff]
        %v898 = vld [vmem:[%s662 + $0x48] sm:$0xff]
        %v899 = vld [vmem:[%s662 + $0x50] sm:$0xff]
        %v900 = vld [vmem:[%s662 + $0x58] sm:$0xff]
        %v901 = vld [vmem:[%s662 + $0x60] sm:$0xff]
        %v902 = vld [vmem:[%s662 + $0x68] sm:$0xff]
        %v903 = vld [vmem:[%s662 + $0x70] sm:$0xff]
        %v904 = vld [vmem:[%s662 + $0x78] sm:$0xff]
        %v905 = vld [vmem:[%s662 + $0x80] sm:$0xff]
        %v906 = vld [vmem:[%s662 + $0x88] sm:$0xff]
        %v907 = vld [vmem:[%s662 + $0x90] sm:$0xff]
        %v908 = vld [vmem:[%s662 + $0x98] sm:$0xff]
        %v909 = vld [vmem:[%s662 + $0xa0] sm:$0xff]
        %v910 = vld [vmem:[%s662 + $0xa8] sm:$0xff]
        %v911 = vld [vmem:[%s662 + $0xb0] sm:$0xff]
        %v912 = vld [vmem:[%s662 + $0xb8] sm:$0xff]
        %v913 = vld [vmem:[%s662 + $0xc0] sm:$0xff]
        %v914 = vld [vmem:[%s662 + $0xc8] sm:$0xff]
        %v915 = vld [vmem:[%s662 + $0xd0] sm:$0xff]
        %v916 = vld [vmem:[%s662 + $0xd8] sm:$0xff]
        %v917 = vld [vmem:[%s662 + $0xe0] sm:$0xff]
        %v918 = vld [vmem:[%s662 + $0xe8] sm:$0xff]
        %v919 = vld [vmem:[%s662 + $0xf0] sm:$0xff]
        %v920 = vld [vmem:[%s662 + $0xf8] sm:$0xff]
        %v921 = vld [vmem:[%s662 + $0x100] sm:$0xff]
        %v922 = vld [vmem:[%s662 + $0x108] sm:$0xff]
        %v923 = vld [vmem:[%s662 + $0x110] sm:$0xff]
        %v924 = vld [vmem:[%s662 + $0x118] sm:$0xff]
        %v925 = vld [vmem:[%s662 + $0x120] sm:$0xff]
        %v926 = vld [vmem:[%s662 + $0x128] sm:$0xff]
        %v927 = vld [vmem:[%s662 + $0x130] sm:$0xff]
        %v928 = vld [vmem:[%s662 + $0x138] sm:$0xff]
        %v929 = vld [vmem:[%s662 + $0x140] sm:$0xff]
        %v930 = vld [vmem:[%s662 + $0x148] sm:$0xff]
        %v931 = vld [vmem:[%s662 + $0x150] sm:$0xff]
        %v932 = vld [vmem:[%s662 + $0x158] sm:$0xff]
        %v933 = vld [vmem:[%s662 + $0x160] sm:$0xff]
        %v934 = vld [vmem:[%s662 + $0x168] sm:$0xff]
        %v935 = vld [vmem:[%s662 + $0x170] sm:$0xff]
        %v936 = vld [vmem:[%s662 + $0x178] sm:$0xff]
        %v937 = vld [vmem:[%s662 + $0x180] sm:$0xff]
        %v938 = vld [vmem:[%s662 + $0x188] sm:$0xff]
        %v939 = vld [vmem:[%s662 + $0x190] sm:$0xff]
        %v940 = vld [vmem:[%s662 + $0x198] sm:$0xff]
        %v941 = vld [vmem:[%s662 + $0x1a0] sm:$0xff]
        %v942 = vld [vmem:[%s662 + $0x1a8] sm:$0xff]
        %v943 = vld [vmem:[%s662 + $0x1b0] sm:$0xff]
        %v944 = vld [vmem:[%s662 + $0x1b8] sm:$0xff]
        %v945 = vld [vmem:[%s662 + $0x1c0] sm:$0xff]
        %v946 = vld [vmem:[%s662 + $0x1c8] sm:$0xff]
        %v947 = vld [vmem:[%s662 + $0x1d0] sm:$0xff]
        %v948 = vld [vmem:[%s662 + $0x1d8] sm:$0xff]
        %v949 = vld [vmem:[%s662 + $0x1e0] sm:$0xff]
        %v950 = vld [vmem:[%s662 + $0x1e8] sm:$0xff]
        %v951 = vld [vmem:[%s662 + $0x1f0] sm:$0xff]
        %v952 = vld [vmem:[%s662 + $0x1f8] sm:$0xff]
        %v953 = vld [vmem:[%s666] sm:$0xff]
        %v954 = vld [vmem:[%s666 + $0x8] sm:$0xff]
        %v957 = vlaneseq
        %v958 = vshrl.u32 %v957, 7
        %v959 = vsub.s32 0, %v958
        %v960 = vrot.slane %v953, %v959
        %v961 = vlaneseq
        %v962 = vshrl.u32 %v961, 7
        %v963 = vsub.s32 1, %v962
        %v964 = vrot.slane %v953, %v963
        %v965 = vlaneseq
        %v966 = vshrl.u32 %v965, 7
        %v967 = vsub.s32 2, %v966
        %v968 = vrot.slane %v953, %v967
        %v969 = vlaneseq
        %v970 = vshrl.u32 %v969, 7
        %v971 = vsub.s32 3, %v970
        %v972 = vrot.slane %v953, %v971
        %v973 = vlaneseq
        %v974 = vshrl.u32 %v973, 7
        %v975 = vsub.s32 4, %v974
        %v976 = vrot.slane %v953, %v975
        %v977 = vlaneseq
        %v978 = vshrl.u32 %v977, 7
        %v979 = vsub.s32 5, %v978
        %v980 = vrot.slane %v953, %v979
        %v981 = vlaneseq
        %v982 = vshrl.u32 %v981, 7
        %v983 = vsub.s32 6, %v982
        %v984 = vrot.slane %v953, %v983
        %v985 = vlaneseq
        %v986 = vshrl.u32 %v985, 7
        %v987 = vsub.s32 7, %v986
        %v988 = vrot.slane %v953, %v987
        %v989 = vlaneseq
        %v990 = vshrl.u32 %v989, 7
        %v991 = vsub.s32 0, %v990
        %v992 = vrot.slane %v954, %v991
        %v993 = vlaneseq
        %v994 = vshrl.u32 %v993, 7
        %v995 = vsub.s32 1, %v994
        %v996 = vrot.slane %v954, %v995
        %v997 = vlaneseq
        %v998 = vshrl.u32 %v997, 7
        %v999 = vsub.s32 2, %v998
        %v1000 = vrot.slane %v954, %v999
        %v1001 = vlaneseq
        %v1002 = vshrl.u32 %v1001, 7
        %v1003 = vsub.s32 3, %v1002
        %v1004 = vrot.slane %v954, %v1003
        %v1005 = vlaneseq
        %v1006 = vshrl.u32 %v1005, 7
        %v1007 = vsub.s32 4, %v1006
        %v1008 = vrot.slane %v954, %v1007
        %v1009 = vlaneseq
        %v1010 = vshrl.u32 %v1009, 7
        %v1011 = vsub.s32 5, %v1010
        %v1012 = vrot.slane %v954, %v1011
        %v1013 = vlaneseq
        %v1014 = vshrl.u32 %v1013, 7
        %v1015 = vsub.s32 6, %v1014
        %v1016 = vrot.slane %v954, %v1015
        %v1017 = vlaneseq
        %v1018 = vshrl.u32 %v1017, 7
        %v1019 = vsub.s32 7, %v1018
        %v1020 = vrot.slane %v954, %v1019
        %v1101 = vunpack.c.l.b16 %v889
        %v1102 = vunpack.c.h.b16 %v889
        %v1103 = vunpack.c.l.b16 %v890
        %v1104 = vunpack.c.h.b16 %v890
        %v1105 = vunpack.c.l.b16 %v891
        %v1106 = vunpack.c.h.b16 %v891
        %v1107 = vunpack.c.l.b16 %v892
        %v1108 = vunpack.c.h.b16 %v892
        %v1109 = vunpack.c.l.b16 %v893
        %v1110 = vunpack.c.h.b16 %v893
        %v1111 = vunpack.c.l.b16 %v894
        %v1112 = vunpack.c.h.b16 %v894
        %v1113 = vunpack.c.l.b16 %v895
        %v1114 = vunpack.c.h.b16 %v895
        %v1115 = vunpack.c.l.b16 %v896
        %v1116 = vunpack.c.h.b16 %v896
        %v1117 = vunpack.c.l.b16 %v897
        %v1118 = vunpack.c.h.b16 %v897
        %v1119 = vunpack.c.l.b16 %v898
        %v1120 = vunpack.c.h.b16 %v898
        %v1121 = vunpack.c.l.b16 %v899
        %v1122 = vunpack.c.h.b16 %v899
        %v1123 = vunpack.c.l.b16 %v900
        %v1124 = vunpack.c.h.b16 %v900
        %v1125 = vunpack.c.l.b16 %v901
        %v1126 = vunpack.c.h.b16 %v901
        %v1127 = vunpack.c.l.b16 %v902
        %v1128 = vunpack.c.h.b16 %v902
        %v1129 = vunpack.c.l.b16 %v903
        %v1130 = vunpack.c.h.b16 %v903
        %v1131 = vunpack.c.l.b16 %v904
        %v1132 = vunpack.c.h.b16 %v904
        %v1133 = vunpack.c.l.b16 %v905
        %v1134 = vunpack.c.h.b16 %v905
        %v1135 = vunpack.c.l.b16 %v906
        %v1136 = vunpack.c.h.b16 %v906
        %v1137 = vunpack.c.l.b16 %v907
        %v1138 = vunpack.c.h.b16 %v907
        %v1139 = vunpack.c.l.b16 %v908
        %v1140 = vunpack.c.h.b16 %v908
        %v1141 = vunpack.c.l.b16 %v909
        %v1142 = vunpack.c.h.b16 %v909
        %v1143 = vunpack.c.l.b16 %v910
        %v1144 = vunpack.c.h.b16 %v910
        %v1145 = vunpack.c.l.b16 %v911
        %v1146 = vunpack.c.h.b16 %v911
        %v1147 = vunpack.c.l.b16 %v912
        %v1148 = vunpack.c.h.b16 %v912
        %v1149 = vunpack.c.l.b16 %v913
        %v1150 = vunpack.c.h.b16 %v913
        %v1151 = vunpack.c.l.b16 %v914
        %v1152 = vunpack.c.h.b16 %v914
        %v1153 = vunpack.c.l.b16 %v915
        %v1154 = vunpack.c.h.b16 %v915
        %v1155 = vunpack.c.l.b16 %v916
        %v1156 = vunpack.c.h.b16 %v916
        %v1157 = vunpack.c.l.b16 %v917
        %v1158 = vunpack.c.h.b16 %v917
        %v1159 = vunpack.c.l.b16 %v918
        %v1160 = vunpack.c.h.b16 %v918
        %v1161 = vunpack.c.l.b16 %v919
        %v1162 = vunpack.c.h.b16 %v919
        %v1163 = vunpack.c.l.b16 %v920
        %v1164 = vunpack.c.h.b16 %v920
        %v1165 = vunpack.c.l.b16 %v921
        %v1166 = vunpack.c.h.b16 %v921
        %v1167 = vunpack.c.l.b16 %v922
        %v1168 = vunpack.c.h.b16 %v922
        %v1169 = vunpack.c.l.b16 %v923
        %v1170 = vunpack.c.h.b16 %v923
        %v1171 = vunpack.c.l.b16 %v924
        %v1172 = vunpack.c.h.b16 %v924
        %v1173 = vunpack.c.l.b16 %v925
        %v1174 = vunpack.c.h.b16 %v925
        %v1175 = vunpack.c.l.b16 %v926
        %v1176 = vunpack.c.h.b16 %v926
        %v1177 = vunpack.c.l.b16 %v927
        %v1178 = vunpack.c.h.b16 %v927
        %v1179 = vunpack.c.l.b16 %v928
        %v1180 = vunpack.c.h.b16 %v928
        %v1181 = vunpack.c.l.b16 %v929
        %v1182 = vunpack.c.h.b16 %v929
        %v1183 = vunpack.c.l.b16 %v930
        %v1184 = vunpack.c.h.b16 %v930
        %v1185 = vunpack.c.l.b16 %v931
        %v1186 = vunpack.c.h.b16 %v931
        %v1187 = vunpack.c.l.b16 %v932
        %v1188 = vunpack.c.h.b16 %v932
        %v1189 = vunpack.c.l.b16 %v933
        %v1190 = vunpack.c.h.b16 %v933
        %v1191 = vunpack.c.l.b16 %v934
        %v1192 = vunpack.c.h.b16 %v934
        %v1193 = vunpack.c.l.b16 %v935
        %v1194 = vunpack.c.h.b16 %v935
        %v1195 = vunpack.c.l.b16 %v936
        %v1196 = vunpack.c.h.b16 %v936
        %v1197 = vunpack.c.l.b16 %v937
        %v1198 = vunpack.c.h.b16 %v937
        %v1199 = vunpack.c.l.b16 %v938
        %v1200 = vunpack.c.h.b16 %v938
        %v1201 = vunpack.c.l.b16 %v939
        %v1202 = vunpack.c.h.b16 %v939
        %v1203 = vunpack.c.l.b16 %v940
        %v1204 = vunpack.c.h.b16 %v940
        %v1205 = vunpack.c.l.b16 %v941
        %v1206 = vunpack.c.h.b16 %v941
        %v1207 = vunpack.c.l.b16 %v942
        %v1208 = vunpack.c.h.b16 %v942
        %v1209 = vunpack.c.l.b16 %v943
        %v1210 = vunpack.c.h.b16 %v943
        %v1211 = vunpack.c.l.b16 %v944
        %v1212 = vunpack.c.h.b16 %v944
        %v1213 = vunpack.c.l.b16 %v945
        %v1214 = vunpack.c.h.b16 %v945
        %v1215 = vunpack.c.l.b16 %v946
        %v1216 = vunpack.c.h.b16 %v946
        %v1217 = vunpack.c.l.b16 %v947
        %v1218 = vunpack.c.h.b16 %v947
        %v1219 = vunpack.c.l.b16 %v948
        %v1220 = vunpack.c.h.b16 %v948
        %v1221 = vunpack.c.l.b16 %v949
        %v1222 = vunpack.c.h.b16 %v949
        %v1223 = vunpack.c.l.b16 %v950
        %v1224 = vunpack.c.h.b16 %v950
        %v1225 = vunpack.c.l.b16 %v951
        %v1226 = vunpack.c.h.b16 %v951
        %v1227 = vunpack.c.l.b16 %v952
        %v1228 = vunpack.c.h.b16 %v952
        %v1229 = vpack.c.b16 %v1117, %v1101
        %v1230 = vpack.c.b16 %v1118, %v1102
        %v1231 = vpack.c.b16 %v1119, %v1103
        %v1232 = vpack.c.b16 %v1120, %v1104
        %v1233 = vpack.c.b16 %v1121, %v1105
        %v1234 = vpack.c.b16 %v1122, %v1106
        %v1235 = vpack.c.b16 %v1123, %v1107
        %v1236 = vpack.c.b16 %v1124, %v1108
        %v1237 = vpack.c.b16 %v1125, %v1109
        %v1238 = vpack.c.b16 %v1126, %v1110
        %v1239 = vpack.c.b16 %v1127, %v1111
        %v1240 = vpack.c.b16 %v1128, %v1112
        %v1241 = vpack.c.b16 %v1129, %v1113
        %v1242 = vpack.c.b16 %v1130, %v1114
        %v1243 = vpack.c.b16 %v1131, %v1115
        %v1244 = vpack.c.b16 %v1132, %v1116
        %v1245 = vpack.c.b16 %v1149, %v1133
        %v1246 = vpack.c.b16 %v1150, %v1134
        %v1247 = vpack.c.b16 %v1151, %v1135
        %v1248 = vpack.c.b16 %v1152, %v1136
        %v1249 = vpack.c.b16 %v1153, %v1137
        %v1250 = vpack.c.b16 %v1154, %v1138
        %v1251 = vpack.c.b16 %v1155, %v1139
        %v1252 = vpack.c.b16 %v1156, %v1140
        %v1253 = vpack.c.b16 %v1157, %v1141
        %v1254 = vpack.c.b16 %v1158, %v1142
        %v1255 = vpack.c.b16 %v1159, %v1143
        %v1256 = vpack.c.b16 %v1160, %v1144
        %v1257 = vpack.c.b16 %v1161, %v1145
        %v1258 = vpack.c.b16 %v1162, %v1146
        %v1259 = vpack.c.b16 %v1163, %v1147
        %v1260 = vpack.c.b16 %v1164, %v1148
        %v1261 = vpack.c.b16 %v1181, %v1165
        %v1262 = vpack.c.b16 %v1182, %v1166
        %v1263 = vpack.c.b16 %v1183, %v1167
        %v1264 = vpack.c.b16 %v1184, %v1168
        %v1265 = vpack.c.b16 %v1185, %v1169
        %v1266 = vpack.c.b16 %v1186, %v1170
        %v1267 = vpack.c.b16 %v1187, %v1171
        %v1268 = vpack.c.b16 %v1188, %v1172
        %v1269 = vpack.c.b16 %v1189, %v1173
        %v1270 = vpack.c.b16 %v1190, %v1174
        %v1271 = vpack.c.b16 %v1191, %v1175
        %v1272 = vpack.c.b16 %v1192, %v1176
        %v1273 = vpack.c.b16 %v1193, %v1177
        %v1274 = vpack.c.b16 %v1194, %v1178
        %v1275 = vpack.c.b16 %v1195, %v1179
        %v1276 = vpack.c.b16 %v1196, %v1180
        %v1277 = vpack.c.b16 %v1213, %v1197
        %v1278 = vpack.c.b16 %v1214, %v1198
        %v1279 = vpack.c.b16 %v1215, %v1199
        %v1280 = vpack.c.b16 %v1216, %v1200
        %v1281 = vpack.c.b16 %v1217, %v1201
        %v1282 = vpack.c.b16 %v1218, %v1202
        %v1283 = vpack.c.b16 %v1219, %v1203
        %v1284 = vpack.c.b16 %v1220, %v1204
        %v1285 = vpack.c.b16 %v1221, %v1205
        %v1286 = vpack.c.b16 %v1222, %v1206
        %v1287 = vpack.c.b16 %v1223, %v1207
        %v1288 = vpack.c.b16 %v1224, %v1208
        %v1289 = vpack.c.b16 %v1225, %v1209
        %v1290 = vpack.c.b16 %v1226, %v1210
        %v1291 = vpack.c.b16 %v1227, %v1211
        %v1292 = vpack.c.b16 %v1228, %v1212
        %v1358 = vsel %vm813, %v888, 0
        %1360 = vmatprep.subr.bf16.mxu0 %v1230
        %1361 = vmatpush1.bf16.msra.mxu0 %v1229
        %1362 = vmatprep.subr.bf16.mxu0 %v1246
        %1363 = vmatpush1.bf16.msra.mxu0 %v1245
        %1364 = vmatprep.subr.bf16.mxu0 %v1262
        %1365 = vmatpush1.bf16.msra.mxu0 %v1261
        %1366 = vmatprep.subr.bf16.mxu0 %v1278
        %1367 = vmatpush1.bf16.msra.mxu0 %v1277
        %1368 = vmatprep.subr.bf16.mxu0 0
        %1369 = vmatpush1.bf16.msra.mxu0 0
        %1370 = vmatprep.subr.bf16.mxu0 0
        %1371 = vmatpush1.bf16.msra.mxu0 0
        %1372 = vmatprep.subr.bf16.mxu0 0
        %1373 = vmatpush1.bf16.msra.mxu0 0
        %1374 = vmatprep.subr.bf16.mxu0 0
        %1375 = vmatpush1.bf16.msra.mxu0 0
        %1376 = vmatprep.subr.bf16.mxu0 0
        %1377 = vmatpush1.bf16.msra.mxu0 0
        %1378 = vmatprep.subr.bf16.mxu0 0
        %1379 = vmatpush1.bf16.msra.mxu0 0
        %1380 = vmatprep.subr.bf16.mxu0 0
        %1381 = vmatpush1.bf16.msra.mxu0 0
        %1382 = vmatprep.subr.bf16.mxu0 0
        %1383 = vmatpush1.bf16.msra.mxu0 0
        %1384 = vmatprep.subr.bf16.mxu0 0
        %1385 = vmatpush1.bf16.msra.mxu0 0
        %1386 = vmatprep.subr.bf16.mxu0 0
        %1387 = vmatpush1.bf16.msra.mxu0 0
        %1388 = vmatprep.subr.bf16.mxu0 0
        %1389 = vmatpush1.bf16.msra.mxu0 0
        %1390 = vmatprep.subr.bf16.mxu0 0
        %1391 = vmatpush1.bf16.msra.mxu0 0
        %1392 = vmatprep.mubr.bf16.mxu0 0
        %1393 = vmatmul.mubr.bf16.gmra.mrb[0].mxu0 %v1358
        %v1394 = vpop.f32.mrb[0].mxu0
        %v1395 = vadd.f32 %v960, %v1394
        %v1396 = vpop.f32.mrb[0].mxu0
        %v1397 = vadd.f32 %v964, %v1396
        %v1398 = vpop.f32.mrb[0].mxu0
        %v1399 = vpop.f32.mrb[0].mxu0
        %1400 = vdwg.mxu0
        %1401 = vmatprep.subr.bf16.mxu0 %v1232
        %1402 = vmatpush1.bf16.msra.mxu0 %v1231
        %1403 = vmatprep.subr.bf16.mxu0 %v1248
        %1404 = vmatpush1.bf16.msra.mxu0 %v1247
        %1405 = vmatprep.subr.bf16.mxu0 %v1264
        %1406 = vmatpush1.bf16.msra.mxu0 %v1263
        %1407 = vmatprep.subr.bf16.mxu0 %v1280
        %1408 = vmatpush1.bf16.msra.mxu0 %v1279
        %1409 = vmatprep.subr.bf16.mxu0 0
        %1410 = vmatpush1.bf16.msra.mxu0 0
        %1411 = vmatprep.subr.bf16.mxu0 0
        %1412 = vmatpush1.bf16.msra.mxu0 0
        %1413 = vmatprep.subr.bf16.mxu0 0
        %1414 = vmatpush1.bf16.msra.mxu0 0
        %1415 = vmatprep.subr.bf16.mxu0 0
        %1416 = vmatpush1.bf16.msra.mxu0 0
        %1417 = vmatprep.subr.bf16.mxu0 0
        %1418 = vmatpush1.bf16.msra.mxu0 0
        %1419 = vmatprep.subr.bf16.mxu0 0
        %1420 = vmatpush1.bf16.msra.mxu0 0
        %1421 = vmatprep.subr.bf16.mxu0 0
        %1422 = vmatpush1.bf16.msra.mxu0 0
        %1423 = vmatprep.subr.bf16.mxu0 0
        %1424 = vmatpush1.bf16.msra.mxu0 0
        %1425 = vmatprep.subr.bf16.mxu0 0
        %1426 = vmatpush1.bf16.msra.mxu0 0
        %1427 = vmatprep.subr.bf16.mxu0 0
        %1428 = vmatpush1.bf16.msra.mxu0 0
        %1429 = vmatprep.subr.bf16.mxu0 0
        %1430 = vmatpush1.bf16.msra.mxu0 0
        %1431 = vmatprep.subr.bf16.mxu0 0
        %1432 = vmatpush1.bf16.msra.mxu0 0
        %1433 = vmatprep.mubr.bf16.mxu0 0
        %1434 = vmatmul.mubr.bf16.gmra.mrb[0].mxu0 %v1358
        %v1435 = vpop.f32.mrb[0].mxu0
        %v1436 = vadd.f32 %v968, %v1435
        %v1437 = vpop.f32.mrb[0].mxu0
        %v1438 = vadd.f32 %v972, %v1437
        %v1439 = vpop.f32.mrb[0].mxu0
        %v1440 = vpop.f32.mrb[0].mxu0
        %1441 = vdwg.mxu0
        %1442 = vmatprep.subr.bf16.mxu0 %v1234
        %1443 = vmatpush1.bf16.msra.mxu0 %v1233
        %1444 = vmatprep.subr.bf16.mxu0 %v1250
        %1445 = vmatpush1.bf16.msra.mxu0 %v1249
        %1446 = vmatprep.subr.bf16.mxu0 %v1266
        %1447 = vmatpush1.bf16.msra.mxu0 %v1265
        %1448 = vmatprep.subr.bf16.mxu0 %v1282
        %1449 = vmatpush1.bf16.msra.mxu0 %v1281
        %1450 = vmatprep.subr.bf16.mxu0 0
        %1451 = vmatpush1.bf16.msra.mxu0 0
        %1452 = vmatprep.subr.bf16.mxu0 0
        %1453 = vmatpush1.bf16.msra.mxu0 0
        %1454 = vmatprep.subr.bf16.mxu0 0
        %1455 = vmatpush1.bf16.msra.mxu0 0
        %1456 = vmatprep.subr.bf16.mxu0 0
        %1457 = vmatpush1.bf16.msra.mxu0 0
        %1458 = vmatprep.subr.bf16.mxu0 0
        %1459 = vmatpush1.bf16.msra.mxu0 0
        %1460 = vmatprep.subr.bf16.mxu0 0
        %1461 = vmatpush1.bf16.msra.mxu0 0
        %1462 = vmatprep.subr.bf16.mxu0 0
        %1463 = vmatpush1.bf16.msra.mxu0 0
        %1464 = vmatprep.subr.bf16.mxu0 0
        %1465 = vmatpush1.bf16.msra.mxu0 0
        %1466 = vmatprep.subr.bf16.mxu0 0
        %1467 = vmatpush1.bf16.msra.mxu0 0
        %1468 = vmatprep.subr.bf16.mxu0 0
        %1469 = vmatpush1.bf16.msra.mxu0 0
        %1470 = vmatprep.subr.bf16.mxu0 0
        %1471 = vmatpush1.bf16.msra.mxu0 0
        %1472 = vmatprep.subr.bf16.mxu0 0
        %1473 = vmatpush1.bf16.msra.mxu0 0
        %1474 = vmatprep.mubr.bf16.mxu0 0
        %1475 = vmatmul.mubr.bf16.gmra.mrb[0].mxu0 %v1358
        %v1476 = vpop.f32.mrb[0].mxu0
        %v1477 = vadd.f32 %v976, %v1476
        %v1478 = vpop.f32.mrb[0].mxu0
        %v1479 = vadd.f32 %v980, %v1478
        %v1480 = vpop.f32.mrb[0].mxu0
        %v1481 = vpop.f32.mrb[0].mxu0
        %1482 = vdwg.mxu0
        %1483 = vmatprep.subr.bf16.mxu0 %v1236
        %1484 = vmatpush1.bf16.msra.mxu0 %v1235
        %1485 = vmatprep.subr.bf16.mxu0 %v1252
        %1486 = vmatpush1.bf16.msra.mxu0 %v1251
        %1487 = vmatprep.subr.bf16.mxu0 %v1268
        %1488 = vmatpush1.bf16.msra.mxu0 %v1267
        %1489 = vmatprep.subr.bf16.mxu0 %v1284
        %1490 = vmatpush1.bf16.msra.mxu0 %v1283
        %1491 = vmatprep.subr.bf16.mxu0 0
        %1492 = vmatpush1.bf16.msra.mxu0 0
        %1493 = vmatprep.subr.bf16.mxu0 0
        %1494 = vmatpush1.bf16.msra.mxu0 0
        %1495 = vmatprep.subr.bf16.mxu0 0
        %1496 = vmatpush1.bf16.msra.mxu0 0
        %1497 = vmatprep.subr.bf16.mxu0 0
        %1498 = vmatpush1.bf16.msra.mxu0 0
        %1499 = vmatprep.subr.bf16.mxu0 0
        %1500 = vmatpush1.bf16.msra.mxu0 0
        %1501 = vmatprep.subr.bf16.mxu0 0
        %1502 = vmatpush1.bf16.msra.mxu0 0
        %1503 = vmatprep.subr.bf16.mxu0 0
        %1504 = vmatpush1.bf16.msra.mxu0 0
        %1505 = vmatprep.subr.bf16.mxu0 0
        %1506 = vmatpush1.bf16.msra.mxu0 0
        %1507 = vmatprep.subr.bf16.mxu0 0
        %1508 = vmatpush1.bf16.msra.mxu0 0
        %1509 = vmatprep.subr.bf16.mxu0 0
        %1510 = vmatpush1.bf16.msra.mxu0 0
        %1511 = vmatprep.subr.bf16.mxu0 0
        %1512 = vmatpush1.bf16.msra.mxu0 0
        %1513 = vmatprep.subr.bf16.mxu0 0
        %1514 = vmatpush1.bf16.msra.mxu0 0
        %1515 = vmatprep.mubr.bf16.mxu0 0
        %1516 = vmatmul.mubr.bf16.gmra.mrb[0].mxu0 %v1358
        %v1517 = vpop.f32.mrb[0].mxu0
        %v1518 = vadd.f32 %v984, %v1517
        %v1519 = vpop.f32.mrb[0].mxu0
        %v1520 = vadd.f32 %v988, %v1519
        %v1521 = vpop.f32.mrb[0].mxu0
        %v1522 = vpop.f32.mrb[0].mxu0
        %1523 = vdwg.mxu0
        %1524 = vmatprep.subr.bf16.mxu0 %v1238
        %1525 = vmatpush1.bf16.msra.mxu0 %v1237
        %1526 = vmatprep.subr.bf16.mxu0 %v1254
        %1527 = vmatpush1.bf16.msra.mxu0 %v1253
        %1528 = vmatprep.subr.bf16.mxu0 %v1270
        %1529 = vmatpush1.bf16.msra.mxu0 %v1269
        %1530 = vmatprep.subr.bf16.mxu0 %v1286
        %1531 = vmatpush1.bf16.msra.mxu0 %v1285
        %1532 = vmatprep.subr.bf16.mxu0 0
        %1533 = vmatpush1.bf16.msra.mxu0 0
        %1534 = vmatprep.subr.bf16.mxu0 0
        %1535 = vmatpush1.bf16.msra.mxu0 0
        %1536 = vmatprep.subr.bf16.mxu0 0
        %1537 = vmatpush1.bf16.msra.mxu0 0
        %1538 = vmatprep.subr.bf16.mxu0 0
        %1539 = vmatpush1.bf16.msra.mxu0 0
        %1540 = vmatprep.subr.bf16.mxu0 0
        %1541 = vmatpush1.bf16.msra.mxu0 0
        %1542 = vmatprep.subr.bf16.mxu0 0
        %1543 = vmatpush1.bf16.msra.mxu0 0
        %1544 = vmatprep.subr.bf16.mxu0 0
        %1545 = vmatpush1.bf16.msra.mxu0 0
        %1546 = vmatprep.subr.bf16.mxu0 0
        %1547 = vmatpush1.bf16.msra.mxu0 0
        %1548 = vmatprep.subr.bf16.mxu0 0
        %1549 = vmatpush1.bf16.msra.mxu0 0
        %1550 = vmatprep.subr.bf16.mxu0 0
        %1551 = vmatpush1.bf16.msra.mxu0 0
        %1552 = vmatprep.subr.bf16.mxu0 0
        %1553 = vmatpush1.bf16.msra.mxu0 0
        %1554 = vmatprep.subr.bf16.mxu0 0
        %1555 = vmatpush1.bf16.msra.mxu0 0
        %1556 = vmatprep.mubr.bf16.mxu0 0
        %1557 = vmatmul.mubr.bf16.gmra.mrb[0].mxu0 %v1358
        %v1558 = vpop.f32.mrb[0].mxu0
        %v1559 = vadd.f32 %v992, %v1558
        %v1560 = vpop.f32.mrb[0].mxu0
        %v1561 = vadd.f32 %v996, %v1560
        %v1562 = vpop.f32.mrb[0].mxu0
        %v1563 = vpop.f32.mrb[0].mxu0
        %1564 = vdwg.mxu0
        %1565 = vmatprep.subr.bf16.mxu0 %v1240
        %1566 = vmatpush1.bf16.msra.mxu0 %v1239
        %1567 = vmatprep.subr.bf16.mxu0 %v1256
        %1568 = vmatpush1.bf16.msra.mxu0 %v1255
        %1569 = vmatprep.subr.bf16.mxu0 %v1272
        %1570 = vmatpush1.bf16.msra.mxu0 %v1271
        %1571 = vmatprep.subr.bf16.mxu0 %v1288
        %1572 = vmatpush1.bf16.msra.mxu0 %v1287
        %1573 = vmatprep.subr.bf16.mxu0 0
        %1574 = vmatpush1.bf16.msra.mxu0 0
        %1575 = vmatprep.subr.bf16.mxu0 0
        %1576 = vmatpush1.bf16.msra.mxu0 0
        %1577 = vmatprep.subr.bf16.mxu0 0
        %1578 = vmatpush1.bf16.msra.mxu0 0
        %1579 = vmatprep.subr.bf16.mxu0 0
        %1580 = vmatpush1.bf16.msra.mxu0 0
        %1581 = vmatprep.subr.bf16.mxu0 0
        %1582 = vmatpush1.bf16.msra.mxu0 0
        %1583 = vmatprep.subr.bf16.mxu0 0
        %1584 = vmatpush1.bf16.msra.mxu0 0
        %1585 = vmatprep.subr.bf16.mxu0 0
        %1586 = vmatpush1.bf16.msra.mxu0 0
        %1587 = vmatprep.subr.bf16.mxu0 0
        %1588 = vmatpush1.bf16.msra.mxu0 0
        %1589 = vmatprep.subr.bf16.mxu0 0
        %1590 = vmatpush1.bf16.msra.mxu0 0
        %1591 = vmatprep.subr.bf16.mxu0 0
        %1592 = vmatpush1.bf16.msra.mxu0 0
        %1593 = vmatprep.subr.bf16.mxu0 0
        %1594 = vmatpush1.bf16.msra.mxu0 0
        %1595 = vmatprep.subr.bf16.mxu0 0
        %1596 = vmatpush1.bf16.msra.mxu0 0
        %1597 = vmatprep.mubr.bf16.mxu0 0
        %1598 = vmatmul.mubr.bf16.gmra.mrb[0].mxu0 %v1358
        %v1599 = vpop.f32.mrb[0].mxu0
        %v1600 = vadd.f32 %v1000, %v1599
        %v1601 = vpop.f32.mrb[0].mxu0
        %v1602 = vadd.f32 %v1004, %v1601
        %v1603 = vpop.f32.mrb[0].mxu0
        %v1604 = vpop.f32.mrb[0].mxu0
        %1605 = vdwg.mxu0
        %1606 = vmatprep.subr.bf16.mxu0 %v1242
        %1607 = vmatpush1.bf16.msra.mxu0 %v1241
        %1608 = vmatprep.subr.bf16.mxu0 %v1258
        %1609 = vmatpush1.bf16.msra.mxu0 %v1257
        %1610 = vmatprep.subr.bf16.mxu0 %v1274
        %1611 = vmatpush1.bf16.msra.mxu0 %v1273
        %1612 = vmatprep.subr.bf16.mxu0 %v1290
        %1613 = vmatpush1.bf16.msra.mxu0 %v1289
        %1614 = vmatprep.subr.bf16.mxu0 0
        %1615 = vmatpush1.bf16.msra.mxu0 0
        %1616 = vmatprep.subr.bf16.mxu0 0
        %1617 = vmatpush1.bf16.msra.mxu0 0
        %1618 = vmatprep.subr.bf16.mxu0 0
        %1619 = vmatpush1.bf16.msra.mxu0 0
        %1620 = vmatprep.subr.bf16.mxu0 0
        %1621 = vmatpush1.bf16.msra.mxu0 0
        %1622 = vmatprep.subr.bf16.mxu0 0
        %1623 = vmatpush1.bf16.msra.mxu0 0
        %1624 = vmatprep.subr.bf16.mxu0 0
        %1625 = vmatpush1.bf16.msra.mxu0 0
        %1626 = vmatprep.subr.bf16.mxu0 0
        %1627 = vmatpush1.bf16.msra.mxu0 0
        %1628 = vmatprep.subr.bf16.mxu0 0
        %1629 = vmatpush1.bf16.msra.mxu0 0
        %1630 = vmatprep.subr.bf16.mxu0 0
        %1631 = vmatpush1.bf16.msra.mxu0 0
        %1632 = vmatprep.subr.bf16.mxu0 0
        %1633 = vmatpush1.bf16.msra.mxu0 0
        %1634 = vmatprep.subr.bf16.mxu0 0
        %1635 = vmatpush1.bf16.msra.mxu0 0
        %1636 = vmatprep.subr.bf16.mxu0 0
        %1637 = vmatpush1.bf16.msra.mxu0 0
        %1638 = vmatprep.mubr.bf16.mxu0 0
        %1639 = vmatmul.mubr.bf16.gmra.mrb[0].mxu0 %v1358
        %v1640 = vpop.f32.mrb[0].mxu0
        %v1641 = vadd.f32 %v1008, %v1640
        %v1642 = vpop.f32.mrb[0].mxu0
        %v1643 = vadd.f32 %v1012, %v1642
        %v1644 = vpop.f32.mrb[0].mxu0
        %v1645 = vpop.f32.mrb[0].mxu0
        %1646 = vdwg.mxu0
        %1647 = vmatprep.subr.bf16.mxu0 %v1244
        %1648 = vmatpush1.bf16.msra.mxu0 %v1243
        %1649 = vmatprep.subr.bf16.mxu0 %v1260
        %1650 = vmatpush1.bf16.msra.mxu0 %v1259
        %1651 = vmatprep.subr.bf16.mxu0 %v1276
        %1652 = vmatpush1.bf16.msra.mxu0 %v1275
        %1653 = vmatprep.subr.bf16.mxu0 %v1292
        %1654 = vmatpush1.bf16.msra.mxu0 %v1291
        %1655 = vmatprep.subr.bf16.mxu0 0
        %1656 = vmatpush1.bf16.msra.mxu0 0
        %1657 = vmatprep.subr.bf16.mxu0 0
        %1658 = vmatpush1.bf16.msra.mxu0 0
        %1659 = vmatprep.subr.bf16.mxu0 0
        %1660 = vmatpush1.bf16.msra.mxu0 0
        %1661 = vmatprep.subr.bf16.mxu0 0
        %1662 = vmatpush1.bf16.msra.mxu0 0
        %1663 = vmatprep.subr.bf16.mxu0 0
        %1664 = vmatpush1.bf16.msra.mxu0 0
        %1665 = vmatprep.subr.bf16.mxu0 0
        %1666 = vmatpush1.bf16.msra.mxu0 0
        %1667 = vmatprep.subr.bf16.mxu0 0
        %1668 = vmatpush1.bf16.msra.mxu0 0
        %1669 = vmatprep.subr.bf16.mxu0 0
        %1670 = vmatpush1.bf16.msra.mxu0 0
        %1671 = vmatprep.subr.bf16.mxu0 0
        %1672 = vmatpush1.bf16.msra.mxu0 0
        %1673 = vmatprep.subr.bf16.mxu0 0
        %1674 = vmatpush1.bf16.msra.mxu0 0
        %1675 = vmatprep.subr.bf16.mxu0 0
        %1676 = vmatpush1.bf16.msra.mxu0 0
        %1677 = vmatprep.subr.bf16.mxu0 0
        %1678 = vmatpush1.bf16.msra.mxu0 0
        %1679 = vmatprep.mubr.bf16.mxu0 0
        %1680 = vmatmul.mubr.bf16.gmra.mrb[0].mxu0 %v1358
        %v1681 = vpop.f32.mrb[0].mxu0
        %v1682 = vadd.f32 %v1016, %v1681
        %v1683 = vpop.f32.mrb[0].mxu0
        %v1684 = vadd.f32 %v1020, %v1683
        %v1685 = vpop.f32.mrb[0].mxu0
        %v1686 = vpop.f32.mrb[0].mxu0
        %1687 = vdwg.mxu0
        %v1688 = vmax.f32 %v1395, 0.0
        %v1689 = vmax.f32 %v1397, 0.0
        %v1690 = vmax.f32 %v1436, 0.0
        %v1691 = vmax.f32 %v1438, 0.0
        %v1692 = vmax.f32 %v1477, 0.0
        %v1693 = vmax.f32 %v1479, 0.0
        %v1694 = vmax.f32 %v1518, 0.0
        %v1695 = vmax.f32 %v1520, 0.0
        %v1696 = vmax.f32 %v1559, 0.0
        %v1697 = vmax.f32 %v1561, 0.0
        %v1698 = vmax.f32 %v1600, 0.0
        %v1699 = vmax.f32 %v1602, 0.0
        %v1700 = vmax.f32 %v1641, 0.0
        %v1701 = vmax.f32 %v1643, 0.0
        %v1702 = vmax.f32 %v1682, 0.0
        %v1703 = vmax.f32 %v1684, 0.0
        %v1704 = vpack.c.bf16 %v1688, %v1688
        %v1705 = vpack.c.bf16 %v1689, %v1689
        %v1706 = vpack.c.bf16 %v1690, %v1690
        %v1707 = vpack.c.bf16 %v1691, %v1691
        %v1708 = vpack.c.bf16 %v1692, %v1692
        %v1709 = vpack.c.bf16 %v1693, %v1693
        %v1710 = vpack.c.bf16 %v1694, %v1694
        %v1711 = vpack.c.bf16 %v1695, %v1695
        %v1712 = vpack.c.bf16 %v1696, %v1696
        %v1713 = vpack.c.bf16 %v1697, %v1697
        %v1714 = vpack.c.bf16 %v1698, %v1698
        %v1715 = vpack.c.bf16 %v1699, %v1699
        %v1716 = vpack.c.bf16 %v1700, %v1700
        %v1717 = vpack.c.bf16 %v1701, %v1701
        %v1718 = vpack.c.bf16 %v1702, %v1702
        %v1719 = vpack.c.bf16 %v1703, %v1703
        %v1720 = vld [vmem:[%s671] sm:$0xf]
        %v1721 = vld [vmem:[%s671 + $0x4] sm:$0xf]
        %v1722 = vld [vmem:[%s671 + $0x8] sm:$0xf]
        %v1723 = vld [vmem:[%s671 + $0xc] sm:$0xf]
        %v1724 = vld [vmem:[%s671 + $0x10] sm:$0xf]
        %v1725 = vld [vmem:[%s671 + $0x14] sm:$0xf]
        %v1726 = vld [vmem:[%s671 + $0x18] sm:$0xf]
        %v1727 = vld [vmem:[%s671 + $0x1c] sm:$0xf]
        %v1728 = vld [vmem:[%s671 + $0x20] sm:$0xf]
        %v1729 = vld [vmem:[%s671 + $0x24] sm:$0xf]
        %v1730 = vld [vmem:[%s671 + $0x28] sm:$0xf]
        %v1731 = vld [vmem:[%s671 + $0x2c] sm:$0xf]
        %v1732 = vld [vmem:[%s671 + $0x30] sm:$0xf]
        %v1733 = vld [vmem:[%s671 + $0x34] sm:$0xf]
        %v1734 = vld [vmem:[%s671 + $0x38] sm:$0xf]
        %v1735 = vld [vmem:[%s671 + $0x3c] sm:$0xf]
        %v1736 = vld [vmem:[%s671 + $0x40] sm:$0xf]
        %v1737 = vld [vmem:[%s671 + $0x44] sm:$0xf]
        %v1738 = vld [vmem:[%s671 + $0x48] sm:$0xf]
        %v1739 = vld [vmem:[%s671 + $0x4c] sm:$0xf]
        %v1740 = vld [vmem:[%s671 + $0x50] sm:$0xf]
        %v1741 = vld [vmem:[%s671 + $0x54] sm:$0xf]
        %v1742 = vld [vmem:[%s671 + $0x58] sm:$0xf]
        %v1743 = vld [vmem:[%s671 + $0x5c] sm:$0xf]
        %v1744 = vld [vmem:[%s671 + $0x60] sm:$0xf]
        %v1745 = vld [vmem:[%s671 + $0x64] sm:$0xf]
        %v1746 = vld [vmem:[%s671 + $0x68] sm:$0xf]
        %v1747 = vld [vmem:[%s671 + $0x6c] sm:$0xf]
        %v1748 = vld [vmem:[%s671 + $0x70] sm:$0xf]
        %v1749 = vld [vmem:[%s671 + $0x74] sm:$0xf]
        %v1750 = vld [vmem:[%s671 + $0x78] sm:$0xf]
        %v1751 = vld [vmem:[%s671 + $0x7c] sm:$0xf]
        %v1752 = vld [vmem:[%s671 + $0x80] sm:$0xf]
        %v1753 = vld [vmem:[%s671 + $0x84] sm:$0xf]
        %v1754 = vld [vmem:[%s671 + $0x88] sm:$0xf]
        %v1755 = vld [vmem:[%s671 + $0x8c] sm:$0xf]
        %v1756 = vld [vmem:[%s671 + $0x90] sm:$0xf]
        %v1757 = vld [vmem:[%s671 + $0x94] sm:$0xf]
        %v1758 = vld [vmem:[%s671 + $0x98] sm:$0xf]
        %v1759 = vld [vmem:[%s671 + $0x9c] sm:$0xf]
        %v1760 = vld [vmem:[%s671 + $0xa0] sm:$0xf]
        %v1761 = vld [vmem:[%s671 + $0xa4] sm:$0xf]
        %v1762 = vld [vmem:[%s671 + $0xa8] sm:$0xf]
        %v1763 = vld [vmem:[%s671 + $0xac] sm:$0xf]
        %v1764 = vld [vmem:[%s671 + $0xb0] sm:$0xf]
        %v1765 = vld [vmem:[%s671 + $0xb4] sm:$0xf]
        %v1766 = vld [vmem:[%s671 + $0xb8] sm:$0xf]
        %v1767 = vld [vmem:[%s671 + $0xbc] sm:$0xf]
        %v1768 = vld [vmem:[%s671 + $0xc0] sm:$0xf]
        %v1769 = vld [vmem:[%s671 + $0xc4] sm:$0xf]
        %v1770 = vld [vmem:[%s671 + $0xc8] sm:$0xf]
        %v1771 = vld [vmem:[%s671 + $0xcc] sm:$0xf]
        %v1772 = vld [vmem:[%s671 + $0xd0] sm:$0xf]
        %v1773 = vld [vmem:[%s671 + $0xd4] sm:$0xf]
        %v1774 = vld [vmem:[%s671 + $0xd8] sm:$0xf]
        %v1775 = vld [vmem:[%s671 + $0xdc] sm:$0xf]
        %v1776 = vld [vmem:[%s671 + $0xe0] sm:$0xf]
        %v1777 = vld [vmem:[%s671 + $0xe4] sm:$0xf]
        %v1778 = vld [vmem:[%s671 + $0xe8] sm:$0xf]
        %v1779 = vld [vmem:[%s671 + $0xec] sm:$0xf]
        %v1780 = vld [vmem:[%s671 + $0xf0] sm:$0xf]
        %v1781 = vld [vmem:[%s671 + $0xf4] sm:$0xf]
        %v1782 = vld [vmem:[%s671 + $0xf8] sm:$0xf]
        %v1783 = vld [vmem:[%s671 + $0xfc] sm:$0xf]
        %v1784 = vld [vmem:[%s671 + $0x100] sm:$0xf]
        %v1785 = vld [vmem:[%s671 + $0x104] sm:$0xf]
        %v1786 = vld [vmem:[%s671 + $0x108] sm:$0xf]
        %v1787 = vld [vmem:[%s671 + $0x10c] sm:$0xf]
        %v1788 = vld [vmem:[%s671 + $0x110] sm:$0xf]
        %v1789 = vld [vmem:[%s671 + $0x114] sm:$0xf]
        %v1790 = vld [vmem:[%s671 + $0x118] sm:$0xf]
        %v1791 = vld [vmem:[%s671 + $0x11c] sm:$0xf]
        %v1792 = vld [vmem:[%s671 + $0x120] sm:$0xf]
        %v1793 = vld [vmem:[%s671 + $0x124] sm:$0xf]
        %v1794 = vld [vmem:[%s671 + $0x128] sm:$0xf]
        %v1795 = vld [vmem:[%s671 + $0x12c] sm:$0xf]
        %v1796 = vld [vmem:[%s671 + $0x130] sm:$0xf]
        %v1797 = vld [vmem:[%s671 + $0x134] sm:$0xf]
        %v1798 = vld [vmem:[%s671 + $0x138] sm:$0xf]
        %v1799 = vld [vmem:[%s671 + $0x13c] sm:$0xf]
        %v1800 = vld [vmem:[%s671 + $0x140] sm:$0xf]
        %v1801 = vld [vmem:[%s671 + $0x144] sm:$0xf]
        %v1802 = vld [vmem:[%s671 + $0x148] sm:$0xf]
        %v1803 = vld [vmem:[%s671 + $0x14c] sm:$0xf]
        %v1804 = vld [vmem:[%s671 + $0x150] sm:$0xf]
        %v1805 = vld [vmem:[%s671 + $0x154] sm:$0xf]
        %v1806 = vld [vmem:[%s671 + $0x158] sm:$0xf]
        %v1807 = vld [vmem:[%s671 + $0x15c] sm:$0xf]
        %v1808 = vld [vmem:[%s671 + $0x160] sm:$0xf]
        %v1809 = vld [vmem:[%s671 + $0x164] sm:$0xf]
        %v1810 = vld [vmem:[%s671 + $0x168] sm:$0xf]
        %v1811 = vld [vmem:[%s671 + $0x16c] sm:$0xf]
        %v1812 = vld [vmem:[%s671 + $0x170] sm:$0xf]
        %v1813 = vld [vmem:[%s671 + $0x174] sm:$0xf]
        %v1814 = vld [vmem:[%s671 + $0x178] sm:$0xf]
        %v1815 = vld [vmem:[%s671 + $0x17c] sm:$0xf]
        %v1816 = vld [vmem:[%s671 + $0x180] sm:$0xf]
        %v1817 = vld [vmem:[%s671 + $0x184] sm:$0xf]
        %v1818 = vld [vmem:[%s671 + $0x188] sm:$0xf]
        %v1819 = vld [vmem:[%s671 + $0x18c] sm:$0xf]
        %v1820 = vld [vmem:[%s671 + $0x190] sm:$0xf]
        %v1821 = vld [vmem:[%s671 + $0x194] sm:$0xf]
        %v1822 = vld [vmem:[%s671 + $0x198] sm:$0xf]
        %v1823 = vld [vmem:[%s671 + $0x19c] sm:$0xf]
        %v1824 = vld [vmem:[%s671 + $0x1a0] sm:$0xf]
        %v1825 = vld [vmem:[%s671 + $0x1a4] sm:$0xf]
        %v1826 = vld [vmem:[%s671 + $0x1a8] sm:$0xf]
        %v1827 = vld [vmem:[%s671 + $0x1ac] sm:$0xf]
        %v1828 = vld [vmem:[%s671 + $0x1b0] sm:$0xf]
        %v1829 = vld [vmem:[%s671 + $0x1b4] sm:$0xf]
        %v1830 = vld [vmem:[%s671 + $0x1b8] sm:$0xf]
        %v1831 = vld [vmem:[%s671 + $0x1bc] sm:$0xf]
        %v1832 = vld [vmem:[%s671 + $0x1c0] sm:$0xf]
        %v1833 = vld [vmem:[%s671 + $0x1c4] sm:$0xf]
        %v1834 = vld [vmem:[%s671 + $0x1c8] sm:$0xf]
        %v1835 = vld [vmem:[%s671 + $0x1cc] sm:$0xf]
        %v1836 = vld [vmem:[%s671 + $0x1d0] sm:$0xf]
        %v1837 = vld [vmem:[%s671 + $0x1d4] sm:$0xf]
        %v1838 = vld [vmem:[%s671 + $0x1d8] sm:$0xf]
        %v1839 = vld [vmem:[%s671 + $0x1dc] sm:$0xf]
        %v1840 = vld [vmem:[%s671 + $0x1e0] sm:$0xf]
        %v1841 = vld [vmem:[%s671 + $0x1e4] sm:$0xf]
        %v1842 = vld [vmem:[%s671 + $0x1e8] sm:$0xf]
        %v1843 = vld [vmem:[%s671 + $0x1ec] sm:$0xf]
        %v1844 = vld [vmem:[%s671 + $0x1f0] sm:$0xf]
        %v1845 = vld [vmem:[%s671 + $0x1f4] sm:$0xf]
        %v1846 = vld [vmem:[%s671 + $0x1f8] sm:$0xf]
        %v1847 = vld [vmem:[%s671 + $0x1fc] sm:$0xf]
        %v1848 = vld [vmem:[%s671 + $0x200] sm:$0xf]
        %v1849 = vld [vmem:[%s671 + $0x204] sm:$0xf]
        %v1850 = vld [vmem:[%s671 + $0x208] sm:$0xf]
        %v1851 = vld [vmem:[%s671 + $0x20c] sm:$0xf]
        %v1852 = vld [vmem:[%s671 + $0x210] sm:$0xf]
        %v1853 = vld [vmem:[%s671 + $0x214] sm:$0xf]
        %v1854 = vld [vmem:[%s671 + $0x218] sm:$0xf]
        %v1855 = vld [vmem:[%s671 + $0x21c] sm:$0xf]
        %v1856 = vld [vmem:[%s671 + $0x220] sm:$0xf]
        %v1857 = vld [vmem:[%s671 + $0x224] sm:$0xf]
        %v1858 = vld [vmem:[%s671 + $0x228] sm:$0xf]
        %v1859 = vld [vmem:[%s671 + $0x22c] sm:$0xf]
        %v1860 = vld [vmem:[%s671 + $0x230] sm:$0xf]
        %v1861 = vld [vmem:[%s671 + $0x234] sm:$0xf]
        %v1862 = vld [vmem:[%s671 + $0x238] sm:$0xf]
        %v1863 = vld [vmem:[%s671 + $0x23c] sm:$0xf]
        %v1864 = vld [vmem:[%s671 + $0x240] sm:$0xf]
        %v1865 = vld [vmem:[%s671 + $0x244] sm:$0xf]
        %v1866 = vld [vmem:[%s671 + $0x248] sm:$0xf]
        %v1867 = vld [vmem:[%s671 + $0x24c] sm:$0xf]
        %v1868 = vld [vmem:[%s671 + $0x250] sm:$0xf]
        %v1869 = vld [vmem:[%s671 + $0x254] sm:$0xf]
        %v1870 = vld [vmem:[%s671 + $0x258] sm:$0xf]
        %v1871 = vld [vmem:[%s671 + $0x25c] sm:$0xf]
        %v1872 = vld [vmem:[%s671 + $0x260] sm:$0xf]
        %v1873 = vld [vmem:[%s671 + $0x264] sm:$0xf]
        %v1874 = vld [vmem:[%s671 + $0x268] sm:$0xf]
        %v1875 = vld [vmem:[%s671 + $0x26c] sm:$0xf]
        %v1876 = vld [vmem:[%s671 + $0x270] sm:$0xf]
        %v1877 = vld [vmem:[%s671 + $0x274] sm:$0xf]
        %v1878 = vld [vmem:[%s671 + $0x278] sm:$0xf]
        %v1879 = vld [vmem:[%s671 + $0x27c] sm:$0xf]
        %v1880 = vld [vmem:[%s671 + $0x280] sm:$0xf]
        %v1881 = vld [vmem:[%s671 + $0x284] sm:$0xf]
        %v1882 = vld [vmem:[%s671 + $0x288] sm:$0xf]
        %v1883 = vld [vmem:[%s671 + $0x28c] sm:$0xf]
        %v1884 = vld [vmem:[%s671 + $0x290] sm:$0xf]
        %v1885 = vld [vmem:[%s671 + $0x294] sm:$0xf]
        %v1886 = vld [vmem:[%s671 + $0x298] sm:$0xf]
        %v1887 = vld [vmem:[%s671 + $0x29c] sm:$0xf]
        %v1888 = vld [vmem:[%s671 + $0x2a0] sm:$0xf]
        %v1889 = vld [vmem:[%s671 + $0x2a4] sm:$0xf]
        %v1890 = vld [vmem:[%s671 + $0x2a8] sm:$0xf]
        %v1891 = vld [vmem:[%s671 + $0x2ac] sm:$0xf]
        %v1892 = vld [vmem:[%s671 + $0x2b0] sm:$0xf]
        %v1893 = vld [vmem:[%s671 + $0x2b4] sm:$0xf]
        %v1894 = vld [vmem:[%s671 + $0x2b8] sm:$0xf]
        %v1895 = vld [vmem:[%s671 + $0x2bc] sm:$0xf]
        %v1896 = vld [vmem:[%s671 + $0x2c0] sm:$0xf]
        %v1897 = vld [vmem:[%s671 + $0x2c4] sm:$0xf]
        %v1898 = vld [vmem:[%s671 + $0x2c8] sm:$0xf]
        %v1899 = vld [vmem:[%s671 + $0x2cc] sm:$0xf]
        %v1900 = vld [vmem:[%s671 + $0x2d0] sm:$0xf]
        %v1901 = vld [vmem:[%s671 + $0x2d4] sm:$0xf]
        %v1902 = vld [vmem:[%s671 + $0x2d8] sm:$0xf]
        %v1903 = vld [vmem:[%s671 + $0x2dc] sm:$0xf]
        %v1904 = vld [vmem:[%s671 + $0x2e0] sm:$0xf]
        %v1905 = vld [vmem:[%s671 + $0x2e4] sm:$0xf]
        %v1906 = vld [vmem:[%s671 + $0x2e8] sm:$0xf]
        %v1907 = vld [vmem:[%s671 + $0x2ec] sm:$0xf]
        %v1908 = vld [vmem:[%s671 + $0x2f0] sm:$0xf]
        %v1909 = vld [vmem:[%s671 + $0x2f4] sm:$0xf]
        %v1910 = vld [vmem:[%s671 + $0x2f8] sm:$0xf]
        %v1911 = vld [vmem:[%s671 + $0x2fc] sm:$0xf]
        %v1912 = vld [vmem:[%s671 + $0x300] sm:$0xf]
        %v1913 = vld [vmem:[%s671 + $0x304] sm:$0xf]
        %v1914 = vld [vmem:[%s671 + $0x308] sm:$0xf]
        %v1915 = vld [vmem:[%s671 + $0x30c] sm:$0xf]
        %v1916 = vld [vmem:[%s671 + $0x310] sm:$0xf]
        %v1917 = vld [vmem:[%s671 + $0x314] sm:$0xf]
        %v1918 = vld [vmem:[%s671 + $0x318] sm:$0xf]
        %v1919 = vld [vmem:[%s671 + $0x31c] sm:$0xf]
        %v1920 = vld [vmem:[%s671 + $0x320] sm:$0xf]
        %v1921 = vld [vmem:[%s671 + $0x324] sm:$0xf]
        %v1922 = vld [vmem:[%s671 + $0x328] sm:$0xf]
        %v1923 = vld [vmem:[%s671 + $0x32c] sm:$0xf]
        %v1924 = vld [vmem:[%s671 + $0x330] sm:$0xf]
        %v1925 = vld [vmem:[%s671 + $0x334] sm:$0xf]
        %v1926 = vld [vmem:[%s671 + $0x338] sm:$0xf]
        %v1927 = vld [vmem:[%s671 + $0x33c] sm:$0xf]
        %v1928 = vld [vmem:[%s671 + $0x340] sm:$0xf]
        %v1929 = vld [vmem:[%s671 + $0x344] sm:$0xf]
        %v1930 = vld [vmem:[%s671 + $0x348] sm:$0xf]
        %v1931 = vld [vmem:[%s671 + $0x34c] sm:$0xf]
        %v1932 = vld [vmem:[%s671 + $0x350] sm:$0xf]
        %v1933 = vld [vmem:[%s671 + $0x354] sm:$0xf]
        %v1934 = vld [vmem:[%s671 + $0x358] sm:$0xf]
        %v1935 = vld [vmem:[%s671 + $0x35c] sm:$0xf]
        %v1936 = vld [vmem:[%s671 + $0x360] sm:$0xf]
        %v1937 = vld [vmem:[%s671 + $0x364] sm:$0xf]
        %v1938 = vld [vmem:[%s671 + $0x368] sm:$0xf]
        %v1939 = vld [vmem:[%s671 + $0x36c] sm:$0xf]
        %v1940 = vld [vmem:[%s671 + $0x370] sm:$0xf]
        %v1941 = vld [vmem:[%s671 + $0x374] sm:$0xf]
        %v1942 = vld [vmem:[%s671 + $0x378] sm:$0xf]
        %v1943 = vld [vmem:[%s671 + $0x37c] sm:$0xf]
        %v1944 = vld [vmem:[%s671 + $0x380] sm:$0xf]
        %v1945 = vld [vmem:[%s671 + $0x384] sm:$0xf]
        %v1946 = vld [vmem:[%s671 + $0x388] sm:$0xf]
        %v1947 = vld [vmem:[%s671 + $0x38c] sm:$0xf]
        %v1948 = vld [vmem:[%s671 + $0x390] sm:$0xf]
        %v1949 = vld [vmem:[%s671 + $0x394] sm:$0xf]
        %v1950 = vld [vmem:[%s671 + $0x398] sm:$0xf]
        %v1951 = vld [vmem:[%s671 + $0x39c] sm:$0xf]
        %v1952 = vld [vmem:[%s671 + $0x3a0] sm:$0xf]
        %v1953 = vld [vmem:[%s671 + $0x3a4] sm:$0xf]
        %v1954 = vld [vmem:[%s671 + $0x3a8] sm:$0xf]
        %v1955 = vld [vmem:[%s671 + $0x3ac] sm:$0xf]
        %v1956 = vld [vmem:[%s671 + $0x3b0] sm:$0xf]
        %v1957 = vld [vmem:[%s671 + $0x3b4] sm:$0xf]
        %v1958 = vld [vmem:[%s671 + $0x3b8] sm:$0xf]
        %v1959 = vld [vmem:[%s671 + $0x3bc] sm:$0xf]
        %v1960 = vld [vmem:[%s671 + $0x3c0] sm:$0xf]
        %v1961 = vld [vmem:[%s671 + $0x3c4] sm:$0xf]
        %v1962 = vld [vmem:[%s671 + $0x3c8] sm:$0xf]
        %v1963 = vld [vmem:[%s671 + $0x3cc] sm:$0xf]
        %v1964 = vld [vmem:[%s671 + $0x3d0] sm:$0xf]
        %v1965 = vld [vmem:[%s671 + $0x3d4] sm:$0xf]
        %v1966 = vld [vmem:[%s671 + $0x3d8] sm:$0xf]
        %v1967 = vld [vmem:[%s671 + $0x3dc] sm:$0xf]
        %v1968 = vld [vmem:[%s671 + $0x3e0] sm:$0xf]
        %v1969 = vld [vmem:[%s671 + $0x3e4] sm:$0xf]
        %v1970 = vld [vmem:[%s671 + $0x3e8] sm:$0xf]
        %v1971 = vld [vmem:[%s671 + $0x3ec] sm:$0xf]
        %v1972 = vld [vmem:[%s671 + $0x3f0] sm:$0xf]
        %v1973 = vld [vmem:[%s671 + $0x3f4] sm:$0xf]
        %v1974 = vld [vmem:[%s671 + $0x3f8] sm:$0xf]
        %v1975 = vld [vmem:[%s671 + $0x3fc] sm:$0xf]
        %v1976 = vld [vmem:[%s674] sm:$0x1]
        %v1978 = vlaneseq
        %v1979 = vshrl.u32 %v1978, 7
        %v1980 = vsub.s32 0, %v1979
        %v1981 = vrot.slane %v1976, %v1980
        %v2239 = vunpack.c.l.b16 %v1720
        %v2240 = vunpack.c.l.b16 %v1721
        %v2241 = vunpack.c.l.b16 %v1722
        %v2242 = vunpack.c.l.b16 %v1723
        %v2243 = vunpack.c.l.b16 %v1724
        %v2244 = vunpack.c.l.b16 %v1725
        %v2245 = vunpack.c.l.b16 %v1726
        %v2246 = vunpack.c.l.b16 %v1727
        %v2247 = vunpack.c.l.b16 %v1728
        %v2248 = vunpack.c.l.b16 %v1729
        %v2249 = vunpack.c.l.b16 %v1730
        %v2250 = vunpack.c.l.b16 %v1731
        %v2251 = vunpack.c.l.b16 %v1732
        %v2252 = vunpack.c.l.b16 %v1733
        %v2253 = vunpack.c.l.b16 %v1734
        %v2254 = vunpack.c.l.b16 %v1735
        %v2255 = vunpack.c.l.b16 %v1736
        %v2256 = vunpack.c.l.b16 %v1737
        %v2257 = vunpack.c.l.b16 %v1738
        %v2258 = vunpack.c.l.b16 %v1739
        %v2259 = vunpack.c.l.b16 %v1740
        %v2260 = vunpack.c.l.b16 %v1741
        %v2261 = vunpack.c.l.b16 %v1742
        %v2262 = vunpack.c.l.b16 %v1743
        %v2263 = vunpack.c.l.b16 %v1744
        %v2264 = vunpack.c.l.b16 %v1745
        %v2265 = vunpack.c.l.b16 %v1746
        %v2266 = vunpack.c.l.b16 %v1747
        %v2267 = vunpack.c.l.b16 %v1748
        %v2268 = vunpack.c.l.b16 %v1749
        %v2269 = vunpack.c.l.b16 %v1750
        %v2270 = vunpack.c.l.b16 %v1751
        %v2271 = vunpack.c.l.b16 %v1752
        %v2272 = vunpack.c.l.b16 %v1753
        %v2273 = vunpack.c.l.b16 %v1754
        %v2274 = vunpack.c.l.b16 %v1755
        %v2275 = vunpack.c.l.b16 %v1756
        %v2276 = vunpack.c.l.b16 %v1757
        %v2277 = vunpack.c.l.b16 %v1758
        %v2278 = vunpack.c.l.b16 %v1759
        %v2279 = vunpack.c.l.b16 %v1760
        %v2280 = vunpack.c.l.b16 %v1761
        %v2281 = vunpack.c.l.b16 %v1762
        %v2282 = vunpack.c.l.b16 %v1763
        %v2283 = vunpack.c.l.b16 %v1764
        %v2284 = vunpack.c.l.b16 %v1765
        %v2285 = vunpack.c.l.b16 %v1766
        %v2286 = vunpack.c.l.b16 %v1767
        %v2287 = vunpack.c.l.b16 %v1768
        %v2288 = vunpack.c.l.b16 %v1769
        %v2289 = vunpack.c.l.b16 %v1770
        %v2290 = vunpack.c.l.b16 %v1771
        %v2291 = vunpack.c.l.b16 %v1772
        %v2292 = vunpack.c.l.b16 %v1773
        %v2293 = vunpack.c.l.b16 %v1774
        %v2294 = vunpack.c.l.b16 %v1775
        %v2295 = vunpack.c.l.b16 %v1776
        %v2296 = vunpack.c.l.b16 %v1777
        %v2297 = vunpack.c.l.b16 %v1778
        %v2298 = vunpack.c.l.b16 %v1779
        %v2299 = vunpack.c.l.b16 %v1780
        %v2300 = vunpack.c.l.b16 %v1781
        %v2301 = vunpack.c.l.b16 %v1782
        %v2302 = vunpack.c.l.b16 %v1783
        %v2303 = vunpack.c.l.b16 %v1784
        %v2304 = vunpack.c.l.b16 %v1785
        %v2305 = vunpack.c.l.b16 %v1786
        %v2306 = vunpack.c.l.b16 %v1787
        %v2307 = vunpack.c.l.b16 %v1788
        %v2308 = vunpack.c.l.b16 %v1789
        %v2309 = vunpack.c.l.b16 %v1790
        %v2310 = vunpack.c.l.b16 %v1791
        %v2311 = vunpack.c.l.b16 %v1792
        %v2312 = vunpack.c.l.b16 %v1793
        %v2313 = vunpack.c.l.b16 %v1794
        %v2314 = vunpack.c.l.b16 %v1795
        %v2315 = vunpack.c.l.b16 %v1796
        %v2316 = vunpack.c.l.b16 %v1797
        %v2317 = vunpack.c.l.b16 %v1798
        %v2318 = vunpack.c.l.b16 %v1799
        %v2319 = vunpack.c.l.b16 %v1800
        %v2320 = vunpack.c.l.b16 %v1801
        %v2321 = vunpack.c.l.b16 %v1802
        %v2322 = vunpack.c.l.b16 %v1803
        %v2323 = vunpack.c.l.b16 %v1804
        %v2324 = vunpack.c.l.b16 %v1805
        %v2325 = vunpack.c.l.b16 %v1806
        %v2326 = vunpack.c.l.b16 %v1807
        %v2327 = vunpack.c.l.b16 %v1808
        %v2328 = vunpack.c.l.b16 %v1809
        %v2329 = vunpack.c.l.b16 %v1810
        %v2330 = vunpack.c.l.b16 %v1811
        %v2331 = vunpack.c.l.b16 %v1812
        %v2332 = vunpack.c.l.b16 %v1813
        %v2333 = vunpack.c.l.b16 %v1814
        %v2334 = vunpack.c.l.b16 %v1815
        %v2335 = vunpack.c.l.b16 %v1816
        %v2336 = vunpack.c.l.b16 %v1817
        %v2337 = vunpack.c.l.b16 %v1818
        %v2338 = vunpack.c.l.b16 %v1819
        %v2339 = vunpack.c.l.b16 %v1820
        %v2340 = vunpack.c.l.b16 %v1821
        %v2341 = vunpack.c.l.b16 %v1822
        %v2342 = vunpack.c.l.b16 %v1823
        %v2343 = vunpack.c.l.b16 %v1824
        %v2344 = vunpack.c.l.b16 %v1825
        %v2345 = vunpack.c.l.b16 %v1826
        %v2346 = vunpack.c.l.b16 %v1827
        %v2347 = vunpack.c.l.b16 %v1828
        %v2348 = vunpack.c.l.b16 %v1829
        %v2349 = vunpack.c.l.b16 %v1830
        %v2350 = vunpack.c.l.b16 %v1831
        %v2351 = vunpack.c.l.b16 %v1832
        %v2352 = vunpack.c.l.b16 %v1833
        %v2353 = vunpack.c.l.b16 %v1834
        %v2354 = vunpack.c.l.b16 %v1835
        %v2355 = vunpack.c.l.b16 %v1836
        %v2356 = vunpack.c.l.b16 %v1837
        %v2357 = vunpack.c.l.b16 %v1838
        %v2358 = vunpack.c.l.b16 %v1839
        %v2359 = vunpack.c.l.b16 %v1840
        %v2360 = vunpack.c.l.b16 %v1841
        %v2361 = vunpack.c.l.b16 %v1842
        %v2362 = vunpack.c.l.b16 %v1843
        %v2363 = vunpack.c.l.b16 %v1844
        %v2364 = vunpack.c.l.b16 %v1845
        %v2365 = vunpack.c.l.b16 %v1846
        %v2366 = vunpack.c.l.b16 %v1847
        %v2367 = vunpack.c.l.b16 %v1848
        %v2368 = vunpack.c.l.b16 %v1849
        %v2369 = vunpack.c.l.b16 %v1850
        %v2370 = vunpack.c.l.b16 %v1851
        %v2371 = vunpack.c.l.b16 %v1852
        %v2372 = vunpack.c.l.b16 %v1853
        %v2373 = vunpack.c.l.b16 %v1854
        %v2374 = vunpack.c.l.b16 %v1855
        %v2375 = vunpack.c.l.b16 %v1856
        %v2376 = vunpack.c.l.b16 %v1857
        %v2377 = vunpack.c.l.b16 %v1858
        %v2378 = vunpack.c.l.b16 %v1859
        %v2379 = vunpack.c.l.b16 %v1860
        %v2380 = vunpack.c.l.b16 %v1861
        %v2381 = vunpack.c.l.b16 %v1862
        %v2382 = vunpack.c.l.b16 %v1863
        %v2383 = vunpack.c.l.b16 %v1864
        %v2384 = vunpack.c.l.b16 %v1865
        %v2385 = vunpack.c.l.b16 %v1866
        %v2386 = vunpack.c.l.b16 %v1867
        %v2387 = vunpack.c.l.b16 %v1868
        %v2388 = vunpack.c.l.b16 %v1869
        %v2389 = vunpack.c.l.b16 %v1870
        %v2390 = vunpack.c.l.b16 %v1871
        %v2391 = vunpack.c.l.b16 %v1872
        %v2392 = vunpack.c.l.b16 %v1873
        %v2393 = vunpack.c.l.b16 %v1874
        %v2394 = vunpack.c.l.b16 %v1875
        %v2395 = vunpack.c.l.b16 %v1876
        %v2396 = vunpack.c.l.b16 %v1877
        %v2397 = vunpack.c.l.b16 %v1878
        %v2398 = vunpack.c.l.b16 %v1879
        %v2399 = vunpack.c.l.b16 %v1880
        %v2400 = vunpack.c.l.b16 %v1881
        %v2401 = vunpack.c.l.b16 %v1882
        %v2402 = vunpack.c.l.b16 %v1883
        %v2403 = vunpack.c.l.b16 %v1884
        %v2404 = vunpack.c.l.b16 %v1885
        %v2405 = vunpack.c.l.b16 %v1886
        %v2406 = vunpack.c.l.b16 %v1887
        %v2407 = vunpack.c.l.b16 %v1888
        %v2408 = vunpack.c.l.b16 %v1889
        %v2409 = vunpack.c.l.b16 %v1890
        %v2410 = vunpack.c.l.b16 %v1891
        %v2411 = vunpack.c.l.b16 %v1892
        %v2412 = vunpack.c.l.b16 %v1893
        %v2413 = vunpack.c.l.b16 %v1894
        %v2414 = vunpack.c.l.b16 %v1895
        %v2415 = vunpack.c.l.b16 %v1896
        %v2416 = vunpack.c.l.b16 %v1897
        %v2417 = vunpack.c.l.b16 %v1898
        %v2418 = vunpack.c.l.b16 %v1899
        %v2419 = vunpack.c.l.b16 %v1900
        %v2420 = vunpack.c.l.b16 %v1901
        %v2421 = vunpack.c.l.b16 %v1902
        %v2422 = vunpack.c.l.b16 %v1903
        %v2423 = vunpack.c.l.b16 %v1904
        %v2424 = vunpack.c.l.b16 %v1905
        %v2425 = vunpack.c.l.b16 %v1906
        %v2426 = vunpack.c.l.b16 %v1907
        %v2427 = vunpack.c.l.b16 %v1908
        %v2428 = vunpack.c.l.b16 %v1909
        %v2429 = vunpack.c.l.b16 %v1910
        %v2430 = vunpack.c.l.b16 %v1911
        %v2431 = vunpack.c.l.b16 %v1912
        %v2432 = vunpack.c.l.b16 %v1913
        %v2433 = vunpack.c.l.b16 %v1914
        %v2434 = vunpack.c.l.b16 %v1915
        %v2435 = vunpack.c.l.b16 %v1916
        %v2436 = vunpack.c.l.b16 %v1917
        %v2437 = vunpack.c.l.b16 %v1918
        %v2438 = vunpack.c.l.b16 %v1919
        %v2439 = vunpack.c.l.b16 %v1920
        %v2440 = vunpack.c.l.b16 %v1921
        %v2441 = vunpack.c.l.b16 %v1922
        %v2442 = vunpack.c.l.b16 %v1923
        %v2443 = vunpack.c.l.b16 %v1924
        %v2444 = vunpack.c.l.b16 %v1925
        %v2445 = vunpack.c.l.b16 %v1926
        %v2446 = vunpack.c.l.b16 %v1927
        %v2447 = vunpack.c.l.b16 %v1928
        %v2448 = vunpack.c.l.b16 %v1929
        %v2449 = vunpack.c.l.b16 %v1930
        %v2450 = vunpack.c.l.b16 %v1931
        %v2451 = vunpack.c.l.b16 %v1932
        %v2452 = vunpack.c.l.b16 %v1933
        %v2453 = vunpack.c.l.b16 %v1934
        %v2454 = vunpack.c.l.b16 %v1935
        %v2455 = vunpack.c.l.b16 %v1936
        %v2456 = vunpack.c.l.b16 %v1937
        %v2457 = vunpack.c.l.b16 %v1938
        %v2458 = vunpack.c.l.b16 %v1939
        %v2459 = vunpack.c.l.b16 %v1940
        %v2460 = vunpack.c.l.b16 %v1941
        %v2461 = vunpack.c.l.b16 %v1942
        %v2462 = vunpack.c.l.b16 %v1943
        %v2463 = vunpack.c.l.b16 %v1944
        %v2464 = vunpack.c.l.b16 %v1945
        %v2465 = vunpack.c.l.b16 %v1946
        %v2466 = vunpack.c.l.b16 %v1947
        %v2467 = vunpack.c.l.b16 %v1948
        %v2468 = vunpack.c.l.b16 %v1949
        %v2469 = vunpack.c.l.b16 %v1950
        %v2470 = vunpack.c.l.b16 %v1951
        %v2471 = vunpack.c.l.b16 %v1952
        %v2472 = vunpack.c.l.b16 %v1953
        %v2473 = vunpack.c.l.b16 %v1954
        %v2474 = vunpack.c.l.b16 %v1955
        %v2475 = vunpack.c.l.b16 %v1956
        %v2476 = vunpack.c.l.b16 %v1957
        %v2477 = vunpack.c.l.b16 %v1958
        %v2478 = vunpack.c.l.b16 %v1959
        %v2479 = vunpack.c.l.b16 %v1960
        %v2480 = vunpack.c.l.b16 %v1961
        %v2481 = vunpack.c.l.b16 %v1962
        %v2482 = vunpack.c.l.b16 %v1963
        %v2483 = vunpack.c.l.b16 %v1964
        %v2484 = vunpack.c.l.b16 %v1965
        %v2485 = vunpack.c.l.b16 %v1966
        %v2486 = vunpack.c.l.b16 %v1967
        %v2487 = vunpack.c.l.b16 %v1968
        %v2488 = vunpack.c.l.b16 %v1969
        %v2489 = vunpack.c.l.b16 %v1970
        %v2490 = vunpack.c.l.b16 %v1971
        %v2491 = vunpack.c.l.b16 %v1972
        %v2492 = vunpack.c.l.b16 %v1973
        %v2493 = vunpack.c.l.b16 %v1974
        %v2494 = vunpack.c.l.b16 %v1975
        %v2495 = vpack.c.b16 %v2240, %v2239
        %v2496 = vpack.c.b16 %v2242, %v2241
        %v2497 = vpack.c.b16 %v2244, %v2243
        %v2498 = vpack.c.b16 %v2246, %v2245
        %v2499 = vpack.c.b16 %v2248, %v2247
        %v2500 = vpack.c.b16 %v2250, %v2249
        %v2501 = vpack.c.b16 %v2252, %v2251
        %v2502 = vpack.c.b16 %v2254, %v2253
        %v2503 = vpack.c.b16 %v2256, %v2255
        %v2504 = vpack.c.b16 %v2258, %v2257
        %v2505 = vpack.c.b16 %v2260, %v2259
        %v2506 = vpack.c.b16 %v2262, %v2261
        %v2507 = vpack.c.b16 %v2264, %v2263
        %v2508 = vpack.c.b16 %v2266, %v2265
        %v2509 = vpack.c.b16 %v2268, %v2267
        %v2510 = vpack.c.b16 %v2270, %v2269
        %v2511 = vpack.c.b16 %v2272, %v2271
        %v2512 = vpack.c.b16 %v2274, %v2273
        %v2513 = vpack.c.b16 %v2276, %v2275
        %v2514 = vpack.c.b16 %v2278, %v2277
        %v2515 = vpack.c.b16 %v2280, %v2279
        %v2516 = vpack.c.b16 %v2282, %v2281
        %v2517 = vpack.c.b16 %v2284, %v2283
        %v2518 = vpack.c.b16 %v2286, %v2285
        %v2519 = vpack.c.b16 %v2288, %v2287
        %v2520 = vpack.c.b16 %v2290, %v2289
        %v2521 = vpack.c.b16 %v2292, %v2291
        %v2522 = vpack.c.b16 %v2294, %v2293
        %v2523 = vpack.c.b16 %v2296, %v2295
        %v2524 = vpack.c.b16 %v2298, %v2297
        %v2525 = vpack.c.b16 %v2300, %v2299
        %v2526 = vpack.c.b16 %v2302, %v2301
        %v2527 = vpack.c.b16 %v2304, %v2303
        %v2528 = vpack.c.b16 %v2306, %v2305
        %v2529 = vpack.c.b16 %v2308, %v2307
        %v2530 = vpack.c.b16 %v2310, %v2309
        %v2531 = vpack.c.b16 %v2312, %v2311
        %v2532 = vpack.c.b16 %v2314, %v2313
        %v2533 = vpack.c.b16 %v2316, %v2315
        %v2534 = vpack.c.b16 %v2318, %v2317
        %v2535 = vpack.c.b16 %v2320, %v2319
        %v2536 = vpack.c.b16 %v2322, %v2321
        %v2537 = vpack.c.b16 %v2324, %v2323
        %v2538 = vpack.c.b16 %v2326, %v2325
        %v2539 = vpack.c.b16 %v2328, %v2327
        %v2540 = vpack.c.b16 %v2330, %v2329
        %v2541 = vpack.c.b16 %v2332, %v2331
        %v2542 = vpack.c.b16 %v2334, %v2333
        %v2543 = vpack.c.b16 %v2336, %v2335
        %v2544 = vpack.c.b16 %v2338, %v2337
        %v2545 = vpack.c.b16 %v2340, %v2339
        %v2546 = vpack.c.b16 %v2342, %v2341
        %v2547 = vpack.c.b16 %v2344, %v2343
        %v2548 = vpack.c.b16 %v2346, %v2345
        %v2549 = vpack.c.b16 %v2348, %v2347
        %v2550 = vpack.c.b16 %v2350, %v2349
        %v2551 = vpack.c.b16 %v2352, %v2351
        %v2552 = vpack.c.b16 %v2354, %v2353
        %v2553 = vpack.c.b16 %v2356, %v2355
        %v2554 = vpack.c.b16 %v2358, %v2357
        %v2555 = vpack.c.b16 %v2360, %v2359
        %v2556 = vpack.c.b16 %v2362, %v2361
        %v2557 = vpack.c.b16 %v2364, %v2363
        %v2558 = vpack.c.b16 %v2366, %v2365
        %v2559 = vpack.c.b16 %v2368, %v2367
        %v2560 = vpack.c.b16 %v2370, %v2369
        %v2561 = vpack.c.b16 %v2372, %v2371
        %v2562 = vpack.c.b16 %v2374, %v2373
        %v2563 = vpack.c.b16 %v2376, %v2375
        %v2564 = vpack.c.b16 %v2378, %v2377
        %v2565 = vpack.c.b16 %v2380, %v2379
        %v2566 = vpack.c.b16 %v2382, %v2381
        %v2567 = vpack.c.b16 %v2384, %v2383
        %v2568 = vpack.c.b16 %v2386, %v2385
        %v2569 = vpack.c.b16 %v2388, %v2387
        %v2570 = vpack.c.b16 %v2390, %v2389
        %v2571 = vpack.c.b16 %v2392, %v2391
        %v2572 = vpack.c.b16 %v2394, %v2393
        %v2573 = vpack.c.b16 %v2396, %v2395
        %v2574 = vpack.c.b16 %v2398, %v2397
        %v2575 = vpack.c.b16 %v2400, %v2399
        %v2576 = vpack.c.b16 %v2402, %v2401
        %v2577 = vpack.c.b16 %v2404, %v2403
        %v2578 = vpack.c.b16 %v2406, %v2405
        %v2579 = vpack.c.b16 %v2408, %v2407
        %v2580 = vpack.c.b16 %v2410, %v2409
        %v2581 = vpack.c.b16 %v2412, %v2411
        %v2582 = vpack.c.b16 %v2414, %v2413
        %v2583 = vpack.c.b16 %v2416, %v2415
        %v2584 = vpack.c.b16 %v2418, %v2417
        %v2585 = vpack.c.b16 %v2420, %v2419
        %v2586 = vpack.c.b16 %v2422, %v2421
        %v2587 = vpack.c.b16 %v2424, %v2423
        %v2588 = vpack.c.b16 %v2426, %v2425
        %v2589 = vpack.c.b16 %v2428, %v2427
        %v2590 = vpack.c.b16 %v2430, %v2429
        %v2591 = vpack.c.b16 %v2432, %v2431
        %v2592 = vpack.c.b16 %v2434, %v2433
        %v2593 = vpack.c.b16 %v2436, %v2435
        %v2594 = vpack.c.b16 %v2438, %v2437
        %v2595 = vpack.c.b16 %v2440, %v2439
        %v2596 = vpack.c.b16 %v2442, %v2441
        %v2597 = vpack.c.b16 %v2444, %v2443
        %v2598 = vpack.c.b16 %v2446, %v2445
        %v2599 = vpack.c.b16 %v2448, %v2447
        %v2600 = vpack.c.b16 %v2450, %v2449
        %v2601 = vpack.c.b16 %v2452, %v2451
        %v2602 = vpack.c.b16 %v2454, %v2453
        %v2603 = vpack.c.b16 %v2456, %v2455
        %v2604 = vpack.c.b16 %v2458, %v2457
        %v2605 = vpack.c.b16 %v2460, %v2459
        %v2606 = vpack.c.b16 %v2462, %v2461
        %v2607 = vpack.c.b16 %v2464, %v2463
        %v2608 = vpack.c.b16 %v2466, %v2465
        %v2609 = vpack.c.b16 %v2468, %v2467
        %v2610 = vpack.c.b16 %v2470, %v2469
        %v2611 = vpack.c.b16 %v2472, %v2471
        %v2612 = vpack.c.b16 %v2474, %v2473
        %v2613 = vpack.c.b16 %v2476, %v2475
        %v2614 = vpack.c.b16 %v2478, %v2477
        %v2615 = vpack.c.b16 %v2480, %v2479
        %v2616 = vpack.c.b16 %v2482, %v2481
        %v2617 = vpack.c.b16 %v2484, %v2483
        %v2618 = vpack.c.b16 %v2486, %v2485
        %v2619 = vpack.c.b16 %v2488, %v2487
        %v2620 = vpack.c.b16 %v2490, %v2489
        %v2621 = vpack.c.b16 %v2492, %v2491
        %v2622 = vpack.c.b16 %v2494, %v2493
        %2751 = vmatprep.subr.bf16.mxu0 0
        %2752 = vmatpush1.bf16.msra.mxu0 %v2495
        %2753 = vmatprep.subr.bf16.mxu0 0
        %2754 = vmatpush1.bf16.msra.mxu0 %v2496
        %2755 = vmatprep.subr.bf16.mxu0 0
        %2756 = vmatpush1.bf16.msra.mxu0 %v2497
        %2757 = vmatprep.subr.bf16.mxu0 0
        %2758 = vmatpush1.bf16.msra.mxu0 %v2498
        %2759 = vmatprep.subr.bf16.mxu0 0
        %2760 = vmatpush1.bf16.msra.mxu0 %v2499
        %2761 = vmatprep.subr.bf16.mxu0 0
        %2762 = vmatpush1.bf16.msra.mxu0 %v2500
        %2763 = vmatprep.subr.bf16.mxu0 0
        %2764 = vmatpush1.bf16.msra.mxu0 %v2501
        %2765 = vmatprep.subr.bf16.mxu0 0
        %2766 = vmatpush1.bf16.msra.mxu0 %v2502
        %2767 = vmatprep.subr.bf16.mxu0 0
        %2768 = vmatpush1.bf16.msra.mxu0 %v2503
        %2769 = vmatprep.subr.bf16.mxu0 0
        %2770 = vmatpush1.bf16.msra.mxu0 %v2504
        %2771 = vmatprep.subr.bf16.mxu0 0
        %2772 = vmatpush1.bf16.msra.mxu0 %v2505
        %2773 = vmatprep.subr.bf16.mxu0 0
        %2774 = vmatpush1.bf16.msra.mxu0 %v2506
        %2775 = vmatprep.subr.bf16.mxu0 0
        %2776 = vmatpush1.bf16.msra.mxu0 %v2507
        %2777 = vmatprep.subr.bf16.mxu0 0
        %2778 = vmatpush1.bf16.msra.mxu0 %v2508
        %2779 = vmatprep.subr.bf16.mxu0 0
        %2780 = vmatpush1.bf16.msra.mxu0 %v2509
        %2781 = vmatprep.subr.bf16.mxu0 0
        %2782 = vmatpush1.bf16.msra.mxu0 %v2510
        %2783 = vmatprep.mubr.bf16.mxu0 %v1705
        %2784 = vmatmul.mubr.bf16.gmra.mrb[0].mxu0 %v1704
        %v2785 = vpop.f32.mrb[0].mxu0
        %v2786 = vadd.f32 %v1981, %v2785
        %v2787 = vpop.f32.mrb[0].mxu0
        %v2788 = vpop.f32.mrb[0].mxu0
        %v2789 = vpop.f32.mrb[0].mxu0
        %2790 = vdwg.mxu0
        %2791 = vmatprep.subr.bf16.mxu0 0
        %2792 = vmatpush1.bf16.msra.mxu0 %v2511
        %2793 = vmatprep.subr.bf16.mxu0 0
        %2794 = vmatpush1.bf16.msra.mxu0 %v2512
        %2795 = vmatprep.subr.bf16.mxu0 0
        %2796 = vmatpush1.bf16.msra.mxu0 %v2513
        %2797 = vmatprep.subr.bf16.mxu0 0
        %2798 = vmatpush1.bf16.msra.mxu0 %v2514
        %2799 = vmatprep.subr.bf16.mxu0 0
        %2800 = vmatpush1.bf16.msra.mxu0 %v2515
        %2801 = vmatprep.subr.bf16.mxu0 0
        %2802 = vmatpush1.bf16.msra.mxu0 %v2516
        %2803 = vmatprep.subr.bf16.mxu0 0
        %2804 = vmatpush1.bf16.msra.mxu0 %v2517
        %2805 = vmatprep.subr.bf16.mxu0 0
        %2806 = vmatpush1.bf16.msra.mxu0 %v2518
        %2807 = vmatprep.subr.bf16.mxu0 0
        %2808 = vmatpush1.bf16.msra.mxu0 %v2519
        %2809 = vmatprep.subr.bf16.mxu0 0
        %2810 = vmatpush1.bf16.msra.mxu0 %v2520
        %2811 = vmatprep.subr.bf16.mxu0 0
        %2812 = vmatpush1.bf16.msra.mxu0 %v2521
        %2813 = vmatprep.subr.bf16.mxu0 0
        %2814 = vmatpush1.bf16.msra.mxu0 %v2522
        %2815 = vmatprep.subr.bf16.mxu0 0
        %2816 = vmatpush1.bf16.msra.mxu0 %v2523
        %2817 = vmatprep.subr.bf16.mxu0 0
        %2818 = vmatpush1.bf16.msra.mxu0 %v2524
        %2819 = vmatprep.subr.bf16.mxu0 0
        %2820 = vmatpush1.bf16.msra.mxu0 %v2525
        %2821 = vmatprep.subr.bf16.mxu0 0
        %2822 = vmatpush1.bf16.msra.mxu0 %v2526
        %2823 = vmatprep.mubr.bf16.mxu0 %v1707
        %2824 = vmatmul.mubr.bf16.gmra.mrb[0].mxu0 %v1706
        %v2825 = vpop.f32.mrb[0].mxu0
        %v2826 = vadd.f32 %v2786, %v2825
        %v2827 = vpop.f32.mrb[0].mxu0
        %v2828 = vpop.f32.mrb[0].mxu0
        %v2829 = vpop.f32.mrb[0].mxu0
        %2830 = vdwg.mxu0
        %2831 = vmatprep.subr.bf16.mxu0 0
        %2832 = vmatpush1.bf16.msra.mxu0 %v2527
        %2833 = vmatprep.subr.bf16.mxu0 0
        %2834 = vmatpush1.bf16.msra.mxu0 %v2528
        %2835 = vmatprep.subr.bf16.mxu0 0
        %2836 = vmatpush1.bf16.msra.mxu0 %v2529
        %2837 = vmatprep.subr.bf16.mxu0 0
        %2838 = vmatpush1.bf16.msra.mxu0 %v2530
        %2839 = vmatprep.subr.bf16.mxu0 0
        %2840 = vmatpush1.bf16.msra.mxu0 %v2531
        %2841 = vmatprep.subr.bf16.mxu0 0
        %2842 = vmatpush1.bf16.msra.mxu0 %v2532
        %2843 = vmatprep.subr.bf16.mxu0 0
        %2844 = vmatpush1.bf16.msra.mxu0 %v2533
        %2845 = vmatprep.subr.bf16.mxu0 0
        %2846 = vmatpush1.bf16.msra.mxu0 %v2534
        %2847 = vmatprep.subr.bf16.mxu0 0
        %2848 = vmatpush1.bf16.msra.mxu0 %v2535
        %2849 = vmatprep.subr.bf16.mxu0 0
        %2850 = vmatpush1.bf16.msra.mxu0 %v2536
        %2851 = vmatprep.subr.bf16.mxu0 0
        %2852 = vmatpush1.bf16.msra.mxu0 %v2537
        %2853 = vmatprep.subr.bf16.mxu0 0
        %2854 = vmatpush1.bf16.msra.mxu0 %v2538
        %2855 = vmatprep.subr.bf16.mxu0 0
        %2856 = vmatpush1.bf16.msra.mxu0 %v2539
        %2857 = vmatprep.subr.bf16.mxu0 0
        %2858 = vmatpush1.bf16.msra.mxu0 %v2540
        %2859 = vmatprep.subr.bf16.mxu0 0
        %2860 = vmatpush1.bf16.msra.mxu0 %v2541
        %2861 = vmatprep.subr.bf16.mxu0 0
        %2862 = vmatpush1.bf16.msra.mxu0 %v2542
        %2863 = vmatprep.mubr.bf16.mxu0 %v1709
        %2864 = vmatmul.mubr.bf16.gmra.mrb[0].mxu0 %v1708
        %v2865 = vpop.f32.mrb[0].mxu0
        %v2866 = vadd.f32 %v2826, %v2865
        %v2867 = vpop.f32.mrb[0].mxu0
        %v2868 = vpop.f32.mrb[0].mxu0
        %v2869 = vpop.f32.mrb[0].mxu0
        %2870 = vdwg.mxu0
        %2871 = vmatprep.subr.bf16.mxu0 0
        %2872 = vmatpush1.bf16.msra.mxu0 %v2543
        %2873 = vmatprep.subr.bf16.mxu0 0
        %2874 = vmatpush1.bf16.msra.mxu0 %v2544
        %2875 = vmatprep.subr.bf16.mxu0 0
        %2876 = vmatpush1.bf16.msra.mxu0 %v2545
        %2877 = vmatprep.subr.bf16.mxu0 0
        %2878 = vmatpush1.bf16.msra.mxu0 %v2546
        %2879 = vmatprep.subr.bf16.mxu0 0
        %2880 = vmatpush1.bf16.msra.mxu0 %v2547
        %2881 = vmatprep.subr.bf16.mxu0 0
        %2882 = vmatpush1.bf16.msra.mxu0 %v2548
        %2883 = vmatprep.subr.bf16.mxu0 0
        %2884 = vmatpush1.bf16.msra.mxu0 %v2549
        %2885 = vmatprep.subr.bf16.mxu0 0
        %2886 = vmatpush1.bf16.msra.mxu0 %v2550
        %2887 = vmatprep.subr.bf16.mxu0 0
        %2888 = vmatpush1.bf16.msra.mxu0 %v2551
        %2889 = vmatprep.subr.bf16.mxu0 0
        %2890 = vmatpush1.bf16.msra.mxu0 %v2552
        %2891 = vmatprep.subr.bf16.mxu0 0
        %2892 = vmatpush1.bf16.msra.mxu0 %v2553
        %2893 = vmatprep.subr.bf16.mxu0 0
        %2894 = vmatpush1.bf16.msra.mxu0 %v2554
        %2895 = vmatprep.subr.bf16.mxu0 0
        %2896 = vmatpush1.bf16.msra.mxu0 %v2555
        %2897 = vmatprep.subr.bf16.mxu0 0
        %2898 = vmatpush1.bf16.msra.mxu0 %v2556
        %2899 = vmatprep.subr.bf16.mxu0 0
        %2900 = vmatpush1.bf16.msra.mxu0 %v2557
        %2901 = vmatprep.subr.bf16.mxu0 0
        %2902 = vmatpush1.bf16.msra.mxu0 %v2558
        %2903 = vmatprep.mubr.bf16.mxu0 %v1711
        %2904 = vmatmul.mubr.bf16.gmra.mrb[0].mxu0 %v1710
        %v2905 = vpop.f32.mrb[0].mxu0
        %v2906 = vadd.f32 %v2866, %v2905
        %v2907 = vpop.f32.mrb[0].mxu0
        %v2908 = vpop.f32.mrb[0].mxu0
        %v2909 = vpop.f32.mrb[0].mxu0
        %2910 = vdwg.mxu0
        %2911 = vmatprep.subr.bf16.mxu0 0
        %2912 = vmatpush1.bf16.msra.mxu0 %v2559
        %2913 = vmatprep.subr.bf16.mxu0 0
        %2914 = vmatpush1.bf16.msra.mxu0 %v2560
        %2915 = vmatprep.subr.bf16.mxu0 0
        %2916 = vmatpush1.bf16.msra.mxu0 %v2561
        %2917 = vmatprep.subr.bf16.mxu0 0
        %2918 = vmatpush1.bf16.msra.mxu0 %v2562
        %2919 = vmatprep.subr.bf16.mxu0 0
        %2920 = vmatpush1.bf16.msra.mxu0 %v2563
        %2921 = vmatprep.subr.bf16.mxu0 0
        %2922 = vmatpush1.bf16.msra.mxu0 %v2564
        %2923 = vmatprep.subr.bf16.mxu0 0
        %2924 = vmatpush1.bf16.msra.mxu0 %v2565
        %2925 = vmatprep.subr.bf16.mxu0 0
        %2926 = vmatpush1.bf16.msra.mxu0 %v2566
        %2927 = vmatprep.subr.bf16.mxu0 0
        %2928 = vmatpush1.bf16.msra.mxu0 %v2567
        %2929 = vmatprep.subr.bf16.mxu0 0
        %2930 = vmatpush1.bf16.msra.mxu0 %v2568
        %2931 = vmatprep.subr.bf16.mxu0 0
        %2932 = vmatpush1.bf16.msra.mxu0 %v2569
        %2933 = vmatprep.subr.bf16.mxu0 0
        %2934 = vmatpush1.bf16.msra.mxu0 %v2570
        %2935 = vmatprep.subr.bf16.mxu0 0
        %2936 = vmatpush1.bf16.msra.mxu0 %v2571
        %2937 = vmatprep.subr.bf16.mxu0 0
        %2938 = vmatpush1.bf16.msra.mxu0 %v2572
        %2939 = vmatprep.subr.bf16.mxu0 0
        %2940 = vmatpush1.bf16.msra.mxu0 %v2573
        %2941 = vmatprep.subr.bf16.mxu0 0
        %2942 = vmatpush1.bf16.msra.mxu0 %v2574
        %2943 = vmatprep.mubr.bf16.mxu0 %v1713
        %2944 = vmatmul.mubr.bf16.gmra.mrb[0].mxu0 %v1712
        %v2945 = vpop.f32.mrb[0].mxu0
        %v2946 = vadd.f32 %v2906, %v2945
        %v2947 = vpop.f32.mrb[0].mxu0
        %v2948 = vpop.f32.mrb[0].mxu0
        %v2949 = vpop.f32.mrb[0].mxu0
        %2950 = vdwg.mxu0
        %2951 = vmatprep.subr.bf16.mxu0 0
        %2952 = vmatpush1.bf16.msra.mxu0 %v2575
        %2953 = vmatprep.subr.bf16.mxu0 0
        %2954 = vmatpush1.bf16.msra.mxu0 %v2576
        %2955 = vmatprep.subr.bf16.mxu0 0
        %2956 = vmatpush1.bf16.msra.mxu0 %v2577
        %2957 = vmatprep.subr.bf16.mxu0 0
        %2958 = vmatpush1.bf16.msra.mxu0 %v2578
        %2959 = vmatprep.subr.bf16.mxu0 0
        %2960 = vmatpush1.bf16.msra.mxu0 %v2579
        %2961 = vmatprep.subr.bf16.mxu0 0
        %2962 = vmatpush1.bf16.msra.mxu0 %v2580
        %2963 = vmatprep.subr.bf16.mxu0 0
        %2964 = vmatpush1.bf16.msra.mxu0 %v2581
        %2965 = vmatprep.subr.bf16.mxu0 0
        %2966 = vmatpush1.bf16.msra.mxu0 %v2582
        %2967 = vmatprep.subr.bf16.mxu0 0
        %2968 = vmatpush1.bf16.msra.mxu0 %v2583
        %2969 = vmatprep.subr.bf16.mxu0 0
        %2970 = vmatpush1.bf16.msra.mxu0 %v2584
        %2971 = vmatprep.subr.bf16.mxu0 0
        %2972 = vmatpush1.bf16.msra.mxu0 %v2585
        %2973 = vmatprep.subr.bf16.mxu0 0
        %2974 = vmatpush1.bf16.msra.mxu0 %v2586
        %2975 = vmatprep.subr.bf16.mxu0 0
        %2976 = vmatpush1.bf16.msra.mxu0 %v2587
        %2977 = vmatprep.subr.bf16.mxu0 0
        %2978 = vmatpush1.bf16.msra.mxu0 %v2588
        %2979 = vmatprep.subr.bf16.mxu0 0
        %2980 = vmatpush1.bf16.msra.mxu0 %v2589
        %2981 = vmatprep.subr.bf16.mxu0 0
        %2982 = vmatpush1.bf16.msra.mxu0 %v2590
        %2983 = vmatprep.mubr.bf16.mxu0 %v1715
        %2984 = vmatmul.mubr.bf16.gmra.mrb[0].mxu0 %v1714
        %v2985 = vpop.f32.mrb[0].mxu0
        %v2986 = vadd.f32 %v2946, %v2985
        %v2987 = vpop.f32.mrb[0].mxu0
        %v2988 = vpop.f32.mrb[0].mxu0
        %v2989 = vpop.f32.mrb[0].mxu0
        %2990 = vdwg.mxu0
        %2991 = vmatprep.subr.bf16.mxu0 0
        %2992 = vmatpush1.bf16.msra.mxu0 %v2591
        %2993 = vmatprep.subr.bf16.mxu0 0
        %2994 = vmatpush1.bf16.msra.mxu0 %v2592
        %2995 = vmatprep.subr.bf16.mxu0 0
        %2996 = vmatpush1.bf16.msra.mxu0 %v2593
        %2997 = vmatprep.subr.bf16.mxu0 0
        %2998 = vmatpush1.bf16.msra.mxu0 %v2594
        %2999 = vmatprep.subr.bf16.mxu0 0
        %3000 = vmatpush1.bf16.msra.mxu0 %v2595
        %3001 = vmatprep.subr.bf16.mxu0 0
        %3002 = vmatpush1.bf16.msra.mxu0 %v2596
        %3003 = vmatprep.subr.bf16.mxu0 0
        %3004 = vmatpush1.bf16.msra.mxu0 %v2597
        %3005 = vmatprep.subr.bf16.mxu0 0
        %3006 = vmatpush1.bf16.msra.mxu0 %v2598
        %3007 = vmatprep.subr.bf16.mxu0 0
        %3008 = vmatpush1.bf16.msra.mxu0 %v2599
        %3009 = vmatprep.subr.bf16.mxu0 0
        %3010 = vmatpush1.bf16.msra.mxu0 %v2600
        %3011 = vmatprep.subr.bf16.mxu0 0
        %3012 = vmatpush1.bf16.msra.mxu0 %v2601
        %3013 = vmatprep.subr.bf16.mxu0 0
        %3014 = vmatpush1.bf16.msra.mxu0 %v2602
        %3015 = vmatprep.subr.bf16.mxu0 0
        %3016 = vmatpush1.bf16.msra.mxu0 %v2603
        %3017 = vmatprep.subr.bf16.mxu0 0
        %3018 = vmatpush1.bf16.msra.mxu0 %v2604
        %3019 = vmatprep.subr.bf16.mxu0 0
        %3020 = vmatpush1.bf16.msra.mxu0 %v2605
        %3021 = vmatprep.subr.bf16.mxu0 0
        %3022 = vmatpush1.bf16.msra.mxu0 %v2606
        %3023 = vmatprep.mubr.bf16.mxu0 %v1717
        %3024 = vmatmul.mubr.bf16.gmra.mrb[0].mxu0 %v1716
        %v3025 = vpop.f32.mrb[0].mxu0
        %v3026 = vadd.f32 %v2986, %v3025
        %v3027 = vpop.f32.mrb[0].mxu0
        %v3028 = vpop.f32.mrb[0].mxu0
        %v3029 = vpop.f32.mrb[0].mxu0
        %3030 = vdwg.mxu0
        %3031 = vmatprep.subr.bf16.mxu0 0
        %3032 = vmatpush1.bf16.msra.mxu0 %v2607
        %3033 = vmatprep.subr.bf16.mxu0 0
        %3034 = vmatpush1.bf16.msra.mxu0 %v2608
        %3035 = vmatprep.subr.bf16.mxu0 0
        %3036 = vmatpush1.bf16.msra.mxu0 %v2609
        %3037 = vmatprep.subr.bf16.mxu0 0
        %3038 = vmatpush1.bf16.msra.mxu0 %v2610
        %3039 = vmatprep.subr.bf16.mxu0 0
        %3040 = vmatpush1.bf16.msra.mxu0 %v2611
        %3041 = vmatprep.subr.bf16.mxu0 0
        %3042 = vmatpush1.bf16.msra.mxu0 %v2612
        %3043 = vmatprep.subr.bf16.mxu0 0
        %3044 = vmatpush1.bf16.msra.mxu0 %v2613
        %3045 = vmatprep.subr.bf16.mxu0 0
        %3046 = vmatpush1.bf16.msra.mxu0 %v2614
        %3047 = vmatprep.subr.bf16.mxu0 0
        %3048 = vmatpush1.bf16.msra.mxu0 %v2615
        %3049 = vmatprep.subr.bf16.mxu0 0
        %3050 = vmatpush1.bf16.msra.mxu0 %v2616
        %3051 = vmatprep.subr.bf16.mxu0 0
        %3052 = vmatpush1.bf16.msra.mxu0 %v2617
        %3053 = vmatprep.subr.bf16.mxu0 0
        %3054 = vmatpush1.bf16.msra.mxu0 %v2618
        %3055 = vmatprep.subr.bf16.mxu0 0
        %3056 = vmatpush1.bf16.msra.mxu0 %v2619
        %3057 = vmatprep.subr.bf16.mxu0 0
        %3058 = vmatpush1.bf16.msra.mxu0 %v2620
        %3059 = vmatprep.subr.bf16.mxu0 0
        %3060 = vmatpush1.bf16.msra.mxu0 %v2621
        %3061 = vmatprep.subr.bf16.mxu0 0
        %3062 = vmatpush1.bf16.msra.mxu0 %v2622
        %3063 = vmatprep.mubr.bf16.mxu0 %v1719
        %3064 = vmatmul.mubr.bf16.gmra.mrb[0].mxu0 %v1718
        %v3065 = vpop.f32.mrb[0].mxu0
        %v3066 = vadd.f32 %v3026, %v3065
        %v3067 = vpop.f32.mrb[0].mxu0
        %v3068 = vpop.f32.mrb[0].mxu0
        %v3069 = vpop.f32.mrb[0].mxu0
        %3070 = vdwg.mxu0
        %v3071 = vadd.f32 %v887, %v3066
        %v3072 = vld [vmem:[%s677] sm:$0x1]
        %v3073 = vld [vmem:[%s680] sm:$0x1]
        %v3074 = vsel %vm813, %v3071, 0.0
        %3075 = vadd.xlane.f32.xlu0 %v3074
        %v3076 = vpop.xlane.xlu0 %3075
        %v3077 = vmul.f32 %v3076, %v863
        %v3078 = vsub.f32 %v3071, %v3077
        %v3079 = vmul.f32 %v3078, %v3078
        %v3080 = vsel %vm813, %v3079, 0.0
        %3081 = vadd.xlane.f32.xlu0 %v3080
        %v3082 = vpop.xlane.xlu0 %3081
        %v3083 = vmul.f32 %v3082, %v863
        %v3084 = vadd.f32 %v3083, 1e-05
        %v3085 = vrsqrt.pop %v3084
        %v3086 = vmul.f32 %v3078, %v3085
        %v3088 = vlaneseq
        %v3089 = vshrl.u32 %v3088, 7
        %v3090 = vsub.s32 0, %v3089
        %v3091 = vrot.slane %v3072, %v3090
        %v3093 = vmul.f32 %v3086, %v3091
        %v3095 = vlaneseq
        %v3096 = vshrl.u32 %v3095, 7
        %v3097 = vsub.s32 0, %v3096
        %v3098 = vrot.slane %v3073, %v3097
        %v3100 = vadd.f32 %v3093, %v3098
        %3101 = vst.msk [vmem:[#allocation2] sm:$0xff] %vm813, %v3100
        %p3102 = scmp.eq.s32.totalorder %s31, 1
        // Predicated region
        $region101: #{transformer_actor_forward.1} parent=79 // pred_check
          %p3103 = pneg %p3102
        $region102: #{transformer_actor_forward.1} parent=79 // pred_check_branch
          %3105 = sbr.rel (%p3103) target = $region104
        $region103: #{transformer_actor_forward.1} parent=79 // pred_region
          %v3106 = vld [vmem:[#allocation7] sm:$0xff]
          %v3107 = vld [vmem:[#allocation7 + $0x8] sm:$0xff]
          %v3108 = vld [vmem:[#allocation7 + $0x10] sm:$0xff]
          %v3109 = vld [vmem:[#allocation7 + $0x18] sm:$0xff]
          %v3110 = vld [vmem:[#allocation7 + $0x20] sm:$0xff]
          %v3111 = vld [vmem:[#allocation7 + $0x28] sm:$0xff]
          %v3112 = vld [vmem:[#allocation7 + $0x30] sm:$0xff]
          %v3113 = vld [vmem:[#allocation7 + $0x38] sm:$0xff]
          %v3114 = vld [vmem:[#allocation8] sm:$0x1]
          %v3116 = vlaneseq
          %v3117 = vshrl.u32 %v3116, 7
          %v3118 = vsub.s32 0, %v3117
          %v3119 = vrot.slane %v3114, %v3118
          %v3122 = vsel %vm813, %v3100, 0
          %3124 = vmatprep.subr.mxu0 0.0
          %3125 = vmatpush1.msra.mxu0 %v3106
          %3126 = vmatprep.subr.mxu0 0.0
          %3127 = vmatpush1.msra.mxu0 %v3107
          %3128 = vmatprep.subr.mxu0 0.0
          %3129 = vmatpush1.msra.mxu0 %v3108
          %3130 = vmatprep.subr.mxu0 0.0
          %3131 = vmatpush1.msra.mxu0 %v3109
          %3132 = vmatprep.subr.mxu0 0.0
          %3133 = vmatpush1.msra.mxu0 %v3110
          %3134 = vmatprep.subr.mxu0 0.0
          %3135 = vmatpush1.msra.mxu0 %v3111
          %3136 = vmatprep.subr.mxu0 0.0
          %3137 = vmatpush1.msra.mxu0 %v3112
          %3138 = vmatprep.subr.mxu0 0.0
          %3139 = vmatpush1.msra.mxu0 %v3113
          %3140 = vmatprep.subr.mxu0 0.0
          %3141 = vmatpush1.msra.mxu0 0.0
          %3142 = vmatprep.subr.mxu0 0.0
          %3143 = vmatpush1.msra.mxu0 0.0
          %3144 = vmatprep.subr.mxu0 0.0
          %3145 = vmatpush1.msra.mxu0 0.0
          %3146 = vmatprep.subr.mxu0 0.0
          %3147 = vmatpush1.msra.mxu0 0.0
          %3148 = vmatprep.subr.mxu0 0.0
          %3149 = vmatpush1.msra.mxu0 0.0
          %3150 = vmatprep.subr.mxu0 0.0
          %3151 = vmatpush1.msra.mxu0 0.0
          %3152 = vmatprep.subr.mxu0 0.0
          %3153 = vmatpush1.msra.mxu0 0.0
          %3154 = vmatprep.subr.mxu0 0.0
          %3155 = vmatpush1.msra.mxu0 0.0
          %3156 = vmatprep.subr.mxu0 0.0
          %3157 = vmatpush1.msra.mxu0 0.0
          %3158 = vmatprep.subr.mxu0 0.0
          %3159 = vmatpush1.msra.mxu0 0.0
          %3160 = vmatprep.subr.mxu0 0.0
          %3161 = vmatpush1.msra.mxu0 0.0
          %3162 = vmatprep.subr.mxu0 0.0
          %3163 = vmatpush1.msra.mxu0 0.0
          %3164 = vmatprep.subr.mxu0 0.0
          %3165 = vmatpush1.msra.mxu0 0.0
          %3166 = vmatprep.subr.mxu0 0.0
          %3167 = vmatpush1.msra.mxu0 0.0
          %3168 = vmatprep.subr.mxu0 0.0
          %3169 = vmatpush1.msra.mxu0 0.0
          %3170 = vmatprep.subr.mxu0 0.0
          %3171 = vmatpush1.msra.mxu0 0.0
          %3172 = vmatprep.subr.mxu0 0.0
          %3173 = vmatpush1.msra.mxu0 0.0
          %3174 = vmatprep.subr.mxu0 0.0
          %3175 = vmatpush1.msra.mxu0 0.0
          %3176 = vmatprep.subr.mxu0 0.0
          %3177 = vmatpush1.msra.mxu0 0.0
          %3178 = vmatprep.subr.mxu0 0.0
          %3179 = vmatpush1.msra.mxu0 0.0
          %3180 = vmatprep.subr.mxu0 0.0
          %3181 = vmatpush1.msra.mxu0 0.0
          %3182 = vmatprep.subr.mxu0 0.0
          %3183 = vmatpush1.msra.mxu0 0.0
          %3184 = vmatprep.subr.mxu0 0.0
          %3185 = vmatpush1.msra.mxu0 0.0
          %3186 = vmatprep.subr.mxu0 0.0
          %3187 = vmatpush1.msra.mxu0 0.0
          %3188 = vmatprep.mubr.f32.mxu0 0.0
          %3189 = vmatmul.mubr.f32.gmra.mrb[0].mxu0 %v3122
          %v3190 = vpop.f32.mrb[0].mxu0
          %v3191 = vadd.f32 %v3119, %v3190
          %v3192 = vpop.f32.mrb[0].mxu0
          %3193 = vdwg.mxu0
          %vm3194 = vcmask 31744
          %3195 = vst.msk [vmem:[%s15] sm:$0xff] %vm3194, %v3191
        $region104: #{transformer_actor_forward.1} parent=79 // pred_fallthru
          _
        // Predicated region
        $region105: #{transformer_actor_forward.1} parent=79 // pred_check
          %p3196 = pneg %p409
        $region106: #{transformer_actor_forward.1} parent=79 // pred_check_branch
          %3198 = sbr.rel (%p3196) target = $region108
        $region107: #{transformer_actor_forward.1} parent=79 // pred_region
          _
        $region108: #{transformer_actor_forward.1} parent=79 // pred_fallthru
          _
        // Predicated region
        $region109: #{transformer_actor_forward.1} parent=79 // pred_check
          %p3199 = pneg %p409
        $region110: #{transformer_actor_forward.1} parent=79 // pred_check_branch
          %3201 = sbr.rel (%p3199) target = $region112
        $region111: #{transformer_actor_forward.1} parent=79 // pred_region
          _
        $region112: #{transformer_actor_forward.1} parent=79 // pred_fallthru
          _
      $region80: #{transformer_actor_forward.1} parent=5 // pred_fallthru
        _
      %p3202 = scmp.le.s32.totalorder 2, %s26
      // Predicated region
      $region113: #{transformer_actor_forward.1} parent=5 // pred_check
        %p3203 = pneg %p3202
      $region114: #{transformer_actor_forward.1} parent=5 // pred_check_branch
        %3205 = sbr.rel (%p3203) target = $region116
      $region115: #{transformer_actor_forward.1} parent=5 // pred_region
        %s3206 = ssub.s32 %s26, 2
      $region116: #{transformer_actor_forward.1} parent=5 // pred_fallthru
        _
    $region6: #{transformer_actor_forward.1} parent=1 // loop_footer
      %s30 = sadd.s32 1, %s26
    $region7: #{transformer_actor_forward.1} parent=1 // loop_footer_branch
      %25 = sbr.rel target = $region3
    $region8: #{transformer_actor_forward.1} parent=1 // loop_exit
      _
    %3207 = vsyncpa [#allocation4], 1
    %s3208 = scalar_lea.sflag [#allocation4], 1
    %3209 = vsyncpa %s3208, 1
    %3210 = vsyncpa [#allocation6], 1
    %s3211 = scalar_lea.sflag [#allocation6], 1
    %3212 = vsyncpa %s3211, 1
    %3213 = vsyncpa [#allocation9], 1

</llo_original>
